<compile_context>
chip_gen: v7x
topology: tpu7x:2x2x1
jax: 0.10.0
libtpu: 0.0.40
codegen_flags: <defaults>
</compile_context>

<pallas_src>
import math

import jax
import jax.numpy as jnp
from jax import lax
from jax.experimental import pallas as pl
from jax.experimental.pallas import tpu as pltpu

HIDDEN = 32
HEADS = 4
DK = HIDDEN // HEADS
VBLK = 16                     # per-head [V_h | ones | zero-pad] lane block (16-aligned)
LN_EPS = 1e-5                 # nn.LayerNorm default eps
MASK_VALUE = -1e30            # additive bias for non-edges (finite, bf16-representable)
MASK_CLAMP = -1e29            # row-max clamp so all-masked rows still exp() to 0
MXU_DTYPE = jnp.bfloat16      # matmul operand dtype (accumulation is always f32)
LANE_ALIGN = 128              # node-axis padding -> lane-dense scores / full MXU tiles


# --------------------------------------------------------------------------- kernel
def _make_kernel(exp_dtype):
    def kernel(bias_ref, xt_ref, kt_ref, v1_ref,
               wq_ref, bq_ref, wo_ref, bo_ref,
               g1_ref, be1_ref, w1_ref, b1_ref, w2_ref, b2_ref,
               g2_ref, be2_ref, out_ref):
        f32 = jnp.float32
        xt = xt_ref[...]                              # (TM, D) target-row block (f32)
        bias = bias_ref[...].astype(f32)              # (TM, NP) additive edge bias

        # Q only for the target rows (1/sqrt(d_k) pre-folded into wq/bq).
        q = jnp.dot(xt.astype(MXU_DTYPE), wq_ref[...],
                    preferred_element_type=f32) + bq_ref[...]
        kt = kt_ref[...]                              # (D, NP)  bf16, precomputed K^T
        v1 = v1_ref[...]                              # (NP, HEADS*VBLK) bf16 [V_h|1|0]
        wo = wo_ref[...]                              # (D, D) bf16

        # ---- edge-restricted multi-head attention (static loop over 4 heads) ----
        attn = bo_ref[...].astype(f32)                # (1, D); broadcasts on first add
        for h in range(HEADS):
            qh = q[:, h * DK:(h + 1) * DK].astype(MXU_DTYPE)         # (TM, dk)
            s = jnp.dot(qh, kt[h * DK:(h + 1) * DK, :],
                        preferred_element_type=f32)                  # (TM, NP)
            s = s + bias                              # non-edges -> ~ -1e30
            m = jnp.maximum(jnp.max(s, axis=-1, keepdims=True), f32(MASK_CLAMP))
            # exp in bf16 on v6e/v7x (packed EUP); masked lanes underflow to 0.
            p = jnp.exp((s - m).astype(exp_dtype)).astype(MXU_DTYPE)
            # ctx and the softmax denominator in a single MXU call via [V_h | 1 | 0s].
            ctx1 = jnp.dot(p, v1[:, h * VBLK:(h + 1) * VBLK],
                           preferred_element_type=f32)               # (TM, VBLK)
            inv = pl.reciprocal(ctx1[:, DK:DK + 1] + f32(1e-16), approx=True)
            ctx = ctx1[:, :DK] * inv                  # deferred normalization (TM, dk)
            # fold this head's slice of the output projection (no lane-dim concat)
            attn = attn + jnp.dot(ctx.astype(MXU_DTYPE), wo[h * DK:(h + 1) * DK, :],
                                  preferred_element_type=f32)        # (TM, D)

        # ---- residual + LayerNorm1 (dropout = identity) ----
        z = xt + attn
        mu = jnp.mean(z, axis=-1, keepdims=True)
        var = jnp.mean((z - mu) ** 2, axis=-1, keepdims=True)
        y = (z - mu) * lax.rsqrt(var + f32(LN_EPS)) * g1_ref[...] + be1_ref[...]

        # ---- feed-forward: Linear(D -> 4D) + ReLU + Linear(4D -> D) ----
        h1 = jnp.dot(y.astype(MXU_DTYPE), w1_ref[...],
                     preferred_element_type=f32) + b1_ref[...]
        h1 = jnp.maximum(h1, 0.0)
        ff = jnp.dot(h1.astype(MXU_DTYPE), w2_ref[...],
                     preferred_element_type=f32) + b2_ref[...]

        # ---- residual + LayerNorm2 ----
        z2 = y + ff
        mu2 = jnp.mean(z2, axis=-1, keepdims=True)
        var2 = jnp.mean((z2 - mu2) ** 2, axis=-1, keepdims=True)
        out_ref[...] = ((z2 - mu2) * lax.rsqrt(var2 + f32(LN_EPS))
                        * g2_ref[...] + be2_ref[...])

    return kernel


# --------------------------------------------------------------------------- helpers
def _round_up(x, m):
    return ((x + m - 1) // m) * m


def _vmem_capacity_bytes():
    try:
        cap = int(pltpu.get_tpu_info().vmem_capacity_bytes)
        if cap > 0:
            return cap
    except Exception:
        pass
    return 64 << 20   # conservative fallback (v7x-sized)


def _exp_dtype():
    """bf16 exp on v6e/v7x (packed EUP); f32 on pre-v6 chips (no packed bf16 EUP/VPU)."""
    try:
        kind = jax.devices()[0].device_kind.lower()
    except Exception:
        return jnp.float32
    if any(t in kind for t in ("v2", "v3", "v4", "v5")):
        return jnp.float32
    return jnp.bfloat16


def _choose_block_rows(n_pad, resident_bytes, cap):
    """Largest row tile that keeps the bf16 bias block, score-plane temporaries and the
    resident tables inside a generation-aware VMEM budget, while dividing n_pad and
    leaving >= 2 grid steps so the 'parallel' axis can shard across v7x's two cores."""
    budget = (96 << 20) if cap >= (128 << 20) else max(cap - (20 << 20), 32 << 20)
    # per target row: bias block (bf16, double-buffered) + ~3.5 live f32/bf16 score
    # planes + row-block I/O (double-buffered) + FFN hidden temporaries
    per_row = 18 * n_pad + 8 * HIDDEN * 4 + 4 * 4 * HIDDEN * 4
    avail = budget - 2 * resident_bytes - (4 << 20)
    tm_budget = max(16, avail // max(per_row, 1))
    tm = 16
    for c in (512, 256, 128, 64, 32, 16):
        if c <= tm_budget and n_pad % c == 0:
            tm = c
            break
    if tm >= n_pad and n_pad >= 32:
        tm = n_pad // 2          # at least 2 grid steps (multiple of 64: still aligned)
    return int(tm)


def _vmem_limit_bytes(tm, n_pad, resident_bytes, cap):
    est = (2 * tm * n_pad * 2        # bf16 bias block, double-buffered
           + 14 * tm * n_pad         # f32 score/bias temporaries + bf16 p
           + 2 * resident_bytes      # resident tables + weights (conservative x2)
           + 4 * tm * HIDDEN * 4     # x / out row blocks, double-buffered
           + 2 * tm * 4 * HIDDEN * 4 # FFN hidden temporaries
           + (6 << 20))              # margin
    return int(min(max(est, 32 << 20), cap - (16 << 20)))


def init_params(key, hidden_dim=HIDDEN):
    ks = jax.random.split(key, 6)
    d = hidden_dim
    s = 1.0 / math.sqrt(d)
    s4 = 1.0 / math.sqrt(4 * d)
    return {
        "wq": jax.random.uniform(ks[0], (d, d), jnp.float32, -s, s),
        "bq": jnp.zeros((1, d), jnp.float32),
        "wk": jax.random.uniform(ks[1], (d, d), jnp.float32, -s, s),
        "bk": jnp.zeros((1, d), jnp.float32),
        "wv": jax.random.uniform(ks[2], (d, d), jnp.float32, -s, s),
        "bv": jnp.zeros((1, d), jnp.float32),
        "wo": jax.random.uniform(ks[3], (d, d), jnp.float32, -s, s),
        "bo": jnp.zeros((1, d), jnp.float32),
        "ln1_g": jnp.ones((1, d), jnp.float32),
        "ln1_b": jnp.zeros((1, d), jnp.float32),
        "w1": jax.random.uniform(ks[4], (d, 4 * d), jnp.float32, -s, s),
        "b1": jnp.zeros((1, 4 * d), jnp.float32),
        "w2": jax.random.uniform(ks[5], (4 * d, d), jnp.float32, -s4, s4),
        "b2": jnp.zeros((1, d), jnp.float32),
        "ln2_g": jnp.ones((1, d), jnp.float32),
        "ln2_b": jnp.zeros((1, d), jnp.float32),
    }


def _pack_params(params):
    """One-time weight transforms: fold 1/sqrt(d_k) into wq/bq, pre-cast MXU weights."""
    mx = MXU_DTYPE
    inv = 1.0 / math.sqrt(DK)
    return (
        (params["wq"] * inv).astype(mx), params["bq"] * inv,
        params["wo"].astype(mx), params["bo"],
        params["ln1_g"], params["ln1_b"],
        params["w1"].astype(mx), params["b1"],
        params["w2"].astype(mx), params["b2"],
        params["ln2_g"], params["ln2_b"],
    )


def _node_tables(x_p, params):
    """Precompute (once, wrapper-side) the resident bf16 node tables:
       K^T of shape (D, NP) and the per-head [V_h | 1 | 0-pad] table of shape (NP, 4*16)
       so p @ [V_h | 1] yields ctx and the softmax denominator in one MXU call."""
    n_pad = x_p.shape[0]
    k_tab = x_p @ params["wk"] + params["bk"]                   # (NP, D)
    v_tab = x_p @ params["wv"] + params["bv"]                   # (NP, D)
    kt_tab = k_tab.T.astype(MXU_DTYPE)                          # (D, NP)
    v_h = v_tab.reshape(n_pad, HEADS, DK)
    ones = jnp.ones((n_pad, HEADS, 1), v_tab.dtype)
    zeros = jnp.zeros((n_pad, HEADS, VBLK - DK - 1), v_tab.dtype)
    v1_tab = jnp.concatenate([v_h, ones, zeros], axis=-1).reshape(n_pad, HEADS * VBLK)
    return kt_tab, v1_tab.astype(MXU_DTYPE)


# --------------------------------------------------------------------------- wrapper
def graph_transformer_layer(x, edge_index, params):
    """Pallas-backed forward pass. x: (N, HIDDEN) f32, edge_index: (2, E) int32."""
    n, d = x.shape
    assert d == HIDDEN
    src, tgt = edge_index[0], edge_index[1]

    # pad the node axis to 128 lanes: padded source columns are masked by the bias,
    # padded target rows are sliced off at the end.
    n_pad = _round_up(n, LANE_ALIGN)
    x_p = x if n_pad == n else jnp.pad(x, ((0, n_pad - n), (0, 0)))

    # additive attention bias (0 on edges, MASK_VALUE elsewhere), built once in bf16.
    bias = jnp.full((n_pad, n_pad), MASK_VALUE, dtype=jnp.bfloat16).at[tgt, src].set(0.0)

    kt_tab, v1_tab = _node_tables(x_p, params)
    weights = _pack_params(params)

    resident_bytes = (kt_tab.size * kt_tab.dtype.itemsize
                      + v1_tab.size * v1_tab.dtype.itemsize
                      + sum(int(w.size) * w.dtype.itemsize for w in weights))
    cap = _vmem_capacity_bytes()
    tm = _choose_block_rows(n_pad, resident_bytes, cap)
    grid = (n_pad // tm,)
    vmem_limit = _vmem_limit_bytes(tm, n_pad, resident_bytes, cap)
    exp_dtype = _exp_dtype()

    def build(use_buffered):
        row_block = pl.BlockSpec((tm, d), lambda i: (i, 0))
        bias_block = pl.BlockSpec((tm, n_pad), lambda i: (i, 0))

        def resident(arr):   # full array, same block every grid step -> stays in VMEM
            idx = lambda i, _nd=arr.ndim: (0,) * _nd
            if use_buffered:
                # constant index_map -> single buffer is enough (halves residency)
                return pl.BlockSpec(arr.shape, idx, pipeline_mode=pl.Buffered(1))
            return pl.BlockSpec(arr.shape, idx)

        in_specs = ([bias_block, row_block, resident(kt_tab), resident(v1_tab)]
                    + [resident(w) for w in weights])
        return pl.pallas_call(
            _make_kernel(exp_dtype),
            out_shape=jax.ShapeDtypeStruct((n_pad, d), jnp.float32),
            grid=grid,
            in_specs=in_specs,
            out_specs=row_block,
            compiler_params=pltpu.CompilerParams(
                dimension_semantics=("parallel",),   # shards row tiles across TCs (v7x)
                vmem_limit_bytes=vmem_limit),
        )

    args = (bias, x_p, kt_tab, v1_tab) + weights
    try:
        out = build(True)(*args)
    except Exception:
        # pipeline_mode=pl.Buffered(1) unsupported on this jax/Mosaic build -> default.
        out = build(False)(*args)
    return out[:n]


# --------------------------------------------------------------------------- reference
def _reference_forward(x, edge_index, params):
    """Plain-JAX f32 reference (same math as the PyTorch module, eval mode)."""
    n = x.shape[0]
    src, tgt = edge_index[0], edge_index[1]
    mask = jnp.zeros((n, n), jnp.float32).at[tgt, src].set(1.0) > 0
    q = x @ params["wq"] + params["bq"]
    k = x @ params["wk"] + params["bk"]
    v = x @ params["wv"] + params["bv"]
    outs = []
    for h in range(HEADS):
        sl = slice(h * DK, (h + 1) * DK)
        s = (q[:, sl] @ k[:, sl].T) / math.sqrt(DK)
        s = jnp.where(mask, s, -jnp.inf)
        m = jnp.maximum(jnp.max(s, -1, keepdims=True), -1e30)
        p = jnp.where(mask, jnp.exp(s - m), 0.0)
        outs.append((p / (jnp.sum(p, -1, keepdims=True) + 1e-16)) @ v[:, sl])
    attn = jnp.concatenate(outs, -1) @ params["wo"] + params["bo"]
    z = x + attn
    y = (z - z.mean(-1, keepdims=True)) / jnp.sqrt(z.var(-1, keepdims=True) + LN_EPS)
    y = y * params["ln1_g"] + params["ln1_b"]
    h1 = jnp.maximum(y @ params["w1"] + params["b1"], 0.0)
    ff = h1 @ params["w2"] + params["b2"]
    z2 = y + ff
    y2 = (z2 - z2.mean(-1, keepdims=True)) / jnp.sqrt(z2.var(-1, keepdims=True) + LN_EPS)
    return y2 * params["ln2_g"] + params["ln2_b"]


# --------------------------------------------------------------------------- demo
if __name__ == "__main__":
    key = jax.random.PRNGKey(0)
    k_x, k_p = jax.random.split(key)

    N = 16
    x = jax.random.normal(k_x, (N, HIDDEN), jnp.float32)

    # deterministic, duplicate-free edge list; node 0 has no incoming edge
    src_list, tgt_list = [], []
    for t in range(N):
        if t == 0:
            continue
        for dlt in (1, 3, 5):
            src_list.append((t + dlt) % N)
            tgt_list.append(t)
    edge_index = jnp.array([src_list, tgt_list], dtype=jnp.int32)  # (2, 45)

    params = init_params(k_p)

    out = graph_transformer_layer(x, edge_index, params)
    out = jax.block_until_ready(out)

    assert out.shape == (N, HIDDEN)
    assert bool(jnp.all(jnp.isfinite(out)))

    # loose tolerance: kernel uses bf16 MXU operands, bf16 exp (v6e+), approx reciprocal
    ref = _reference_forward(x, edge_index, params)
    max_err = float(jnp.max(jnp.abs(out - ref)))
    assert max_err < 0.2, f"mismatch vs reference: {max_err}"

    print("KERNEL_OK")
</pallas_src>

<mosaic_0001>
module attributes {stable_mosaic.version = 11 : i64} {
  func.func @kernel(%arg0: i32, %arg1: memref<64x128xbf16, #tpu.memory_space<vmem>>, %arg2: memref<64x32xf32, #tpu.memory_space<vmem>>, %arg3: memref<32x128xbf16, #tpu.memory_space<vmem>>, %arg4: memref<128x64xbf16, #tpu.memory_space<vmem>>, %arg5: memref<32x32xbf16, #tpu.memory_space<vmem>>, %arg6: memref<1x32xf32, #tpu.memory_space<vmem>>, %arg7: memref<32x32xbf16, #tpu.memory_space<vmem>>, %arg8: memref<1x32xf32, #tpu.memory_space<vmem>>, %arg9: memref<1x32xf32, #tpu.memory_space<vmem>>, %arg10: memref<1x32xf32, #tpu.memory_space<vmem>>, %arg11: memref<32x128xbf16, #tpu.memory_space<vmem>>, %arg12: memref<1x128xf32, #tpu.memory_space<vmem>>, %arg13: memref<128x32xbf16, #tpu.memory_space<vmem>>, %arg14: memref<1x32xf32, #tpu.memory_space<vmem>>, %arg15: memref<1x32xf32, #tpu.memory_space<vmem>>, %arg16: memref<1x32xf32, #tpu.memory_space<vmem>>, %arg17: memref<64x32xf32, #tpu.memory_space<vmem>>) attributes {dimension_semantics = [#tpu.dimension_semantics<parallel>], iteration_bounds = array<i64: 2>, scalar_prefetch = 0 : i64, scratch_operands = 0 : i64, tpu.core_type = #tpu.core_type<tc>, window_params = [{transform_indices = @transform_0, window_bounds = array<i64: 64, 128>}, {transform_indices = @transform_1, window_bounds = array<i64: 64, 32>}, {pipeline_mode = #tpu.pipeline_mode<synchronous>, transform_indices = @transform_2, window_bounds = array<i64: 32, 128>}, {pipeline_mode = #tpu.pipeline_mode<synchronous>, transform_indices = @transform_3, window_bounds = array<i64: 128, 64>}, {pipeline_mode = #tpu.pipeline_mode<synchronous>, transform_indices = @transform_4, window_bounds = array<i64: 32, 32>}, {pipeline_mode = #tpu.pipeline_mode<synchronous>, transform_indices = @transform_5, window_bounds = array<i64: 1, 32>}, {pipeline_mode = #tpu.pipeline_mode<synchronous>, transform_indices = @transform_6, window_bounds = array<i64: 32, 32>}, {pipeline_mode = #tpu.pipeline_mode<synchronous>, transform_indices = @transform_7, window_bounds = array<i64: 1, 32>}, {pipeline_mode = #tpu.pipeline_mode<synchronous>, transform_indices = @transform_8, window_bounds = array<i64: 1, 32>}, {pipeline_mode = #tpu.pipeline_mode<synchronous>, transform_indices = @transform_9, window_bounds = array<i64: 1, 32>}, {pipeline_mode = #tpu.pipeline_mode<synchronous>, transform_indices = @transform_10, window_bounds = array<i64: 32, 128>}, {pipeline_mode = #tpu.pipeline_mode<synchronous>, transform_indices = @transform_11, window_bounds = array<i64: 1, 128>}, {pipeline_mode = #tpu.pipeline_mode<synchronous>, transform_indices = @transform_12, window_bounds = array<i64: 128, 32>}, {pipeline_mode = #tpu.pipeline_mode<synchronous>, transform_indices = @transform_13, window_bounds = array<i64: 1, 32>}, {pipeline_mode = #tpu.pipeline_mode<synchronous>, transform_indices = @transform_14, window_bounds = array<i64: 1, 32>}, {pipeline_mode = #tpu.pipeline_mode<synchronous>, transform_indices = @transform_15, window_bounds = array<i64: 1, 32>}, {transform_indices = @transform_16, window_bounds = array<i64: 64, 32>}]} {
    %c0 = arith.constant 0 : index
    %c0_0 = arith.constant 0 : index
    %0 = vector.load %arg2[%c0, %c0_0] : memref<64x32xf32, #tpu.memory_space<vmem>>, vector<64x32xf32>
    %c0_1 = arith.constant 0 : index
    %c0_2 = arith.constant 0 : index
    %1 = vector.load %arg1[%c0_1, %c0_2] : memref<64x128xbf16, #tpu.memory_space<vmem>>, vector<64x128xbf16>
    %2 = arith.extf %1 : vector<64x128xbf16> to vector<64x128xf32>
    %3 = arith.truncf %0 : vector<64x32xf32> to vector<64x32xbf16>
    %c0_3 = arith.constant 0 : index
    %c0_4 = arith.constant 0 : index
    %4 = vector.load %arg5[%c0_3, %c0_4] : memref<32x32xbf16, #tpu.memory_space<vmem>>, vector<32x32xbf16>
    %cst = arith.constant dense<0.000000e+00> : vector<64x32xf32>
    %5 = tpu.matmul %3, %4, %cst {dimension_numbers = #tpu.dot_dimension_numbers<[1], [0], [0], [1], [0, 0, 1, 1], [], []>} : vector<64x32xbf16>, vector<32x32xbf16>, vector<64x32xf32> -> vector<64x32xf32>
    %c0_5 = arith.constant 0 : index
    %c0_6 = arith.constant 0 : index
    %6 = vector.load %arg6[%c0_5, %c0_6] : memref<1x32xf32, #tpu.memory_space<vmem>>, vector<1x32xf32>
    %7 = vector.broadcast %6 : vector<1x32xf32> to vector<64x32xf32>
    %8 = arith.addf %5, %7 : vector<64x32xf32>
    %c0_7 = arith.constant 0 : index
    %c0_8 = arith.constant 0 : index
    %9 = vector.load %arg3[%c0_7, %c0_8] : memref<32x128xbf16, #tpu.memory_space<vmem>>, vector<32x128xbf16>
    %c0_9 = arith.constant 0 : index
    %c0_10 = arith.constant 0 : index
    %10 = vector.load %arg4[%c0_9, %c0_10] : memref<128x64xbf16, #tpu.memory_space<vmem>>, vector<128x64xbf16>
    %c0_11 = arith.constant 0 : index
    %c0_12 = arith.constant 0 : index
    %11 = vector.load %arg7[%c0_11, %c0_12] : memref<32x32xbf16, #tpu.memory_space<vmem>>, vector<32x32xbf16>
    %c0_13 = arith.constant 0 : index
    %c0_14 = arith.constant 0 : index
    %12 = vector.load %arg8[%c0_13, %c0_14] : memref<1x32xf32, #tpu.memory_space<vmem>>, vector<1x32xf32>
    %13 = vector.extract_strided_slice %8 {offsets = [0, 0], sizes = [64, 8], strides = [1, 1]} : vector<64x32xf32> to vector<64x8xf32>
    %14 = arith.truncf %13 : vector<64x8xf32> to vector<64x8xbf16>
    %15 = vector.extract_strided_slice %9 {offsets = [0, 0], sizes = [8, 128], strides = [1, 1]} : vector<32x128xbf16> to vector<8x128xbf16>
    %cst_15 = arith.constant dense<0.000000e+00> : vector<64x128xf32>
    %16 = tpu.matmul %14, %15, %cst_15 {dimension_numbers = #tpu.dot_dimension_numbers<[1], [0], [0], [1], [0, 0, 1, 1], [], []>} : vector<64x8xbf16>, vector<8x128xbf16>, vector<64x128xf32> -> vector<64x128xf32>
    %17 = arith.addf %16, %2 : vector<64x128xf32>
    %cst_16 = arith.constant dense<0xFF800000> : vector<64xf32>
    %18 = vector.multi_reduction <maximumf>, %17, %cst_16 [1] : vector<64x128xf32> to vector<64xf32>
    %19 = vector.shape_cast %18 : vector<64xf32> to vector<64x1xf32>
    %cst_17 = arith.constant -1.000000e+29 : f32
    %20 = vector.broadcast %cst_17 : f32 to vector<64x1xf32>
    %21 = arith.maximumf %19, %20 : vector<64x1xf32>
    %22 = vector.broadcast %21 : vector<64x1xf32> to vector<64x128xf32>
    %23 = arith.subf %17, %22 : vector<64x128xf32>
    %24 = arith.truncf %23 : vector<64x128xf32> to vector<64x128xbf16>
    %25 = math.exp %24 : vector<64x128xbf16>
    %26 = vector.extract_strided_slice %10 {offsets = [0, 0], sizes = [128, 16], strides = [1, 1]} : vector<128x64xbf16> to vector<128x16xbf16>
    %cst_18 = arith.constant dense<0.000000e+00> : vector<64x16xf32>
    %27 = tpu.matmul %25, %26, %cst_18 {dimension_numbers = #tpu.dot_dimension_numbers<[1], [0], [0], [1], [0, 0, 1, 1], [], []>} : vector<64x128xbf16>, vector<128x16xbf16>, vector<64x16xf32> -> vector<64x16xf32>
    %28 = vector.extract_strided_slice %27 {offsets = [0, 8], sizes = [64, 1], strides = [1, 1]} : vector<64x16xf32> to vector<64x1xf32>
    %cst_19 = arith.constant 1.000000e-16 : f32
    %29 = vector.broadcast %cst_19 : f32 to vector<64x1xf32>
    %30 = arith.addf %28, %29 : vector<64x1xf32>
    %31 = tpu.reciprocal %30 {approx = true} : vector<64x1xf32> -> vector<64x1xf32>
    %32 = vector.extract_strided_slice %27 {offsets = [0, 0], sizes = [64, 8], strides = [1, 1]} : vector<64x16xf32> to vector<64x8xf32>
    %33 = vector.broadcast %31 : vector<64x1xf32> to vector<64x8xf32>
    %34 = arith.mulf %32, %33 : vector<64x8xf32>
    %35 = arith.truncf %34 : vector<64x8xf32> to vector<64x8xbf16>
    %36 = vector.extract_strided_slice %11 {offsets = [0, 0], sizes = [8, 32], strides = [1, 1]} : vector<32x32xbf16> to vector<8x32xbf16>
    %cst_20 = arith.constant dense<0.000000e+00> : vector<64x32xf32>
    %37 = tpu.matmul %35, %36, %cst_20 {dimension_numbers = #tpu.dot_dimension_numbers<[1], [0], [0], [1], [0, 0, 1, 1], [], []>} : vector<64x8xbf16>, vector<8x32xbf16>, vector<64x32xf32> -> vector<64x32xf32>
    %38 = vector.broadcast %12 : vector<1x32xf32> to vector<64x32xf32>
    %39 = arith.addf %38, %37 : vector<64x32xf32>
    %40 = vector.extract_strided_slice %8 {offsets = [0, 8], sizes = [64, 8], strides = [1, 1]} : vector<64x32xf32> to vector<64x8xf32>
    %41 = arith.truncf %40 : vector<64x8xf32> to vector<64x8xbf16>
    %42 = vector.extract_strided_slice %9 {offsets = [8, 0], sizes = [8, 128], strides = [1, 1]} : vector<32x128xbf16> to vector<8x128xbf16>
    %cst_21 = arith.constant dense<0.000000e+00> : vector<64x128xf32>
    %43 = tpu.matmul %41, %42, %cst_21 {dimension_numbers = #tpu.dot_dimension_numbers<[1], [0], [0], [1], [0, 0, 1, 1], [], []>} : vector<64x8xbf16>, vector<8x128xbf16>, vector<64x128xf32> -> vector<64x128xf32>
    %44 = arith.addf %43, %2 : vector<64x128xf32>
    %cst_22 = arith.constant dense<0xFF800000> : vector<64xf32>
    %45 = vector.multi_reduction <maximumf>, %44, %cst_22 [1] : vector<64x128xf32> to vector<64xf32>
    %46 = vector.shape_cast %45 : vector<64xf32> to vector<64x1xf32>
    %cst_23 = arith.constant -1.000000e+29 : f32
    %47 = vector.broadcast %cst_23 : f32 to vector<64x1xf32>
    %48 = arith.maximumf %46, %47 : vector<64x1xf32>
    %49 = vector.broadcast %48 : vector<64x1xf32> to vector<64x128xf32>
    %50 = arith.subf %44, %49 : vector<64x128xf32>
    %51 = arith.truncf %50 : vector<64x128xf32> to vector<64x128xbf16>
    %52 = math.exp %51 : vector<64x128xbf16>
    %53 = vector.extract_strided_slice %10 {offsets = [0, 16], sizes = [128, 16], strides = [1, 1]} : vector<128x64xbf16> to vector<128x16xbf16>
    %cst_24 = arith.constant dense<0.000000e+00> : vector<64x16xf32>
    %54 = tpu.matmul %52, %53, %cst_24 {dimension_numbers = #tpu.dot_dimension_numbers<[1], [0], [0], [1], [0, 0, 1, 1], [], []>} : vector<64x128xbf16>, vector<128x16xbf16>, vector<64x16xf32> -> vector<64x16xf32>
    %55 = vector.extract_strided_slice %54 {offsets = [0, 8], sizes = [64, 1], strides = [1, 1]} : vector<64x16xf32> to vector<64x1xf32>
    %cst_25 = arith.constant 1.000000e-16 : f32
    %56 = vector.broadcast %cst_25 : f32 to vector<64x1xf32>
    %57 = arith.addf %55, %56 : vector<64x1xf32>
    %58 = tpu.reciprocal %57 {approx = true} : vector<64x1xf32> -> vector<64x1xf32>
    %59 = vector.extract_strided_slice %54 {offsets = [0, 0], sizes = [64, 8], strides = [1, 1]} : vector<64x16xf32> to vector<64x8xf32>
    %60 = vector.broadcast %58 : vector<64x1xf32> to vector<64x8xf32>
    %61 = arith.mulf %59, %60 : vector<64x8xf32>
    %62 = arith.truncf %61 : vector<64x8xf32> to vector<64x8xbf16>
    %63 = vector.extract_strided_slice %11 {offsets = [8, 0], sizes = [8, 32], strides = [1, 1]} : vector<32x32xbf16> to vector<8x32xbf16>
    %cst_26 = arith.constant dense<0.000000e+00> : vector<64x32xf32>
    %64 = tpu.matmul %62, %63, %cst_26 {dimension_numbers = #tpu.dot_dimension_numbers<[1], [0], [0], [1], [0, 0, 1, 1], [], []>} : vector<64x8xbf16>, vector<8x32xbf16>, vector<64x32xf32> -> vector<64x32xf32>
    %65 = arith.addf %39, %64 : vector<64x32xf32>
    %66 = vector.extract_strided_slice %8 {offsets = [0, 16], sizes = [64, 8], strides = [1, 1]} : vector<64x32xf32> to vector<64x8xf32>
    %67 = arith.truncf %66 : vector<64x8xf32> to vector<64x8xbf16>
    %68 = vector.extract_strided_slice %9 {offsets = [16, 0], sizes = [8, 128], strides = [1, 1]} : vector<32x128xbf16> to vector<8x128xbf16>
    %cst_27 = arith.constant dense<0.000000e+00> : vector<64x128xf32>
    %69 = tpu.matmul %67, %68, %cst_27 {dimension_numbers = #tpu.dot_dimension_numbers<[1], [0], [0], [1], [0, 0, 1, 1], [], []>} : vector<64x8xbf16>, vector<8x128xbf16>, vector<64x128xf32> -> vector<64x128xf32>
    %70 = arith.addf %69, %2 : vector<64x128xf32>
    %cst_28 = arith.constant dense<0xFF800000> : vector<64xf32>
    %71 = vector.multi_reduction <maximumf>, %70, %cst_28 [1] : vector<64x128xf32> to vector<64xf32>
    %72 = vector.shape_cast %71 : vector<64xf32> to vector<64x1xf32>
    %cst_29 = arith.constant -1.000000e+29 : f32
    %73 = vector.broadcast %cst_29 : f32 to vector<64x1xf32>
    %74 = arith.maximumf %72, %73 : vector<64x1xf32>
    %75 = vector.broadcast %74 : vector<64x1xf32> to vector<64x128xf32>
    %76 = arith.subf %70, %75 : vector<64x128xf32>
    %77 = arith.truncf %76 : vector<64x128xf32> to vector<64x128xbf16>
    %78 = math.exp %77 : vector<64x128xbf16>
    %79 = vector.extract_strided_slice %10 {offsets = [0, 32], sizes = [128, 16], strides = [1, 1]} : vector<128x64xbf16> to vector<128x16xbf16>
    %cst_30 = arith.constant dense<0.000000e+00> : vector<64x16xf32>
    %80 = tpu.matmul %78, %79, %cst_30 {dimension_numbers = #tpu.dot_dimension_numbers<[1], [0], [0], [1], [0, 0, 1, 1], [], []>} : vector<64x128xbf16>, vector<128x16xbf16>, vector<64x16xf32> -> vector<64x16xf32>
    %81 = vector.extract_strided_slice %80 {offsets = [0, 8], sizes = [64, 1], strides = [1, 1]} : vector<64x16xf32> to vector<64x1xf32>
    %cst_31 = arith.constant 1.000000e-16 : f32
    %82 = vector.broadcast %cst_31 : f32 to vector<64x1xf32>
    %83 = arith.addf %81, %82 : vector<64x1xf32>
    %84 = tpu.reciprocal %83 {approx = true} : vector<64x1xf32> -> vector<64x1xf32>
    %85 = vector.extract_strided_slice %80 {offsets = [0, 0], sizes = [64, 8], strides = [1, 1]} : vector<64x16xf32> to vector<64x8xf32>
    %86 = vector.broadcast %84 : vector<64x1xf32> to vector<64x8xf32>
    %87 = arith.mulf %85, %86 : vector<64x8xf32>
    %88 = arith.truncf %87 : vector<64x8xf32> to vector<64x8xbf16>
    %89 = vector.extract_strided_slice %11 {offsets = [16, 0], sizes = [8, 32], strides = [1, 1]} : vector<32x32xbf16> to vector<8x32xbf16>
    %cst_32 = arith.constant dense<0.000000e+00> : vector<64x32xf32>
    %90 = tpu.matmul %88, %89, %cst_32 {dimension_numbers = #tpu.dot_dimension_numbers<[1], [0], [0], [1], [0, 0, 1, 1], [], []>} : vector<64x8xbf16>, vector<8x32xbf16>, vector<64x32xf32> -> vector<64x32xf32>
    %91 = arith.addf %65, %90 : vector<64x32xf32>
    %92 = vector.extract_strided_slice %8 {offsets = [0, 24], sizes = [64, 8], strides = [1, 1]} : vector<64x32xf32> to vector<64x8xf32>
    %93 = arith.truncf %92 : vector<64x8xf32> to vector<64x8xbf16>
    %94 = vector.extract_strided_slice %9 {offsets = [24, 0], sizes = [8, 128], strides = [1, 1]} : vector<32x128xbf16> to vector<8x128xbf16>
    %cst_33 = arith.constant dense<0.000000e+00> : vector<64x128xf32>
    %95 = tpu.matmul %93, %94, %cst_33 {dimension_numbers = #tpu.dot_dimension_numbers<[1], [0], [0], [1], [0, 0, 1, 1], [], []>} : vector<64x8xbf16>, vector<8x128xbf16>, vector<64x128xf32> -> vector<64x128xf32>
    %96 = arith.addf %95, %2 : vector<64x128xf32>
    %cst_34 = arith.constant dense<0xFF800000> : vector<64xf32>
    %97 = vector.multi_reduction <maximumf>, %96, %cst_34 [1] : vector<64x128xf32> to vector<64xf32>
    %98 = vector.shape_cast %97 : vector<64xf32> to vector<64x1xf32>
    %cst_35 = arith.constant -1.000000e+29 : f32
    %99 = vector.broadcast %cst_35 : f32 to vector<64x1xf32>
    %100 = arith.maximumf %98, %99 : vector<64x1xf32>
    %101 = vector.broadcast %100 : vector<64x1xf32> to vector<64x128xf32>
    %102 = arith.subf %96, %101 : vector<64x128xf32>
    %103 = arith.truncf %102 : vector<64x128xf32> to vector<64x128xbf16>
    %104 = math.exp %103 : vector<64x128xbf16>
    %105 = vector.extract_strided_slice %10 {offsets = [0, 48], sizes = [128, 16], strides = [1, 1]} : vector<128x64xbf16> to vector<128x16xbf16>
    %cst_36 = arith.constant dense<0.000000e+00> : vector<64x16xf32>
    %106 = tpu.matmul %104, %105, %cst_36 {dimension_numbers = #tpu.dot_dimension_numbers<[1], [0], [0], [1], [0, 0, 1, 1], [], []>} : vector<64x128xbf16>, vector<128x16xbf16>, vector<64x16xf32> -> vector<64x16xf32>
    %107 = vector.extract_strided_slice %106 {offsets = [0, 8], sizes = [64, 1], strides = [1, 1]} : vector<64x16xf32> to vector<64x1xf32>
    %cst_37 = arith.constant 1.000000e-16 : f32
    %108 = vector.broadcast %cst_37 : f32 to vector<64x1xf32>
    %109 = arith.addf %107, %108 : vector<64x1xf32>
    %110 = tpu.reciprocal %109 {approx = true} : vector<64x1xf32> -> vector<64x1xf32>
    %111 = vector.extract_strided_slice %106 {offsets = [0, 0], sizes = [64, 8], strides = [1, 1]} : vector<64x16xf32> to vector<64x8xf32>
    %112 = vector.broadcast %110 : vector<64x1xf32> to vector<64x8xf32>
    %113 = arith.mulf %111, %112 : vector<64x8xf32>
    %114 = arith.truncf %113 : vector<64x8xf32> to vector<64x8xbf16>
    %115 = vector.extract_strided_slice %11 {offsets = [24, 0], sizes = [8, 32], strides = [1, 1]} : vector<32x32xbf16> to vector<8x32xbf16>
    %cst_38 = arith.constant dense<0.000000e+00> : vector<64x32xf32>
    %116 = tpu.matmul %114, %115, %cst_38 {dimension_numbers = #tpu.dot_dimension_numbers<[1], [0], [0], [1], [0, 0, 1, 1], [], []>} : vector<64x8xbf16>, vector<8x32xbf16>, vector<64x32xf32> -> vector<64x32xf32>
    %117 = arith.addf %91, %116 : vector<64x32xf32>
    %118 = arith.addf %0, %117 : vector<64x32xf32>
    %cst_39 = arith.constant dense<0.000000e+00> : vector<64xf32>
    %119 = vector.multi_reduction <add>, %118, %cst_39 [1] : vector<64x32xf32> to vector<64xf32>
    %120 = vector.shape_cast %119 : vector<64xf32> to vector<64x1xf32>
    %cst_40 = arith.constant 3.200000e+01 : f32
    %121 = vector.broadcast %cst_40 : f32 to vector<64x1xf32>
    %122 = arith.divf %120, %121 : vector<64x1xf32>
    %123 = vector.broadcast %122 : vector<64x1xf32> to vector<64x32xf32>
    %124 = arith.subf %118, %123 : vector<64x32xf32>
    %125 = arith.mulf %124, %124 : vector<64x32xf32>
    %cst_41 = arith.constant dense<0.000000e+00> : vector<64xf32>
    %126 = vector.multi_reduction <add>, %125, %cst_41 [1] : vector<64x32xf32> to vector<64xf32>
    %127 = vector.shape_cast %126 : vector<64xf32> to vector<64x1xf32>
    %cst_42 = arith.constant 3.200000e+01 : f32
    %128 = vector.broadcast %cst_42 : f32 to vector<64x1xf32>
    %129 = arith.divf %127, %128 : vector<64x1xf32>
    %130 = vector.broadcast %122 : vector<64x1xf32> to vector<64x32xf32>
    %131 = arith.subf %118, %130 : vector<64x32xf32>
    %cst_43 = arith.constant 9.99999974E-6 : f32
    %132 = vector.broadcast %cst_43 : f32 to vector<64x1xf32>
    %133 = arith.addf %129, %132 : vector<64x1xf32>
    %134 = math.rsqrt %133 : vector<64x1xf32>
    %135 = vector.broadcast %134 : vector<64x1xf32> to vector<64x32xf32>
    %136 = arith.mulf %131, %135 : vector<64x32xf32>
    %c0_44 = arith.constant 0 : index
    %c0_45 = arith.constant 0 : index
    %137 = vector.load %arg9[%c0_44, %c0_45] : memref<1x32xf32, #tpu.memory_space<vmem>>, vector<1x32xf32>
    %138 = vector.broadcast %137 : vector<1x32xf32> to vector<64x32xf32>
    %139 = arith.mulf %136, %138 : vector<64x32xf32>
    %c0_46 = arith.constant 0 : index
    %c0_47 = arith.constant 0 : index
    %140 = vector.load %arg10[%c0_46, %c0_47] : memref<1x32xf32, #tpu.memory_space<vmem>>, vector<1x32xf32>
    %141 = vector.broadcast %140 : vector<1x32xf32> to vector<64x32xf32>
    %142 = arith.addf %139, %141 : vector<64x32xf32>
    %143 = arith.truncf %142 : vector<64x32xf32> to vector<64x32xbf16>
    %c0_48 = arith.constant 0 : index
    %c0_49 = arith.constant 0 : index
    %144 = vector.load %arg11[%c0_48, %c0_49] : memref<32x128xbf16, #tpu.memory_space<vmem>>, vector<32x128xbf16>
    %cst_50 = arith.constant dense<0.000000e+00> : vector<64x128xf32>
    %145 = tpu.matmul %143, %144, %cst_50 {dimension_numbers = #tpu.dot_dimension_numbers<[1], [0], [0], [1], [0, 0, 1, 1], [], []>} : vector<64x32xbf16>, vector<32x128xbf16>, vector<64x128xf32> -> vector<64x128xf32>
    %c0_51 = arith.constant 0 : index
    %c0_52 = arith.constant 0 : index
    %146 = vector.load %arg12[%c0_51, %c0_52] : memref<1x128xf32, #tpu.memory_space<vmem>>, vector<1x128xf32>
    %147 = vector.broadcast %146 : vector<1x128xf32> to vector<64x128xf32>
    %148 = arith.addf %145, %147 : vector<64x128xf32>
    %cst_53 = arith.constant 0.000000e+00 : f32
    %149 = vector.broadcast %cst_53 : f32 to vector<64x128xf32>
    %150 = arith.maximumf %148, %149 : vector<64x128xf32>
    %151 = arith.truncf %150 : vector<64x128xf32> to vector<64x128xbf16>
    %c0_54 = arith.constant 0 : index
    %c0_55 = arith.constant 0 : index
    %152 = vector.load %arg13[%c0_54, %c0_55] : memref<128x32xbf16, #tpu.memory_space<vmem>>, vector<128x32xbf16>
    %cst_56 = arith.constant dense<0.000000e+00> : vector<64x32xf32>
    %153 = tpu.matmul %151, %152, %cst_56 {dimension_numbers = #tpu.dot_dimension_numbers<[1], [0], [0], [1], [0, 0, 1, 1], [], []>} : vector<64x128xbf16>, vector<128x32xbf16>, vector<64x32xf32> -> vector<64x32xf32>
    %c0_57 = arith.constant 0 : index
    %c0_58 = arith.constant 0 : index
    %154 = vector.load %arg14[%c0_57, %c0_58] : memref<1x32xf32, #tpu.memory_space<vmem>>, vector<1x32xf32>
    %155 = vector.broadcast %154 : vector<1x32xf32> to vector<64x32xf32>
    %156 = arith.addf %153, %155 : vector<64x32xf32>
    %157 = arith.addf %142, %156 : vector<64x32xf32>
    %cst_59 = arith.constant dense<0.000000e+00> : vector<64xf32>
    %158 = vector.multi_reduction <add>, %157, %cst_59 [1] : vector<64x32xf32> to vector<64xf32>
    %159 = vector.shape_cast %158 : vector<64xf32> to vector<64x1xf32>
    %cst_60 = arith.constant 3.200000e+01 : f32
    %160 = vector.broadcast %cst_60 : f32 to vector<64x1xf32>
    %161 = arith.divf %159, %160 : vector<64x1xf32>
    %162 = vector.broadcast %161 : vector<64x1xf32> to vector<64x32xf32>
    %163 = arith.subf %157, %162 : vector<64x32xf32>
    %164 = arith.mulf %163, %163 : vector<64x32xf32>
    %cst_61 = arith.constant dense<0.000000e+00> : vector<64xf32>
    %165 = vector.multi_reduction <add>, %164, %cst_61 [1] : vector<64x32xf32> to vector<64xf32>
    %166 = vector.shape_cast %165 : vector<64xf32> to vector<64x1xf32>
    %cst_62 = arith.constant 3.200000e+01 : f32
    %167 = vector.broadcast %cst_62 : f32 to vector<64x1xf32>
    %168 = arith.divf %166, %167 : vector<64x1xf32>
    %169 = vector.broadcast %161 : vector<64x1xf32> to vector<64x32xf32>
    %170 = arith.subf %157, %169 : vector<64x32xf32>
    %cst_63 = arith.constant 9.99999974E-6 : f32
    %171 = vector.broadcast %cst_63 : f32 to vector<64x1xf32>
    %172 = arith.addf %168, %171 : vector<64x1xf32>
    %173 = math.rsqrt %172 : vector<64x1xf32>
    %174 = vector.broadcast %173 : vector<64x1xf32> to vector<64x32xf32>
    %175 = arith.mulf %170, %174 : vector<64x32xf32>
    %c0_64 = arith.constant 0 : index
    %c0_65 = arith.constant 0 : index
    %176 = vector.load %arg15[%c0_64, %c0_65] : memref<1x32xf32, #tpu.memory_space<vmem>>, vector<1x32xf32>
    %177 = vector.broadcast %176 : vector<1x32xf32> to vector<64x32xf32>
    %178 = arith.mulf %175, %177 : vector<64x32xf32>
    %c0_66 = arith.constant 0 : index
    %c0_67 = arith.constant 0 : index
    %179 = vector.load %arg16[%c0_66, %c0_67] : memref<1x32xf32, #tpu.memory_space<vmem>>, vector<1x32xf32>
    %180 = vector.broadcast %179 : vector<1x32xf32> to vector<64x32xf32>
    %181 = arith.addf %178, %180 : vector<64x32xf32>
    %c0_68 = arith.constant 0 : index
    %c0_69 = arith.constant 0 : index
    %182 = vector.load %arg17[%c0_68, %c0_69] : memref<64x32xf32, #tpu.memory_space<vmem>>, vector<64x32xf32>
    tpu.vector_store %arg17[%c0_68, %c0_69], %181 {strides = array<i32>} : memref<64x32xf32, #tpu.memory_space<vmem>>, vector<64x32xf32>,
    return
  }
  func.func @transform_0(%arg0: i32) -> (i32, i32) {
    %c0_i32 = arith.constant 0 : i32
    %c0_i32_0 = arith.constant 0 : i32
    return %arg0, %c0_i32 : i32, i32
  }
  func.func @transform_1(%arg0: i32) -> (i32, i32) {
    %c0_i32 = arith.constant 0 : i32
    %c0_i32_0 = arith.constant 0 : i32
    return %arg0, %c0_i32 : i32, i32
  }
  func.func @transform_2(%arg0: i32) -> (i32, i32) {
    %c0_i32 = arith.constant 0 : i32
    %c0_i32_0 = arith.constant 0 : i32
    %c0_i32_1 = arith.constant 0 : i32
    return %c0_i32, %c0_i32_0 : i32, i32
  }
  func.func @transform_3(%arg0: i32) -> (i32, i32) {
    %c0_i32 = arith.constant 0 : i32
    %c0_i32_0 = arith.constant 0 : i32
    %c0_i32_1 = arith.constant 0 : i32
    return %c0_i32, %c0_i32_0 : i32, i32
  }
  func.func @transform_4(%arg0: i32) -> (i32, i32) {
    %c0_i32 = arith.constant 0 : i32
    %c0_i32_0 = arith.constant 0 : i32
    %c0_i32_1 = arith.constant 0 : i32
    return %c0_i32, %c0_i32_0 : i32, i32
  }
  func.func @transform_5(%arg0: i32) -> (i32, i32) {
    %c0_i32 = arith.constant 0 : i32
    %c0_i32_0 = arith.constant 0 : i32
    %c0_i32_1 = arith.constant 0 : i32
    return %c0_i32, %c0_i32_0 : i32, i32
  }
  func.func @transform_6(%arg0: i32) -> (i32, i32) {
    %c0_i32 = arith.constant 0 : i32
    %c0_i32_0 = arith.constant 0 : i32
    %c0_i32_1 = arith.constant 0 : i32
    return %c0_i32, %c0_i32_0 : i32, i32
  }
  func.func @transform_7(%arg0: i32) -> (i32, i32) {
    %c0_i32 = arith.constant 0 : i32
    %c0_i32_0 = arith.constant 0 : i32
    %c0_i32_1 = arith.constant 0 : i32
    return %c0_i32, %c0_i32_0 : i32, i32
  }
  func.func @transform_8(%arg0: i32) -> (i32, i32) {
    %c0_i32 = arith.constant 0 : i32
    %c0_i32_0 = arith.constant 0 : i32
    %c0_i32_1 = arith.constant 0 : i32
    return %c0_i32, %c0_i32_0 : i32, i32
  }
  func.func @transform_9(%arg0: i32) -> (i32, i32) {
    %c0_i32 = arith.constant 0 : i32
    %c0_i32_0 = arith.constant 0 : i32
    %c0_i32_1 = arith.constant 0 : i32
    return %c0_i32, %c0_i32_0 : i32, i32
  }
  func.func @transform_10(%arg0: i32) -> (i32, i32) {
    %c0_i32 = arith.constant 0 : i32
    %c0_i32_0 = arith.constant 0 : i32
    %c0_i32_1 = arith.constant 0 : i32
    return %c0_i32, %c0_i32_0 : i32, i32
  }
  func.func @transform_11(%arg0: i32) -> (i32, i32) {
    %c0_i32 = arith.constant 0 : i32
    %c0_i32_0 = arith.constant 0 : i32
    %c0_i32_1 = arith.constant 0 : i32
    return %c0_i32, %c0_i32_0 : i32, i32
  }
  func.func @transform_12(%arg0: i32) -> (i32, i32) {
    %c0_i32 = arith.constant 0 : i32
    %c0_i32_0 = arith.constant 0 : i32
    %c0_i32_1 = arith.constant 0 : i32
    return %c0_i32, %c0_i32_0 : i32, i32
  }
  func.func @transform_13(%arg0: i32) -> (i32, i32) {
    %c0_i32 = arith.constant 0 : i32
    %c0_i32_0 = arith.constant 0 : i32
    %c0_i32_1 = arith.constant 0 : i32
    return %c0_i32, %c0_i32_0 : i32, i32
  }
  func.func @transform_14(%arg0: i32) -> (i32, i32) {
    %c0_i32 = arith.constant 0 : i32
    %c0_i32_0 = arith.constant 0 : i32
    %c0_i32_1 = arith.constant 0 : i32
    return %c0_i32, %c0_i32_0 : i32, i32
  }
  func.func @transform_15(%arg0: i32) -> (i32, i32) {
    %c0_i32 = arith.constant 0 : i32
    %c0_i32_0 = arith.constant 0 : i32
    %c0_i32_1 = arith.constant 0 : i32
    return %c0_i32, %c0_i32_0 : i32, i32
  }
  func.func @transform_16(%arg0: i32) -> (i32, i32) {
    %c0_i32 = arith.constant 0 : i32
    %c0_i32_0 = arith.constant 0 : i32
    return %arg0, %c0_i32 : i32, i32
  }
}

module attributes {stable_mosaic.version = 11 : i64} {
  func.func @kernel(%arg0: i32, %arg1: memref<64x128xbf16, #tpu.memory_space<vmem>>, %arg2: memref<64x32xf32, #tpu.memory_space<vmem>>, %arg3: memref<32x128xbf16, #tpu.memory_space<vmem>>, %arg4: memref<128x64xbf16, #tpu.memory_space<vmem>>, %arg5: memref<32x32xbf16, #tpu.memory_space<vmem>>, %arg6: memref<1x32xf32, #tpu.memory_space<vmem>>, %arg7: memref<32x32xbf16, #tpu.memory_space<vmem>>, %arg8: memref<1x32xf32, #tpu.memory_space<vmem>>, %arg9: memref<1x32xf32, #tpu.memory_space<vmem>>, %arg10: memref<1x32xf32, #tpu.memory_space<vmem>>, %arg11: memref<32x128xbf16, #tpu.memory_space<vmem>>, %arg12: memref<1x128xf32, #tpu.memory_space<vmem>>, %arg13: memref<128x32xbf16, #tpu.memory_space<vmem>>, %arg14: memref<1x32xf32, #tpu.memory_space<vmem>>, %arg15: memref<1x32xf32, #tpu.memory_space<vmem>>, %arg16: memref<1x32xf32, #tpu.memory_space<vmem>>, %arg17: memref<64x32xf32, #tpu.memory_space<vmem>>) attributes {dimension_semantics = [#tpu.dimension_semantics<parallel>], iteration_bounds = array<i64: 2>, scalar_prefetch = 0 : i64, scratch_operands = 0 : i64, tpu.core_type = #tpu.core_type<tc>, window_params = [{transform_indices = @transform_0, window_bounds = array<i64: 64, 128>}, {transform_indices = @transform_1, window_bounds = array<i64: 64, 32>}, {pipeline_mode = #tpu.pipeline_mode<synchronous>, transform_indices = @transform_2, window_bounds = array<i64: 32, 128>}, {pipeline_mode = #tpu.pipeline_mode<synchronous>, transform_indices = @transform_3, window_bounds = array<i64: 128, 64>}, {pipeline_mode = #tpu.pipeline_mode<synchronous>, transform_indices = @transform_4, window_bounds = array<i64: 32, 32>}, {pipeline_mode = #tpu.pipeline_mode<synchronous>, transform_indices = @transform_5, window_bounds = array<i64: 1, 32>}, {pipeline_mode = #tpu.pipeline_mode<synchronous>, transform_indices = @transform_6, window_bounds = array<i64: 32, 32>}, {pipeline_mode = #tpu.pipeline_mode<synchronous>, transform_indices = @transform_7, window_bounds = array<i64: 1, 32>}, {pipeline_mode = #tpu.pipeline_mode<synchronous>, transform_indices = @transform_8, window_bounds = array<i64: 1, 32>}, {pipeline_mode = #tpu.pipeline_mode<synchronous>, transform_indices = @transform_9, window_bounds = array<i64: 1, 32>}, {pipeline_mode = #tpu.pipeline_mode<synchronous>, transform_indices = @transform_10, window_bounds = array<i64: 32, 128>}, {pipeline_mode = #tpu.pipeline_mode<synchronous>, transform_indices = @transform_11, window_bounds = array<i64: 1, 128>}, {pipeline_mode = #tpu.pipeline_mode<synchronous>, transform_indices = @transform_12, window_bounds = array<i64: 128, 32>}, {pipeline_mode = #tpu.pipeline_mode<synchronous>, transform_indices = @transform_13, window_bounds = array<i64: 1, 32>}, {pipeline_mode = #tpu.pipeline_mode<synchronous>, transform_indices = @transform_14, window_bounds = array<i64: 1, 32>}, {pipeline_mode = #tpu.pipeline_mode<synchronous>, transform_indices = @transform_15, window_bounds = array<i64: 1, 32>}, {transform_indices = @transform_16, window_bounds = array<i64: 64, 32>}]} {
    %c0 = arith.constant 0 : index
    %c0_0 = arith.constant 0 : index
    %0 = vector.load %arg2[%c0, %c0_0] : memref<64x32xf32, #tpu.memory_space<vmem>>, vector<64x32xf32>
    %c0_1 = arith.constant 0 : index
    %c0_2 = arith.constant 0 : index
    %1 = vector.load %arg1[%c0_1, %c0_2] : memref<64x128xbf16, #tpu.memory_space<vmem>>, vector<64x128xbf16>
    %2 = arith.extf %1 : vector<64x128xbf16> to vector<64x128xf32>
    %3 = arith.truncf %0 : vector<64x32xf32> to vector<64x32xbf16>
    %c0_3 = arith.constant 0 : index
    %c0_4 = arith.constant 0 : index
    %4 = vector.load %arg5[%c0_3, %c0_4] : memref<32x32xbf16, #tpu.memory_space<vmem>>, vector<32x32xbf16>
    %cst = arith.constant dense<0.000000e+00> : vector<64x32xf32>
    %5 = tpu.matmul %3, %4, %cst {dimension_numbers = #tpu.dot_dimension_numbers<[1], [0], [0], [1], [0, 0, 1, 1], [], []>} : vector<64x32xbf16>, vector<32x32xbf16>, vector<64x32xf32> -> vector<64x32xf32>
    %c0_5 = arith.constant 0 : index
    %c0_6 = arith.constant 0 : index
    %6 = vector.load %arg6[%c0_5, %c0_6] : memref<1x32xf32, #tpu.memory_space<vmem>>, vector<1x32xf32>
    %7 = vector.broadcast %6 : vector<1x32xf32> to vector<64x32xf32>
    %8 = arith.addf %5, %7 : vector<64x32xf32>
    %c0_7 = arith.constant 0 : index
    %c0_8 = arith.constant 0 : index
    %9 = vector.load %arg3[%c0_7, %c0_8] : memref<32x128xbf16, #tpu.memory_space<vmem>>, vector<32x128xbf16>
    %c0_9 = arith.constant 0 : index
    %c0_10 = arith.constant 0 : index
    %10 = vector.load %arg4[%c0_9, %c0_10] : memref<128x64xbf16, #tpu.memory_space<vmem>>, vector<128x64xbf16>
    %c0_11 = arith.constant 0 : index
    %c0_12 = arith.constant 0 : index
    %11 = vector.load %arg7[%c0_11, %c0_12] : memref<32x32xbf16, #tpu.memory_space<vmem>>, vector<32x32xbf16>
    %c0_13 = arith.constant 0 : index
    %c0_14 = arith.constant 0 : index
    %12 = vector.load %arg8[%c0_13, %c0_14] : memref<1x32xf32, #tpu.memory_space<vmem>>, vector<1x32xf32>
    %13 = vector.extract_strided_slice %8 {offsets = [0, 0], sizes = [64, 8], strides = [1, 1]} : vector<64x32xf32> to vector<64x8xf32>
    %14 = arith.truncf %13 : vector<64x8xf32> to vector<64x8xbf16>
    %15 = vector.extract_strided_slice %9 {offsets = [0, 0], sizes = [8, 128], strides = [1, 1]} : vector<32x128xbf16> to vector<8x128xbf16>
    %cst_15 = arith.constant dense<0.000000e+00> : vector<64x128xf32>
    %16 = tpu.matmul %14, %15, %cst_15 {dimension_numbers = #tpu.dot_dimension_numbers<[1], [0], [0], [1], [0, 0, 1, 1], [], []>} : vector<64x8xbf16>, vector<8x128xbf16>, vector<64x128xf32> -> vector<64x128xf32>
    %17 = arith.addf %16, %2 : vector<64x128xf32>
    %cst_16 = arith.constant dense<0xFF800000> : vector<64xf32>
    %18 = vector.multi_reduction <maximumf>, %17, %cst_16 [1] : vector<64x128xf32> to vector<64xf32>
    %19 = vector.shape_cast %18 : vector<64xf32> to vector<64x1xf32>
    %cst_17 = arith.constant -1.000000e+29 : f32
    %20 = vector.broadcast %cst_17 : f32 to vector<64x1xf32>
    %21 = arith.maximumf %19, %20 : vector<64x1xf32>
    %22 = vector.broadcast %21 : vector<64x1xf32> to vector<64x128xf32>
    %23 = arith.subf %17, %22 : vector<64x128xf32>
    %24 = arith.truncf %23 : vector<64x128xf32> to vector<64x128xbf16>
    %25 = math.exp %24 : vector<64x128xbf16>
    %26 = vector.extract_strided_slice %10 {offsets = [0, 0], sizes = [128, 16], strides = [1, 1]} : vector<128x64xbf16> to vector<128x16xbf16>
    %cst_18 = arith.constant dense<0.000000e+00> : vector<64x16xf32>
    %27 = tpu.matmul %25, %26, %cst_18 {dimension_numbers = #tpu.dot_dimension_numbers<[1], [0], [0], [1], [0, 0, 1, 1], [], []>} : vector<64x128xbf16>, vector<128x16xbf16>, vector<64x16xf32> -> vector<64x16xf32>
    %28 = vector.extract_strided_slice %27 {offsets = [0, 8], sizes = [64, 1], strides = [1, 1]} : vector<64x16xf32> to vector<64x1xf32>
    %cst_19 = arith.constant 1.000000e-16 : f32
    %29 = vector.broadcast %cst_19 : f32 to vector<64x1xf32>
    %30 = arith.addf %28, %29 : vector<64x1xf32>
    %31 = tpu.reciprocal %30 {approx = true} : vector<64x1xf32> -> vector<64x1xf32>
    %32 = vector.extract_strided_slice %27 {offsets = [0, 0], sizes = [64, 8], strides = [1, 1]} : vector<64x16xf32> to vector<64x8xf32>
    %33 = vector.broadcast %31 : vector<64x1xf32> to vector<64x8xf32>
    %34 = arith.mulf %32, %33 : vector<64x8xf32>
    %35 = arith.truncf %34 : vector<64x8xf32> to vector<64x8xbf16>
    %36 = vector.extract_strided_slice %11 {offsets = [0, 0], sizes = [8, 32], strides = [1, 1]} : vector<32x32xbf16> to vector<8x32xbf16>
    %cst_20 = arith.constant dense<0.000000e+00> : vector<64x32xf32>
    %37 = tpu.matmul %35, %36, %cst_20 {dimension_numbers = #tpu.dot_dimension_numbers<[1], [0], [0], [1], [0, 0, 1, 1], [], []>} : vector<64x8xbf16>, vector<8x32xbf16>, vector<64x32xf32> -> vector<64x32xf32>
    %38 = vector.broadcast %12 : vector<1x32xf32> to vector<64x32xf32>
    %39 = arith.addf %38, %37 : vector<64x32xf32>
    %40 = vector.extract_strided_slice %8 {offsets = [0, 8], sizes = [64, 8], strides = [1, 1]} : vector<64x32xf32> to vector<64x8xf32>
    %41 = arith.truncf %40 : vector<64x8xf32> to vector<64x8xbf16>
    %42 = vector.extract_strided_slice %9 {offsets = [8, 0], sizes = [8, 128], strides = [1, 1]} : vector<32x128xbf16> to vector<8x128xbf16>
    %cst_21 = arith.constant dense<0.000000e+00> : vector<64x128xf32>
    %43 = tpu.matmul %41, %42, %cst_21 {dimension_numbers = #tpu.dot_dimension_numbers<[1], [0], [0], [1], [0, 0, 1, 1], [], []>} : vector<64x8xbf16>, vector<8x128xbf16>, vector<64x128xf32> -> vector<64x128xf32>
    %44 = arith.addf %43, %2 : vector<64x128xf32>
    %cst_22 = arith.constant dense<0xFF800000> : vector<64xf32>
    %45 = vector.multi_reduction <maximumf>, %44, %cst_22 [1] : vector<64x128xf32> to vector<64xf32>
    %46 = vector.shape_cast %45 : vector<64xf32> to vector<64x1xf32>
    %cst_23 = arith.constant -1.000000e+29 : f32
    %47 = vector.broadcast %cst_23 : f32 to vector<64x1xf32>
    %48 = arith.maximumf %46, %47 : vector<64x1xf32>
    %49 = vector.broadcast %48 : vector<64x1xf32> to vector<64x128xf32>
    %50 = arith.subf %44, %49 : vector<64x128xf32>
    %51 = arith.truncf %50 : vector<64x128xf32> to vector<64x128xbf16>
    %52 = math.exp %51 : vector<64x128xbf16>
    %53 = vector.extract_strided_slice %10 {offsets = [0, 16], sizes = [128, 16], strides = [1, 1]} : vector<128x64xbf16> to vector<128x16xbf16>
    %cst_24 = arith.constant dense<0.000000e+00> : vector<64x16xf32>
    %54 = tpu.matmul %52, %53, %cst_24 {dimension_numbers = #tpu.dot_dimension_numbers<[1], [0], [0], [1], [0, 0, 1, 1], [], []>} : vector<64x128xbf16>, vector<128x16xbf16>, vector<64x16xf32> -> vector<64x16xf32>
    %55 = vector.extract_strided_slice %54 {offsets = [0, 8], sizes = [64, 1], strides = [1, 1]} : vector<64x16xf32> to vector<64x1xf32>
    %cst_25 = arith.constant 1.000000e-16 : f32
    %56 = vector.broadcast %cst_25 : f32 to vector<64x1xf32>
    %57 = arith.addf %55, %56 : vector<64x1xf32>
    %58 = tpu.reciprocal %57 {approx = true} : vector<64x1xf32> -> vector<64x1xf32>
    %59 = vector.extract_strided_slice %54 {offsets = [0, 0], sizes = [64, 8], strides = [1, 1]} : vector<64x16xf32> to vector<64x8xf32>
    %60 = vector.broadcast %58 : vector<64x1xf32> to vector<64x8xf32>
    %61 = arith.mulf %59, %60 : vector<64x8xf32>
    %62 = arith.truncf %61 : vector<64x8xf32> to vector<64x8xbf16>
    %63 = vector.extract_strided_slice %11 {offsets = [8, 0], sizes = [8, 32], strides = [1, 1]} : vector<32x32xbf16> to vector<8x32xbf16>
    %cst_26 = arith.constant dense<0.000000e+00> : vector<64x32xf32>
    %64 = tpu.matmul %62, %63, %cst_26 {dimension_numbers = #tpu.dot_dimension_numbers<[1], [0], [0], [1], [0, 0, 1, 1], [], []>} : vector<64x8xbf16>, vector<8x32xbf16>, vector<64x32xf32> -> vector<64x32xf32>
    %65 = arith.addf %39, %64 : vector<64x32xf32>
    %66 = vector.extract_strided_slice %8 {offsets = [0, 16], sizes = [64, 8], strides = [1, 1]} : vector<64x32xf32> to vector<64x8xf32>
    %67 = arith.truncf %66 : vector<64x8xf32> to vector<64x8xbf16>
    %68 = vector.extract_strided_slice %9 {offsets = [16, 0], sizes = [8, 128], strides = [1, 1]} : vector<32x128xbf16> to vector<8x128xbf16>
    %cst_27 = arith.constant dense<0.000000e+00> : vector<64x128xf32>
    %69 = tpu.matmul %67, %68, %cst_27 {dimension_numbers = #tpu.dot_dimension_numbers<[1], [0], [0], [1], [0, 0, 1, 1], [], []>} : vector<64x8xbf16>, vector<8x128xbf16>, vector<64x128xf32> -> vector<64x128xf32>
    %70 = arith.addf %69, %2 : vector<64x128xf32>
    %cst_28 = arith.constant dense<0xFF800000> : vector<64xf32>
    %71 = vector.multi_reduction <maximumf>, %70, %cst_28 [1] : vector<64x128xf32> to vector<64xf32>
    %72 = vector.shape_cast %71 : vector<64xf32> to vector<64x1xf32>
    %cst_29 = arith.constant -1.000000e+29 : f32
    %73 = vector.broadcast %cst_29 : f32 to vector<64x1xf32>
    %74 = arith.maximumf %72, %73 : vector<64x1xf32>
    %75 = vector.broadcast %74 : vector<64x1xf32> to vector<64x128xf32>
    %76 = arith.subf %70, %75 : vector<64x128xf32>
    %77 = arith.truncf %76 : vector<64x128xf32> to vector<64x128xbf16>
    %78 = math.exp %77 : vector<64x128xbf16>
    %79 = vector.extract_strided_slice %10 {offsets = [0, 32], sizes = [128, 16], strides = [1, 1]} : vector<128x64xbf16> to vector<128x16xbf16>
    %cst_30 = arith.constant dense<0.000000e+00> : vector<64x16xf32>
    %80 = tpu.matmul %78, %79, %cst_30 {dimension_numbers = #tpu.dot_dimension_numbers<[1], [0], [0], [1], [0, 0, 1, 1], [], []>} : vector<64x128xbf16>, vector<128x16xbf16>, vector<64x16xf32> -> vector<64x16xf32>
    %81 = vector.extract_strided_slice %80 {offsets = [0, 8], sizes = [64, 1], strides = [1, 1]} : vector<64x16xf32> to vector<64x1xf32>
    %cst_31 = arith.constant 1.000000e-16 : f32
    %82 = vector.broadcast %cst_31 : f32 to vector<64x1xf32>
    %83 = arith.addf %81, %82 : vector<64x1xf32>
    %84 = tpu.reciprocal %83 {approx = true} : vector<64x1xf32> -> vector<64x1xf32>
    %85 = vector.extract_strided_slice %80 {offsets = [0, 0], sizes = [64, 8], strides = [1, 1]} : vector<64x16xf32> to vector<64x8xf32>
    %86 = vector.broadcast %84 : vector<64x1xf32> to vector<64x8xf32>
    %87 = arith.mulf %85, %86 : vector<64x8xf32>
    %88 = arith.truncf %87 : vector<64x8xf32> to vector<64x8xbf16>
    %89 = vector.extract_strided_slice %11 {offsets = [16, 0], sizes = [8, 32], strides = [1, 1]} : vector<32x32xbf16> to vector<8x32xbf16>
    %cst_32 = arith.constant dense<0.000000e+00> : vector<64x32xf32>
    %90 = tpu.matmul %88, %89, %cst_32 {dimension_numbers = #tpu.dot_dimension_numbers<[1], [0], [0], [1], [0, 0, 1, 1], [], []>} : vector<64x8xbf16>, vector<8x32xbf16>, vector<64x32xf32> -> vector<64x32xf32>
    %91 = arith.addf %65, %90 : vector<64x32xf32>
    %92 = vector.extract_strided_slice %8 {offsets = [0, 24], sizes = [64, 8], strides = [1, 1]} : vector<64x32xf32> to vector<64x8xf32>
    %93 = arith.truncf %92 : vector<64x8xf32> to vector<64x8xbf16>
    %94 = vector.extract_strided_slice %9 {offsets = [24, 0], sizes = [8, 128], strides = [1, 1]} : vector<32x128xbf16> to vector<8x128xbf16>
    %cst_33 = arith.constant dense<0.000000e+00> : vector<64x128xf32>
    %95 = tpu.matmul %93, %94, %cst_33 {dimension_numbers = #tpu.dot_dimension_numbers<[1], [0], [0], [1], [0, 0, 1, 1], [], []>} : vector<64x8xbf16>, vector<8x128xbf16>, vector<64x128xf32> -> vector<64x128xf32>
    %96 = arith.addf %95, %2 : vector<64x128xf32>
    %cst_34 = arith.constant dense<0xFF800000> : vector<64xf32>
    %97 = vector.multi_reduction <maximumf>, %96, %cst_34 [1] : vector<64x128xf32> to vector<64xf32>
    %98 = vector.shape_cast %97 : vector<64xf32> to vector<64x1xf32>
    %cst_35 = arith.constant -1.000000e+29 : f32
    %99 = vector.broadcast %cst_35 : f32 to vector<64x1xf32>
    %100 = arith.maximumf %98, %99 : vector<64x1xf32>
    %101 = vector.broadcast %100 : vector<64x1xf32> to vector<64x128xf32>
    %102 = arith.subf %96, %101 : vector<64x128xf32>
    %103 = arith.truncf %102 : vector<64x128xf32> to vector<64x128xbf16>
    %104 = math.exp %103 : vector<64x128xbf16>
    %105 = vector.extract_strided_slice %10 {offsets = [0, 48], sizes = [128, 16], strides = [1, 1]} : vector<128x64xbf16> to vector<128x16xbf16>
    %cst_36 = arith.constant dense<0.000000e+00> : vector<64x16xf32>
    %106 = tpu.matmul %104, %105, %cst_36 {dimension_numbers = #tpu.dot_dimension_numbers<[1], [0], [0], [1], [0, 0, 1, 1], [], []>} : vector<64x128xbf16>, vector<128x16xbf16>, vector<64x16xf32> -> vector<64x16xf32>
    %107 = vector.extract_strided_slice %106 {offsets = [0, 8], sizes = [64, 1], strides = [1, 1]} : vector<64x16xf32> to vector<64x1xf32>
    %cst_37 = arith.constant 1.000000e-16 : f32
    %108 = vector.broadcast %cst_37 : f32 to vector<64x1xf32>
    %109 = arith.addf %107, %108 : vector<64x1xf32>
    %110 = tpu.reciprocal %109 {approx = true} : vector<64x1xf32> -> vector<64x1xf32>
    %111 = vector.extract_strided_slice %106 {offsets = [0, 0], sizes = [64, 8], strides = [1, 1]} : vector<64x16xf32> to vector<64x8xf32>
    %112 = vector.broadcast %110 : vector<64x1xf32> to vector<64x8xf32>
    %113 = arith.mulf %111, %112 : vector<64x8xf32>
    %114 = arith.truncf %113 : vector<64x8xf32> to vector<64x8xbf16>
    %115 = vector.extract_strided_slice %11 {offsets = [24, 0], sizes = [8, 32], strides = [1, 1]} : vector<32x32xbf16> to vector<8x32xbf16>
    %cst_38 = arith.constant dense<0.000000e+00> : vector<64x32xf32>
    %116 = tpu.matmul %114, %115, %cst_38 {dimension_numbers = #tpu.dot_dimension_numbers<[1], [0], [0], [1], [0, 0, 1, 1], [], []>} : vector<64x8xbf16>, vector<8x32xbf16>, vector<64x32xf32> -> vector<64x32xf32>
    %117 = arith.addf %91, %116 : vector<64x32xf32>
    %118 = arith.addf %0, %117 : vector<64x32xf32>
    %cst_39 = arith.constant dense<0.000000e+00> : vector<64xf32>
    %119 = vector.multi_reduction <add>, %118, %cst_39 [1] : vector<64x32xf32> to vector<64xf32>
    %120 = vector.shape_cast %119 : vector<64xf32> to vector<64x1xf32>
    %cst_40 = arith.constant 3.200000e+01 : f32
    %121 = vector.broadcast %cst_40 : f32 to vector<64x1xf32>
    %122 = arith.divf %120, %121 : vector<64x1xf32>
    %123 = vector.broadcast %122 : vector<64x1xf32> to vector<64x32xf32>
    %124 = arith.subf %118, %123 : vector<64x32xf32>
    %125 = arith.mulf %124, %124 : vector<64x32xf32>
    %cst_41 = arith.constant dense<0.000000e+00> : vector<64xf32>
    %126 = vector.multi_reduction <add>, %125, %cst_41 [1] : vector<64x32xf32> to vector<64xf32>
    %127 = vector.shape_cast %126 : vector<64xf32> to vector<64x1xf32>
    %cst_42 = arith.constant 3.200000e+01 : f32
    %128 = vector.broadcast %cst_42 : f32 to vector<64x1xf32>
    %129 = arith.divf %127, %128 : vector<64x1xf32>
    %130 = vector.broadcast %122 : vector<64x1xf32> to vector<64x32xf32>
    %131 = arith.subf %118, %130 : vector<64x32xf32>
    %cst_43 = arith.constant 9.99999974E-6 : f32
    %132 = vector.broadcast %cst_43 : f32 to vector<64x1xf32>
    %133 = arith.addf %129, %132 : vector<64x1xf32>
    %134 = math.rsqrt %133 : vector<64x1xf32>
    %135 = vector.broadcast %134 : vector<64x1xf32> to vector<64x32xf32>
    %136 = arith.mulf %131, %135 : vector<64x32xf32>
    %c0_44 = arith.constant 0 : index
    %c0_45 = arith.constant 0 : index
    %137 = vector.load %arg9[%c0_44, %c0_45] : memref<1x32xf32, #tpu.memory_space<vmem>>, vector<1x32xf32>
    %138 = vector.broadcast %137 : vector<1x32xf32> to vector<64x32xf32>
    %139 = arith.mulf %136, %138 : vector<64x32xf32>
    %c0_46 = arith.constant 0 : index
    %c0_47 = arith.constant 0 : index
    %140 = vector.load %arg10[%c0_46, %c0_47] : memref<1x32xf32, #tpu.memory_space<vmem>>, vector<1x32xf32>
    %141 = vector.broadcast %140 : vector<1x32xf32> to vector<64x32xf32>
    %142 = arith.addf %139, %141 : vector<64x32xf32>
    %143 = arith.truncf %142 : vector<64x32xf32> to vector<64x32xbf16>
    %c0_48 = arith.constant 0 : index
    %c0_49 = arith.constant 0 : index
    %144 = vector.load %arg11[%c0_48, %c0_49] : memref<32x128xbf16, #tpu.memory_space<vmem>>, vector<32x128xbf16>
    %cst_50 = arith.constant dense<0.000000e+00> : vector<64x128xf32>
    %145 = tpu.matmul %143, %144, %cst_50 {dimension_numbers = #tpu.dot_dimension_numbers<[1], [0], [0], [1], [0, 0, 1, 1], [], []>} : vector<64x32xbf16>, vector<32x128xbf16>, vector<64x128xf32> -> vector<64x128xf32>
    %c0_51 = arith.constant 0 : index
    %c0_52 = arith.constant 0 : index
    %146 = vector.load %arg12[%c0_51, %c0_52] : memref<1x128xf32, #tpu.memory_space<vmem>>, vector<1x128xf32>
    %147 = vector.broadcast %146 : vector<1x128xf32> to vector<64x128xf32>
    %148 = arith.addf %145, %147 : vector<64x128xf32>
    %cst_53 = arith.constant 0.000000e+00 : f32
    %149 = vector.broadcast %cst_53 : f32 to vector<64x128xf32>
    %150 = arith.maximumf %148, %149 : vector<64x128xf32>
    %151 = arith.truncf %150 : vector<64x128xf32> to vector<64x128xbf16>
    %c0_54 = arith.constant 0 : index
    %c0_55 = arith.constant 0 : index
    %152 = vector.load %arg13[%c0_54, %c0_55] : memref<128x32xbf16, #tpu.memory_space<vmem>>, vector<128x32xbf16>
    %cst_56 = arith.constant dense<0.000000e+00> : vector<64x32xf32>
    %153 = tpu.matmul %151, %152, %cst_56 {dimension_numbers = #tpu.dot_dimension_numbers<[1], [0], [0], [1], [0, 0, 1, 1], [], []>} : vector<64x128xbf16>, vector<128x32xbf16>, vector<64x32xf32> -> vector<64x32xf32>
    %c0_57 = arith.constant 0 : index
    %c0_58 = arith.constant 0 : index
    %154 = vector.load %arg14[%c0_57, %c0_58] : memref<1x32xf32, #tpu.memory_space<vmem>>, vector<1x32xf32>
    %155 = vector.broadcast %154 : vector<1x32xf32> to vector<64x32xf32>
    %156 = arith.addf %153, %155 : vector<64x32xf32>
    %157 = arith.addf %142, %156 : vector<64x32xf32>
    %cst_59 = arith.constant dense<0.000000e+00> : vector<64xf32>
    %158 = vector.multi_reduction <add>, %157, %cst_59 [1] : vector<64x32xf32> to vector<64xf32>
    %159 = vector.shape_cast %158 : vector<64xf32> to vector<64x1xf32>
    %cst_60 = arith.constant 3.200000e+01 : f32
    %160 = vector.broadcast %cst_60 : f32 to vector<64x1xf32>
    %161 = arith.divf %159, %160 : vector<64x1xf32>
    %162 = vector.broadcast %161 : vector<64x1xf32> to vector<64x32xf32>
    %163 = arith.subf %157, %162 : vector<64x32xf32>
    %164 = arith.mulf %163, %163 : vector<64x32xf32>
    %cst_61 = arith.constant dense<0.000000e+00> : vector<64xf32>
    %165 = vector.multi_reduction <add>, %164, %cst_61 [1] : vector<64x32xf32> to vector<64xf32>
    %166 = vector.shape_cast %165 : vector<64xf32> to vector<64x1xf32>
    %cst_62 = arith.constant 3.200000e+01 : f32
    %167 = vector.broadcast %cst_62 : f32 to vector<64x1xf32>
    %168 = arith.divf %166, %167 : vector<64x1xf32>
    %169 = vector.broadcast %161 : vector<64x1xf32> to vector<64x32xf32>
    %170 = arith.subf %157, %169 : vector<64x32xf32>
    %cst_63 = arith.constant 9.99999974E-6 : f32
    %171 = vector.broadcast %cst_63 : f32 to vector<64x1xf32>
    %172 = arith.addf %168, %171 : vector<64x1xf32>
    %173 = math.rsqrt %172 : vector<64x1xf32>
    %174 = vector.broadcast %173 : vector<64x1xf32> to vector<64x32xf32>
    %175 = arith.mulf %170, %174 : vector<64x32xf32>
    %c0_64 = arith.constant 0 : index
    %c0_65 = arith.constant 0 : index
    %176 = vector.load %arg15[%c0_64, %c0_65] : memref<1x32xf32, #tpu.memory_space<vmem>>, vector<1x32xf32>
    %177 = vector.broadcast %176 : vector<1x32xf32> to vector<64x32xf32>
    %178 = arith.mulf %175, %177 : vector<64x32xf32>
    %c0_66 = arith.constant 0 : index
    %c0_67 = arith.constant 0 : index
    %179 = vector.load %arg16[%c0_66, %c0_67] : memref<1x32xf32, #tpu.memory_space<vmem>>, vector<1x32xf32>
    %180 = vector.broadcast %179 : vector<1x32xf32> to vector<64x32xf32>
    %181 = arith.addf %178, %180 : vector<64x32xf32>
    %c0_68 = arith.constant 0 : index
    %c0_69 = arith.constant 0 : index
    %182 = vector.load %arg17[%c0_68, %c0_69] : memref<64x32xf32, #tpu.memory_space<vmem>>, vector<64x32xf32>
    tpu.vector_store %arg17[%c0_68, %c0_69], %181 {strides = array<i32>} : memref<64x32xf32, #tpu.memory_space<vmem>>, vector<64x32xf32>,
    return
  }
  func.func @transform_0(%arg0: i32) -> (i32, i32) {
    %c0_i32 = arith.constant 0 : i32
    %c0_i32_0 = arith.constant 0 : i32
    return %arg0, %c0_i32 : i32, i32
  }
  func.func @transform_1(%arg0: i32) -> (i32, i32) {
    %c0_i32 = arith.constant 0 : i32
    %c0_i32_0 = arith.constant 0 : i32
    return %arg0, %c0_i32 : i32, i32
  }
  func.func @transform_2(%arg0: i32) -> (i32, i32) {
    %c0_i32 = arith.constant 0 : i32
    %c0_i32_0 = arith.constant 0 : i32
    %c0_i32_1 = arith.constant 0 : i32
    return %c0_i32, %c0_i32_0 : i32, i32
  }
  func.func @transform_3(%arg0: i32) -> (i32, i32) {
    %c0_i32 = arith.constant 0 : i32
    %c0_i32_0 = arith.constant 0 : i32
    %c0_i32_1 = arith.constant 0 : i32
    return %c0_i32, %c0_i32_0 : i32, i32
  }
  func.func @transform_4(%arg0: i32) -> (i32, i32) {
    %c0_i32 = arith.constant 0 : i32
    %c0_i32_0 = arith.constant 0 : i32
    %c0_i32_1 = arith.constant 0 : i32
    return %c0_i32, %c0_i32_0 : i32, i32
  }
  func.func @transform_5(%arg0: i32) -> (i32, i32) {
    %c0_i32 = arith.constant 0 : i32
    %c0_i32_0 = arith.constant 0 : i32
    %c0_i32_1 = arith.constant 0 : i32
    return %c0_i32, %c0_i32_0 : i32, i32
  }
  func.func @transform_6(%arg0: i32) -> (i32, i32) {
    %c0_i32 = arith.constant 0 : i32
    %c0_i32_0 = arith.constant 0 : i32
    %c0_i32_1 = arith.constant 0 : i32
    return %c0_i32, %c0_i32_0 : i32, i32
  }
  func.func @transform_7(%arg0: i32) -> (i32, i32) {
    %c0_i32 = arith.constant 0 : i32
    %c0_i32_0 = arith.constant 0 : i32
    %c0_i32_1 = arith.constant 0 : i32
    return %c0_i32, %c0_i32_0 : i32, i32
  }
  func.func @transform_8(%arg0: i32) -> (i32, i32) {
    %c0_i32 = arith.constant 0 : i32
    %c0_i32_0 = arith.constant 0 : i32
    %c0_i32_1 = arith.constant 0 : i32
    return %c0_i32, %c0_i32_0 : i32, i32
  }
  func.func @transform_9(%arg0: i32) -> (i32, i32) {
    %c0_i32 = arith.constant 0 : i32
    %c0_i32_0 = arith.constant 0 : i32
    %c0_i32_1 = arith.constant 0 : i32
    return %c0_i32, %c0_i32_0 : i32, i32
  }
  func.func @transform_10(%arg0: i32) -> (i32, i32) {
    %c0_i32 = arith.constant 0 : i32
    %c0_i32_0 = arith.constant 0 : i32
    %c0_i32_1 = arith.constant 0 : i32
    return %c0_i32, %c0_i32_0 : i32, i32
  }
  func.func @transform_11(%arg0: i32) -> (i32, i32) {
    %c0_i32 = arith.constant 0 : i32
    %c0_i32_0 = arith.constant 0 : i32
    %c0_i32_1 = arith.constant 0 : i32
    return %c0_i32, %c0_i32_0 : i32, i32
  }
  func.func @transform_12(%arg0: i32) -> (i32, i32) {
    %c0_i32 = arith.constant 0 : i32
    %c0_i32_0 = arith.constant 0 : i32
    %c0_i32_1 = arith.constant 0 : i32
    return %c0_i32, %c0_i32_0 : i32, i32
  }
  func.func @transform_13(%arg0: i32) -> (i32, i32) {
    %c0_i32 = arith.constant 0 : i32
    %c0_i32_0 = arith.constant 0 : i32
    %c0_i32_1 = arith.constant 0 : i32
    return %c0_i32, %c0_i32_0 : i32, i32
  }
  func.func @transform_14(%arg0: i32) -> (i32, i32) {
    %c0_i32 = arith.constant 0 : i32
    %c0_i32_0 = arith.constant 0 : i32
    %c0_i32_1 = arith.constant 0 : i32
    return %c0_i32, %c0_i32_0 : i32, i32
  }
  func.func @transform_15(%arg0: i32) -> (i32, i32) {
    %c0_i32 = arith.constant 0 : i32
    %c0_i32_0 = arith.constant 0 : i32
    %c0_i32_1 = arith.constant 0 : i32
    return %c0_i32, %c0_i32_0 : i32, i32
  }
  func.func @transform_16(%arg0: i32) -> (i32, i32) {
    %c0_i32 = arith.constant 0 : i32
    %c0_i32_0 = arith.constant 0 : i32
    return %arg0, %c0_i32 : i32, i32
  }
}

</mosaic_0001>

<llo_original>
// kernel: tpu_custom_call.1
$region0: #{tpu_custom_call.1}
  #allocation0 [shape = 'u32[]', space=smem, size = 0x4, offset = 0x4, fixed_abs, tag = 'smem constant byte address 0x4 - core index']
  #allocation1 [shape = 'u32[144,128]{1,0:T(1,128)}', space=vmem, size = 0x12000, scoped, tag = 'internal scratch']
  %s0 = inlined_call_operand.vmem [shape: bf16[128,128], index: 0, kind: input, shape index: {}]
  %s1 = inlined_call_operand.vmem [shape: f32[128,32], index: 1, kind: input, shape index: {}]
  %s2 = inlined_call_operand.vmem [shape: bf16[32,128], index: 2, kind: input, shape index: {}]
  %s3 = inlined_call_operand.vmem [shape: bf16[128,64], index: 3, kind: input, shape index: {}]
  %s4 = inlined_call_operand.vmem [shape: bf16[32,32], index: 4, kind: input, shape index: {}]
  %s5 = inlined_call_operand.vmem [shape: f32[1,32], index: 5, kind: input, shape index: {}]
  %s6 = inlined_call_operand.vmem [shape: bf16[32,32], index: 6, kind: input, shape index: {}]
  %s7 = inlined_call_operand.vmem [shape: f32[1,32], index: 7, kind: input, shape index: {}]
  %s8 = inlined_call_operand.vmem [shape: f32[1,32], index: 8, kind: input, shape index: {}]
  %s9 = inlined_call_operand.vmem [shape: f32[1,32], index: 9, kind: input, shape index: {}]
  %s10 = inlined_call_operand.vmem [shape: bf16[32,128], index: 10, kind: input, shape index: {}]
  %s11 = inlined_call_operand.vmem [shape: f32[1,128], index: 11, kind: input, shape index: {}]
  %s12 = inlined_call_operand.vmem [shape: bf16[128,32], index: 12, kind: input, shape index: {}]
  %s13 = inlined_call_operand.vmem [shape: f32[1,32], index: 13, kind: input, shape index: {}]
  %s14 = inlined_call_operand.vmem [shape: f32[1,32], index: 14, kind: input, shape index: {}]
  %s15 = inlined_call_operand.vmem [shape: f32[1,32], index: 15, kind: input, shape index: {}]
  %s16 = inlined_call_operand.vmem [shape: f32[128,32], index: 16, kind: output, shape index: {}]
  %s17 = sld [smem:[#allocation0]]
  $region97: #{tpu_custom_call.1} parent=0
    _
  %s19 = ssub.s32 1, %s17
  %s20 = scalar_select 0, %s19, %s17
  loop: start=0, step=1, limit=4
  $region2: #{tpu_custom_call.1} parent=0 // loop_pre_header
    _
  $region3: #{tpu_custom_call.1} parent=0 // loop_header
    %s22 = sphi 0, %s26
    %p23 = scmp.ge.s32.totalorder %s22, 4
    %s32 = sphi 0, %s34
    %s35 = sphi 0, %s32
    %s36 = sphi 0, %s35
    %s52 = sphi 0, %s36
    %s58 = sphi 0, %s60
    %s61 = sphi 0, %s58
    %s62 = sphi 0, %s61
    %s78 = sphi 0, %s62
    %s82 = sphi 0, %s82
    %s84 = sphi 0, %s82
    %s85 = sphi 0, %s84
    %s99 = sphi 0, %s85
    %s103 = sphi 0, %s103
    %s105 = sphi 0, %s103
    %s106 = sphi 0, %s105
    %s120 = sphi 0, %s106
    %s124 = sphi 0, %s124
    %s126 = sphi 0, %s124
    %s127 = sphi 0, %s126
    %s141 = sphi 0, %s127
    %s145 = sphi 0, %s145
    %s147 = sphi 0, %s145
    %s148 = sphi 0, %s147
    %s162 = sphi 0, %s148
    %s166 = sphi 0, %s166
    %s168 = sphi 0, %s166
    %s169 = sphi 0, %s168
    %s183 = sphi 0, %s169
    %s187 = sphi 0, %s187
    %s189 = sphi 0, %s187
    %s190 = sphi 0, %s189
    %s204 = sphi 0, %s190
    %s208 = sphi 0, %s208
    %s210 = sphi 0, %s208
    %s211 = sphi 0, %s210
    %s225 = sphi 0, %s211
    %s229 = sphi 0, %s229
    %s231 = sphi 0, %s229
    %s232 = sphi 0, %s231
    %s246 = sphi 0, %s232
    %s250 = sphi 0, %s250
    %s252 = sphi 0, %s250
    %s253 = sphi 0, %s252
    %s267 = sphi 0, %s253
    %s271 = sphi 0, %s271
    %s273 = sphi 0, %s271
    %s274 = sphi 0, %s273
    %s288 = sphi 0, %s274
    %s292 = sphi 0, %s292
    %s294 = sphi 0, %s292
    %s295 = sphi 0, %s294
    %s309 = sphi 0, %s295
    %s313 = sphi 0, %s313
    %s315 = sphi 0, %s313
    %s316 = sphi 0, %s315
    %s330 = sphi 0, %s316
    %s334 = sphi 0, %s334
    %s336 = sphi 0, %s334
    %s337 = sphi 0, %s336
    %s351 = sphi 0, %s337
    %s355 = sphi 0, %s355
    %s357 = sphi 0, %s355
    %s358 = sphi 0, %s357
    %s372 = sphi 0, %s358
    %s378 = sphi 0, %s380
    %s381 = sphi 0, %s378
    %s382 = sphi 0, %s381
    %s398 = sphi 0, %s382
  $region4: #{tpu_custom_call.1} parent=0 // loop_header_branch
    %25 = sbr.rel (%p23) target = $region8
  $region5: #{tpu_custom_call.1} parent=0 // loop_body
    %s27 = ssub.s32 %s22, 1
    %s28 = ssub.s32 %s22, 2
    %s29 = sadd.s32 %s22, 1
    %s30 = ssub.s32 %s22, %s29
    %p31 = scmp.eq.s32.totalorder %s30, 0
    %s33 = sadd.s32 %s32, 1
    %s34 = scalar_select %p31, %s32, %s33
    %p37 = pneg %p31
    %p38 = scmp.eq.s32.totalorder %s22, 1
    %p39 = por %p37, %p38
    %p40 = scmp.ne.s32.totalorder %s32, %s35
    %p41 = scmp.eq.s32.totalorder %s22, 0
    %p42 = por %p40, %p41
    %p43 = scmp.ne.s32.totalorder %s32, %s35
    %p44 = scmp.eq.s32.totalorder %s27, 1
    %p45 = por %p43, %p44
    %p46 = scmp.ne.s32.totalorder %s35, %s36
    %p47 = scmp.eq.s32.totalorder %s27, 0
    %p48 = por %p46, %p47
    %p49 = scmp.ne.s32.totalorder %s35, %s36
    %p50 = scmp.eq.s32.totalorder %s28, 1
    %p51 = por %p49, %p50
    %p53 = scmp.ne.s32.totalorder %s36, %s52
    %p54 = scmp.eq.s32.totalorder %s28, 0
    %p55 = por %p53, %p54
    %s56 = ssub.s32 %s22, %s29
    %p57 = scmp.eq.s32.totalorder %s56, 0
    %s59 = sadd.s32 %s58, 1
    %s60 = scalar_select %p57, %s58, %s59
    %p63 = pneg %p57
    %p64 = scmp.eq.s32.totalorder %s22, 1
    %p65 = por %p63, %p64
    %p66 = scmp.ne.s32.totalorder %s58, %s61
    %p67 = scmp.eq.s32.totalorder %s22, 0
    %p68 = por %p66, %p67
    %p69 = scmp.ne.s32.totalorder %s58, %s61
    %p70 = scmp.eq.s32.totalorder %s27, 1
    %p71 = por %p69, %p70
    %p72 = scmp.ne.s32.totalorder %s61, %s62
    %p73 = scmp.eq.s32.totalorder %s27, 0
    %p74 = por %p72, %p73
    %p75 = scmp.ne.s32.totalorder %s61, %s62
    %p76 = scmp.eq.s32.totalorder %s28, 1
    %p77 = por %p75, %p76
    %p79 = scmp.ne.s32.totalorder %s62, %s78
    %p80 = scmp.eq.s32.totalorder %s28, 0
    %p81 = por %p79, %p80
    %s83 = sadd.s32 %s82, 1
    %p86 = scmp.eq.s32.totalorder %s22, 1
    %p87 = scmp.ne.s32.totalorder %s82, %s84
    %p88 = scmp.eq.s32.totalorder %s22, 0
    %p89 = por %p87, %p88
    %p90 = scmp.ne.s32.totalorder %s82, %s84
    %p91 = scmp.eq.s32.totalorder %s27, 1
    %p92 = por %p90, %p91
    %p93 = scmp.ne.s32.totalorder %s84, %s85
    %p94 = scmp.eq.s32.totalorder %s27, 0
    %p95 = por %p93, %p94
    %p96 = scmp.ne.s32.totalorder %s84, %s85
    %p97 = scmp.eq.s32.totalorder %s28, 1
    %p98 = por %p96, %p97
    %p100 = scmp.ne.s32.totalorder %s85, %s99
    %p101 = scmp.eq.s32.totalorder %s28, 0
    %p102 = por %p100, %p101
    %s104 = sadd.s32 %s103, 1
    %p107 = scmp.eq.s32.totalorder %s22, 1
    %p108 = scmp.ne.s32.totalorder %s103, %s105
    %p109 = scmp.eq.s32.totalorder %s22, 0
    %p110 = por %p108, %p109
    %p111 = scmp.ne.s32.totalorder %s103, %s105
    %p112 = scmp.eq.s32.totalorder %s27, 1
    %p113 = por %p111, %p112
    %p114 = scmp.ne.s32.totalorder %s105, %s106
    %p115 = scmp.eq.s32.totalorder %s27, 0
    %p116 = por %p114, %p115
    %p117 = scmp.ne.s32.totalorder %s105, %s106
    %p118 = scmp.eq.s32.totalorder %s28, 1
    %p119 = por %p117, %p118
    %p121 = scmp.ne.s32.totalorder %s106, %s120
    %p122 = scmp.eq.s32.totalorder %s28, 0
    %p123 = por %p121, %p122
    %s125 = sadd.s32 %s124, 1
    %p128 = scmp.eq.s32.totalorder %s22, 1
    %p129 = scmp.ne.s32.totalorder %s124, %s126
    %p130 = scmp.eq.s32.totalorder %s22, 0
    %p131 = por %p129, %p130
    %p132 = scmp.ne.s32.totalorder %s124, %s126
    %p133 = scmp.eq.s32.totalorder %s27, 1
    %p134 = por %p132, %p133
    %p135 = scmp.ne.s32.totalorder %s126, %s127
    %p136 = scmp.eq.s32.totalorder %s27, 0
    %p137 = por %p135, %p136
    %p138 = scmp.ne.s32.totalorder %s126, %s127
    %p139 = scmp.eq.s32.totalorder %s28, 1
    %p140 = por %p138, %p139
    %p142 = scmp.ne.s32.totalorder %s127, %s141
    %p143 = scmp.eq.s32.totalorder %s28, 0
    %p144 = por %p142, %p143
    %s146 = sadd.s32 %s145, 1
    %p149 = scmp.eq.s32.totalorder %s22, 1
    %p150 = scmp.ne.s32.totalorder %s145, %s147
    %p151 = scmp.eq.s32.totalorder %s22, 0
    %p152 = por %p150, %p151
    %p153 = scmp.ne.s32.totalorder %s145, %s147
    %p154 = scmp.eq.s32.totalorder %s27, 1
    %p155 = por %p153, %p154
    %p156 = scmp.ne.s32.totalorder %s147, %s148
    %p157 = scmp.eq.s32.totalorder %s27, 0
    %p158 = por %p156, %p157
    %p159 = scmp.ne.s32.totalorder %s147, %s148
    %p160 = scmp.eq.s32.totalorder %s28, 1
    %p161 = por %p159, %p160
    %p163 = scmp.ne.s32.totalorder %s148, %s162
    %p164 = scmp.eq.s32.totalorder %s28, 0
    %p165 = por %p163, %p164
    %s167 = sadd.s32 %s166, 1
    %p170 = scmp.eq.s32.totalorder %s22, 1
    %p171 = scmp.ne.s32.totalorder %s166, %s168
    %p172 = scmp.eq.s32.totalorder %s22, 0
    %p173 = por %p171, %p172
    %p174 = scmp.ne.s32.totalorder %s166, %s168
    %p175 = scmp.eq.s32.totalorder %s27, 1
    %p176 = por %p174, %p175
    %p177 = scmp.ne.s32.totalorder %s168, %s169
    %p178 = scmp.eq.s32.totalorder %s27, 0
    %p179 = por %p177, %p178
    %p180 = scmp.ne.s32.totalorder %s168, %s169
    %p181 = scmp.eq.s32.totalorder %s28, 1
    %p182 = por %p180, %p181
    %p184 = scmp.ne.s32.totalorder %s169, %s183
    %p185 = scmp.eq.s32.totalorder %s28, 0
    %p186 = por %p184, %p185
    %s188 = sadd.s32 %s187, 1
    %p191 = scmp.eq.s32.totalorder %s22, 1
    %p192 = scmp.ne.s32.totalorder %s187, %s189
    %p193 = scmp.eq.s32.totalorder %s22, 0
    %p194 = por %p192, %p193
    %p195 = scmp.ne.s32.totalorder %s187, %s189
    %p196 = scmp.eq.s32.totalorder %s27, 1
    %p197 = por %p195, %p196
    %p198 = scmp.ne.s32.totalorder %s189, %s190
    %p199 = scmp.eq.s32.totalorder %s27, 0
    %p200 = por %p198, %p199
    %p201 = scmp.ne.s32.totalorder %s189, %s190
    %p202 = scmp.eq.s32.totalorder %s28, 1
    %p203 = por %p201, %p202
    %p205 = scmp.ne.s32.totalorder %s190, %s204
    %p206 = scmp.eq.s32.totalorder %s28, 0
    %p207 = por %p205, %p206
    %s209 = sadd.s32 %s208, 1
    %p212 = scmp.eq.s32.totalorder %s22, 1
    %p213 = scmp.ne.s32.totalorder %s208, %s210
    %p214 = scmp.eq.s32.totalorder %s22, 0
    %p215 = por %p213, %p214
    %p216 = scmp.ne.s32.totalorder %s208, %s210
    %p217 = scmp.eq.s32.totalorder %s27, 1
    %p218 = por %p216, %p217
    %p219 = scmp.ne.s32.totalorder %s210, %s211
    %p220 = scmp.eq.s32.totalorder %s27, 0
    %p221 = por %p219, %p220
    %p222 = scmp.ne.s32.totalorder %s210, %s211
    %p223 = scmp.eq.s32.totalorder %s28, 1
    %p224 = por %p222, %p223
    %p226 = scmp.ne.s32.totalorder %s211, %s225
    %p227 = scmp.eq.s32.totalorder %s28, 0
    %p228 = por %p226, %p227
    %s230 = sadd.s32 %s229, 1
    %p233 = scmp.eq.s32.totalorder %s22, 1
    %p234 = scmp.ne.s32.totalorder %s229, %s231
    %p235 = scmp.eq.s32.totalorder %s22, 0
    %p236 = por %p234, %p235
    %p237 = scmp.ne.s32.totalorder %s229, %s231
    %p238 = scmp.eq.s32.totalorder %s27, 1
    %p239 = por %p237, %p238
    %p240 = scmp.ne.s32.totalorder %s231, %s232
    %p241 = scmp.eq.s32.totalorder %s27, 0
    %p242 = por %p240, %p241
    %p243 = scmp.ne.s32.totalorder %s231, %s232
    %p244 = scmp.eq.s32.totalorder %s28, 1
    %p245 = por %p243, %p244
    %p247 = scmp.ne.s32.totalorder %s232, %s246
    %p248 = scmp.eq.s32.totalorder %s28, 0
    %p249 = por %p247, %p248
    %s251 = sadd.s32 %s250, 1
    %p254 = scmp.eq.s32.totalorder %s22, 1
    %p255 = scmp.ne.s32.totalorder %s250, %s252
    %p256 = scmp.eq.s32.totalorder %s22, 0
    %p257 = por %p255, %p256
    %p258 = scmp.ne.s32.totalorder %s250, %s252
    %p259 = scmp.eq.s32.totalorder %s27, 1
    %p260 = por %p258, %p259
    %p261 = scmp.ne.s32.totalorder %s252, %s253
    %p262 = scmp.eq.s32.totalorder %s27, 0
    %p263 = por %p261, %p262
    %p264 = scmp.ne.s32.totalorder %s252, %s253
    %p265 = scmp.eq.s32.totalorder %s28, 1
    %p266 = por %p264, %p265
    %p268 = scmp.ne.s32.totalorder %s253, %s267
    %p269 = scmp.eq.s32.totalorder %s28, 0
    %p270 = por %p268, %p269
    %s272 = sadd.s32 %s271, 1
    %p275 = scmp.eq.s32.totalorder %s22, 1
    %p276 = scmp.ne.s32.totalorder %s271, %s273
    %p277 = scmp.eq.s32.totalorder %s22, 0
    %p278 = por %p276, %p277
    %p279 = scmp.ne.s32.totalorder %s271, %s273
    %p280 = scmp.eq.s32.totalorder %s27, 1
    %p281 = por %p279, %p280
    %p282 = scmp.ne.s32.totalorder %s273, %s274
    %p283 = scmp.eq.s32.totalorder %s27, 0
    %p284 = por %p282, %p283
    %p285 = scmp.ne.s32.totalorder %s273, %s274
    %p286 = scmp.eq.s32.totalorder %s28, 1
    %p287 = por %p285, %p286
    %p289 = scmp.ne.s32.totalorder %s274, %s288
    %p290 = scmp.eq.s32.totalorder %s28, 0
    %p291 = por %p289, %p290
    %s293 = sadd.s32 %s292, 1
    %p296 = scmp.eq.s32.totalorder %s22, 1
    %p297 = scmp.ne.s32.totalorder %s292, %s294
    %p298 = scmp.eq.s32.totalorder %s22, 0
    %p299 = por %p297, %p298
    %p300 = scmp.ne.s32.totalorder %s292, %s294
    %p301 = scmp.eq.s32.totalorder %s27, 1
    %p302 = por %p300, %p301
    %p303 = scmp.ne.s32.totalorder %s294, %s295
    %p304 = scmp.eq.s32.totalorder %s27, 0
    %p305 = por %p303, %p304
    %p306 = scmp.ne.s32.totalorder %s294, %s295
    %p307 = scmp.eq.s32.totalorder %s28, 1
    %p308 = por %p306, %p307
    %p310 = scmp.ne.s32.totalorder %s295, %s309
    %p311 = scmp.eq.s32.totalorder %s28, 0
    %p312 = por %p310, %p311
    %s314 = sadd.s32 %s313, 1
    %p317 = scmp.eq.s32.totalorder %s22, 1
    %p318 = scmp.ne.s32.totalorder %s313, %s315
    %p319 = scmp.eq.s32.totalorder %s22, 0
    %p320 = por %p318, %p319
    %p321 = scmp.ne.s32.totalorder %s313, %s315
    %p322 = scmp.eq.s32.totalorder %s27, 1
    %p323 = por %p321, %p322
    %p324 = scmp.ne.s32.totalorder %s315, %s316
    %p325 = scmp.eq.s32.totalorder %s27, 0
    %p326 = por %p324, %p325
    %p327 = scmp.ne.s32.totalorder %s315, %s316
    %p328 = scmp.eq.s32.totalorder %s28, 1
    %p329 = por %p327, %p328
    %p331 = scmp.ne.s32.totalorder %s316, %s330
    %p332 = scmp.eq.s32.totalorder %s28, 0
    %p333 = por %p331, %p332
    %s335 = sadd.s32 %s334, 1
    %p338 = scmp.eq.s32.totalorder %s22, 1
    %p339 = scmp.ne.s32.totalorder %s334, %s336
    %p340 = scmp.eq.s32.totalorder %s22, 0
    %p341 = por %p339, %p340
    %p342 = scmp.ne.s32.totalorder %s334, %s336
    %p343 = scmp.eq.s32.totalorder %s27, 1
    %p344 = por %p342, %p343
    %p345 = scmp.ne.s32.totalorder %s336, %s337
    %p346 = scmp.eq.s32.totalorder %s27, 0
    %p347 = por %p345, %p346
    %p348 = scmp.ne.s32.totalorder %s336, %s337
    %p349 = scmp.eq.s32.totalorder %s28, 1
    %p350 = por %p348, %p349
    %p352 = scmp.ne.s32.totalorder %s337, %s351
    %p353 = scmp.eq.s32.totalorder %s28, 0
    %p354 = por %p352, %p353
    %s356 = sadd.s32 %s355, 1
    %p359 = scmp.eq.s32.totalorder %s22, 1
    %p360 = scmp.ne.s32.totalorder %s355, %s357
    %p361 = scmp.eq.s32.totalorder %s22, 0
    %p362 = por %p360, %p361
    %p363 = scmp.ne.s32.totalorder %s355, %s357
    %p364 = scmp.eq.s32.totalorder %s27, 1
    %p365 = por %p363, %p364
    %p366 = scmp.ne.s32.totalorder %s357, %s358
    %p367 = scmp.eq.s32.totalorder %s27, 0
    %p368 = por %p366, %p367
    %p369 = scmp.ne.s32.totalorder %s357, %s358
    %p370 = scmp.eq.s32.totalorder %s28, 1
    %p371 = por %p369, %p370
    %p373 = scmp.ne.s32.totalorder %s358, %s372
    %p374 = scmp.eq.s32.totalorder %s28, 0
    %p375 = por %p373, %p374
    %s376 = ssub.s32 %s22, %s29
    %p377 = scmp.eq.s32.totalorder %s376, 0
    %s379 = sadd.s32 %s378, 1
    %s380 = scalar_select %p377, %s378, %s379
    %p383 = pneg %p377
    %p384 = scmp.eq.s32.totalorder %s22, 1
    %p385 = por %p383, %p384
    %p386 = scmp.ne.s32.totalorder %s378, %s381
    %p387 = scmp.eq.s32.totalorder %s22, 0
    %p388 = por %p386, %p387
    %p389 = scmp.ne.s32.totalorder %s378, %s381
    %p390 = scmp.eq.s32.totalorder %s27, 1
    %p391 = por %p389, %p390
    %p392 = scmp.ne.s32.totalorder %s381, %s382
    %p393 = scmp.eq.s32.totalorder %s27, 0
    %p394 = por %p392, %p393
    %p395 = scmp.ne.s32.totalorder %s381, %s382
    %p396 = scmp.eq.s32.totalorder %s28, 1
    %p397 = por %p395, %p396
    %p399 = scmp.ne.s32.totalorder %s382, %s398
    %p400 = scmp.eq.s32.totalorder %s28, 0
    %p401 = por %p399, %p400
    %p402 = scmp.le.s32.totalorder 1, %s22
    %p403 = scmp.lt.s32.totalorder %s22, 3
    %p404 = pnand %p402, %p403
    %p405 = pneg %p404
    // Predicated region
    $region9: #{tpu_custom_call.1} parent=5 // pred_check
      _
    $region10: #{tpu_custom_call.1} parent=5 // pred_check_branch
      %407 = sbr.rel (%p404) target = $region12
    $region11: #{tpu_custom_call.1} parent=5 // pred_region
      %s408 = ssub.s32 %s22, 1
      // Predicated region
      $region13: #{tpu_custom_call.1} parent=11 // pred_check
        %p409 = pneg %p95
      $region14: #{tpu_custom_call.1} parent=11 // pred_check_branch
        %411 = sbr.rel (%p409) target = $region16
      $region15: #{tpu_custom_call.1} parent=11 // pred_region
        _
      $region16: #{tpu_custom_call.1} parent=11 // pred_fallthru
        _
      // Predicated region
      $region17: #{tpu_custom_call.1} parent=11 // pred_check
        %p412 = pneg %p116
      $region18: #{tpu_custom_call.1} parent=11 // pred_check_branch
        %414 = sbr.rel (%p412) target = $region20
      $region19: #{tpu_custom_call.1} parent=11 // pred_region
        _
      $region20: #{tpu_custom_call.1} parent=11 // pred_fallthru
        _
      // Predicated region
      $region21: #{tpu_custom_call.1} parent=11 // pred_check
        %p415 = pneg %p137
      $region22: #{tpu_custom_call.1} parent=11 // pred_check_branch
        %417 = sbr.rel (%p415) target = $region24
      $region23: #{tpu_custom_call.1} parent=11 // pred_region
        _
      $region24: #{tpu_custom_call.1} parent=11 // pred_fallthru
        _
      // Predicated region
      $region25: #{tpu_custom_call.1} parent=11 // pred_check
        %p418 = pneg %p158
      $region26: #{tpu_custom_call.1} parent=11 // pred_check_branch
        %420 = sbr.rel (%p418) target = $region28
      $region27: #{tpu_custom_call.1} parent=11 // pred_region
        _
      $region28: #{tpu_custom_call.1} parent=11 // pred_fallthru
        _
      // Predicated region
      $region29: #{tpu_custom_call.1} parent=11 // pred_check
        %p421 = pneg %p179
      $region30: #{tpu_custom_call.1} parent=11 // pred_check_branch
        %423 = sbr.rel (%p421) target = $region32
      $region31: #{tpu_custom_call.1} parent=11 // pred_region
        _
      $region32: #{tpu_custom_call.1} parent=11 // pred_fallthru
        _
      // Predicated region
      $region33: #{tpu_custom_call.1} parent=11 // pred_check
        %p424 = pneg %p200
      $region34: #{tpu_custom_call.1} parent=11 // pred_check_branch
        %426 = sbr.rel (%p424) target = $region36
      $region35: #{tpu_custom_call.1} parent=11 // pred_region
        _
      $region36: #{tpu_custom_call.1} parent=11 // pred_fallthru
        _
      // Predicated region
      $region37: #{tpu_custom_call.1} parent=11 // pred_check
        %p427 = pneg %p221
      $region38: #{tpu_custom_call.1} parent=11 // pred_check_branch
        %429 = sbr.rel (%p427) target = $region40
      $region39: #{tpu_custom_call.1} parent=11 // pred_region
        _
      $region40: #{tpu_custom_call.1} parent=11 // pred_fallthru
        _
      // Predicated region
      $region41: #{tpu_custom_call.1} parent=11 // pred_check
        %p430 = pneg %p242
      $region42: #{tpu_custom_call.1} parent=11 // pred_check_branch
        %432 = sbr.rel (%p430) target = $region44
      $region43: #{tpu_custom_call.1} parent=11 // pred_region
        _
      $region44: #{tpu_custom_call.1} parent=11 // pred_fallthru
        _
      // Predicated region
      $region45: #{tpu_custom_call.1} parent=11 // pred_check
        %p433 = pneg %p263
      $region46: #{tpu_custom_call.1} parent=11 // pred_check_branch
        %435 = sbr.rel (%p433) target = $region48
      $region47: #{tpu_custom_call.1} parent=11 // pred_region
        _
      $region48: #{tpu_custom_call.1} parent=11 // pred_fallthru
        _
      // Predicated region
      $region49: #{tpu_custom_call.1} parent=11 // pred_check
        %p436 = pneg %p284
      $region50: #{tpu_custom_call.1} parent=11 // pred_check_branch
        %438 = sbr.rel (%p436) target = $region52
      $region51: #{tpu_custom_call.1} parent=11 // pred_region
        _
      $region52: #{tpu_custom_call.1} parent=11 // pred_fallthru
        _
      // Predicated region
      $region53: #{tpu_custom_call.1} parent=11 // pred_check
        %p439 = pneg %p305
      $region54: #{tpu_custom_call.1} parent=11 // pred_check_branch
        %441 = sbr.rel (%p439) target = $region56
      $region55: #{tpu_custom_call.1} parent=11 // pred_region
        _
      $region56: #{tpu_custom_call.1} parent=11 // pred_fallthru
        _
      // Predicated region
      $region57: #{tpu_custom_call.1} parent=11 // pred_check
        %p442 = pneg %p326
      $region58: #{tpu_custom_call.1} parent=11 // pred_check_branch
        %444 = sbr.rel (%p442) target = $region60
      $region59: #{tpu_custom_call.1} parent=11 // pred_region
        _
      $region60: #{tpu_custom_call.1} parent=11 // pred_fallthru
        _
      // Predicated region
      $region61: #{tpu_custom_call.1} parent=11 // pred_check
        %p445 = pneg %p347
      $region62: #{tpu_custom_call.1} parent=11 // pred_check_branch
        %447 = sbr.rel (%p445) target = $region64
      $region63: #{tpu_custom_call.1} parent=11 // pred_region
        _
      $region64: #{tpu_custom_call.1} parent=11 // pred_fallthru
        _
      // Predicated region
      $region65: #{tpu_custom_call.1} parent=11 // pred_check
        %p448 = pneg %p368
      $region66: #{tpu_custom_call.1} parent=11 // pred_check_branch
        %450 = sbr.rel (%p448) target = $region68
      $region67: #{tpu_custom_call.1} parent=11 // pred_region
        _
      $region68: #{tpu_custom_call.1} parent=11 // pred_fallthru
        _
    $region12: #{tpu_custom_call.1} parent=5 // pred_fallthru
      _
    %p451 = scmp.lt.s32.totalorder %s22, 2
    // Predicated region
    $region69: #{tpu_custom_call.1} parent=5 // pred_check
      %p452 = pneg %p451
    $region70: #{tpu_custom_call.1} parent=5 // pred_check_branch
      %454 = sbr.rel (%p452) target = $region72
    $region71: #{tpu_custom_call.1} parent=5 // pred_region
      // Predicated region
      $region73: #{tpu_custom_call.1} parent=71 // pred_check
        %p455 = pneg %p42
      $region74: #{tpu_custom_call.1} parent=71 // pred_check_branch
        %457 = sbr.rel (%p455) target = $region76
      $region75: #{tpu_custom_call.1} parent=71 // pred_region
        %s458 = smul.u32 8, %s22
        %p459 = scmp.lt.s32.totalorder %s458, 15
        %s460 = scalar_select %p459, %s458, 15
        %s461 = smul.addr %s460, 4
        %s462 = scalar_lea.vmem %s0, %s461
        %s463 = smul.u32 8, %s22
      $region76: #{tpu_custom_call.1} parent=71 // pred_fallthru
        _
      // Predicated region
      $region77: #{tpu_custom_call.1} parent=71 // pred_check
        %p464 = pneg %p68
      $region78: #{tpu_custom_call.1} parent=71 // pred_check_branch
        %466 = sbr.rel (%p464) target = $region80
      $region79: #{tpu_custom_call.1} parent=71 // pred_region
        %s467 = smul.u32 8, %s22
        %p468 = scmp.lt.s32.totalorder %s467, 15
        %s469 = scalar_select %p468, %s467, 15
        %s470 = smul.addr %s469, 8
        %s471 = scalar_lea.vmem %s1, %s470
        %s472 = smul.u32 8, %s22
      $region80: #{tpu_custom_call.1} parent=71 // pred_fallthru
        _
    $region72: #{tpu_custom_call.1} parent=5 // pred_fallthru
      _
    %p473 = scmp.le.s32.totalorder 1, %s22
    %p474 = scmp.lt.s32.totalorder %s22, 3
    %p475 = pnand %p473, %p474
    %p476 = pneg %p475
    // Predicated region
    $region81: #{tpu_custom_call.1} parent=5 // pred_check
      _
    $region82: #{tpu_custom_call.1} parent=5 // pred_check_branch
      %478 = sbr.rel (%p475) target = $region84
    $region83: #{tpu_custom_call.1} parent=5 // pred_region
      %s479 = ssub.s32 %s22, 1
      %s480 = smul.u32 8, %s27
      %p481 = scmp.lt.s32.totalorder %s480, 15
      %s482 = scalar_select %p481, %s480, 15
      %s483 = smul.addr %s482, 4
      %s484 = scalar_lea.vmem %s0, %s483
      %p485 = pneg %p48
      %p486 = pneg %p45
      %s487 = smul.u32 8, %s27
      %p488 = scmp.lt.s32.totalorder %s487, 15
      %s489 = scalar_select %p488, %s487, 15
      %s490 = smul.addr %s489, 8
      %s491 = scalar_lea.vmem %s1, %s490
      %p492 = pneg %p74
      %p493 = pneg %p71
      %p494 = pneg %p95
      %p495 = pneg %p92
      %p496 = pneg %p116
      %p497 = pneg %p113
      %p498 = pneg %p137
      %p499 = pneg %p134
      %p500 = pneg %p158
      %p501 = pneg %p155
      %p502 = pneg %p179
      %p503 = pneg %p176
      %p504 = pneg %p200
      %p505 = pneg %p197
      %p506 = pneg %p221
      %p507 = pneg %p218
      %p508 = pneg %p242
      %p509 = pneg %p239
      %p510 = pneg %p263
      %p511 = pneg %p260
      %p512 = pneg %p284
      %p513 = pneg %p281
      %p514 = pneg %p305
      %p515 = pneg %p302
      %p516 = pneg %p326
      %p517 = pneg %p323
      %p518 = pneg %p347
      %p519 = pneg %p344
      %p520 = pneg %p368
      %p521 = pneg %p365
      %p522 = pneg %p394
      %p523 = pneg %p391
      %s524 = smul.u32 8, %s27
      %p525 = scmp.lt.s32.totalorder %s524, 15
      %s526 = scalar_select %p525, %s524, 15
      %s527 = smul.addr %s526, 8
      %s528 = scalar_lea.vmem %s16, %s527
      %s529 = smul.u32 8, %s27
      %p530 = scmp.lt.s32.totalorder %s529, 15
      %s531 = scalar_select %p530, %s529, 15
      %s532 = smul.addr %s531, 4
      %s533 = scalar_lea.vmem %s0, %s532
      %s534 = smul.u32 8, %s27
      %s535 = smul.u32 8, %s27
      %p536 = scmp.lt.s32.totalorder %s535, 15
      %s537 = scalar_select %p536, %s535, 15
      %s538 = smul.addr %s537, 8
      %s539 = scalar_lea.vmem %s1, %s538
      %s540 = smul.u32 8, %s27
      %s541 = smul.u32 8, %s27
      %p542 = scmp.lt.s32.totalorder %s541, 15
      %s543 = scalar_select %p542, %s541, 15
      %s544 = smul.addr %s543, 8
      %s545 = scalar_lea.vmem %s16, %s544
      %s546 = smul.u32 8, %s27
      %v548 = vld [vmem:[%s539] sm:$0xff]
      %v549 = vld [vmem:[%s539 + $0x8] sm:$0xff]
      %v550 = vld [vmem:[%s539 + $0x10] sm:$0xff]
      %v551 = vld [vmem:[%s539 + $0x18] sm:$0xff]
      %v552 = vld [vmem:[%s539 + $0x20] sm:$0xff]
      %v553 = vld [vmem:[%s539 + $0x28] sm:$0xff]
      %v554 = vld [vmem:[%s539 + $0x30] sm:$0xff]
      %v555 = vld [vmem:[%s539 + $0x38] sm:$0xff]
      %v556 = vld [vmem:[%s533] sm:$0xf]
      %v557 = vld [vmem:[%s533 + $0x4] sm:$0xf]
      %v558 = vld [vmem:[%s533 + $0x8] sm:$0xf]
      %v559 = vld [vmem:[%s533 + $0xc] sm:$0xf]
      %v560 = vld [vmem:[%s533 + $0x10] sm:$0xf]
      %v561 = vld [vmem:[%s533 + $0x14] sm:$0xf]
      %v562 = vld [vmem:[%s533 + $0x18] sm:$0xf]
      %v563 = vld [vmem:[%s533 + $0x1c] sm:$0xf]
      %v564 = vunpack.c.l.bf16 %v556
      %v565 = vunpack.c.l.bf16 %v557
      %v566 = vunpack.c.l.bf16 %v558
      %v567 = vunpack.c.l.bf16 %v559
      %v568 = vunpack.c.l.bf16 %v560
      %v569 = vunpack.c.l.bf16 %v561
      %v570 = vunpack.c.l.bf16 %v562
      %v571 = vunpack.c.l.bf16 %v563
      %v572 = vpack.c.bf16 %v549, %v548
      %v573 = vpack.c.bf16 %v551, %v550
      %v574 = vpack.c.bf16 %v553, %v552
      %v575 = vpack.c.bf16 %v555, %v554
      %v576 = vld [vmem:[%s4] sm:$0xf]
      %v577 = vld [vmem:[%s4 + $0x4] sm:$0xf]
      %v578 = vld [vmem:[%s4 + $0x8] sm:$0xf]
      %v579 = vld [vmem:[%s4 + $0xc] sm:$0xf]
      %v580 = vld [vmem:[%s5] sm:$0x1]
      %v582 = vlaneseq
      %v583 = vshrl.u32 %v582, 7
      %v584 = vsub.s32 0, %v583
      %v585 = vrot.slane %v580, %v584
      %v591 = vunpack.c.l.b16 %v576
      %v592 = vunpack.c.l.b16 %v577
      %v593 = vunpack.c.l.b16 %v578
      %v594 = vunpack.c.l.b16 %v579
      %v595 = vpack.c.b16 %v592, %v591
      %v596 = vpack.c.b16 %v594, %v593
      %vm599 = vcmask 261120
      %v601 = vsel %vm599, %v572, 0
      %v604 = vsel %vm599, %v573, 0
      %v607 = vsel %vm599, %v574, 0
      %v610 = vsel %vm599, %v575, 0
      %612 = vmatprep.subr.bf16.mxu0 0
      %613 = vmatpush1.bf16.msra.mxu0 %v595
      %614 = vmatprep.subr.bf16.mxu0 0
      %615 = vmatpush1.bf16.msra.mxu0 %v596
      %616 = vmatprep.subr.bf16.mxu0 0
      %617 = vmatpush1.bf16.msra.mxu0 0
      %618 = vmatprep.subr.bf16.mxu0 0
      %619 = vmatpush1.bf16.msra.mxu0 0
      %620 = vmatprep.subr.bf16.mxu0 0
      %621 = vmatpush1.bf16.msra.mxu0 0
      %622 = vmatprep.subr.bf16.mxu0 0
      %623 = vmatpush1.bf16.msra.mxu0 0
      %624 = vmatprep.subr.bf16.mxu0 0
      %625 = vmatpush1.bf16.msra.mxu0 0
      %626 = vmatprep.subr.bf16.mxu0 0
      %627 = vmatpush1.bf16.msra.mxu0 0
      %628 = vmatprep.subr.bf16.mxu0 0
      %629 = vmatpush1.bf16.msra.mxu0 0
      %630 = vmatprep.subr.bf16.mxu0 0
      %631 = vmatpush1.bf16.msra.mxu0 0
      %632 = vmatprep.subr.bf16.mxu0 0
      %633 = vmatpush1.bf16.msra.mxu0 0
      %634 = vmatprep.subr.bf16.mxu0 0
      %635 = vmatpush1.bf16.msra.mxu0 0
      %636 = vmatprep.subr.bf16.mxu0 0
      %637 = vmatpush1.bf16.msra.mxu0 0
      %638 = vmatprep.subr.bf16.mxu0 0
      %639 = vmatpush1.bf16.msra.mxu0 0
      %640 = vmatprep.subr.bf16.mxu0 0
      %641 = vmatpush1.bf16.msra.mxu0 0
      %642 = vmatprep.subr.bf16.mxu0 0
      %643 = vmatpush1.bf16.msra.mxu0 0
      %644 = vmatprep.mubr.bf16.mxu0 0
      %645 = vmatmul.mubr.bf16.gmra.mrb[0].mxu0 %v601
      %v646 = vpop.f32.mrb[0].mxu0
      %v647 = vadd.f32 %v585, %v646
      %v648 = vpop.f32.mrb[0].mxu0
      %v649 = vpop.f32.mrb[0].mxu0
      %v650 = vadd.f32 %v585, %v649
      %v651 = vpop.f32.mrb[0].mxu0
      %652 = vmatprep.mubr.bf16.mxu0 0
      %653 = vmatmul.mubr.bf16.gmra.mrb[0].mxu0 %v604
      %v654 = vpop.f32.mrb[0].mxu0
      %v655 = vadd.f32 %v585, %v654
      %v656 = vpop.f32.mrb[0].mxu0
      %v657 = vpop.f32.mrb[0].mxu0
      %v658 = vadd.f32 %v585, %v657
      %v659 = vpop.f32.mrb[0].mxu0
      %660 = vmatprep.mubr.bf16.mxu0 0
      %661 = vmatmul.mubr.bf16.gmra.mrb[0].mxu0 %v607
      %v662 = vpop.f32.mrb[0].mxu0
      %v663 = vadd.f32 %v585, %v662
      %v664 = vpop.f32.mrb[0].mxu0
      %v665 = vpop.f32.mrb[0].mxu0
      %v666 = vadd.f32 %v585, %v665
      %v667 = vpop.f32.mrb[0].mxu0
      %668 = vmatprep.mubr.bf16.mxu0 0
      %669 = vmatmul.mubr.bf16.gmra.mrb[0].mxu0 %v610
      %v670 = vpop.f32.mrb[0].mxu0
      %v671 = vadd.f32 %v585, %v670
      %v672 = vpop.f32.mrb[0].mxu0
      %v673 = vpop.f32.mrb[0].mxu0
      %v674 = vadd.f32 %v585, %v673
      %v675 = vpop.f32.mrb[0].mxu0
      %676 = vdwg.mxu0
      %v677 = vld [vmem:[%s2] sm:$0xf]
      %v678 = vld [vmem:[%s2 + $0x4] sm:$0xf]
      %v679 = vld [vmem:[%s2 + $0x8] sm:$0xf]
      %v680 = vld [vmem:[%s2 + $0xc] sm:$0xf]
      %v681 = vld [vmem:[%s3] sm:$0xf]
      %v682 = vld [vmem:[%s3 + $0x4] sm:$0xf]
      %v683 = vld [vmem:[%s3 + $0x8] sm:$0xf]
      %v684 = vld [vmem:[%s3 + $0xc] sm:$0xf]
      %v685 = vld [vmem:[%s3 + $0x10] sm:$0xf]
      %v686 = vld [vmem:[%s3 + $0x14] sm:$0xf]
      %v687 = vld [vmem:[%s3 + $0x18] sm:$0xf]
      %v688 = vld [vmem:[%s3 + $0x1c] sm:$0xf]
      %v689 = vld [vmem:[%s3 + $0x20] sm:$0xf]
      %v690 = vld [vmem:[%s3 + $0x24] sm:$0xf]
      %v691 = vld [vmem:[%s3 + $0x28] sm:$0xf]
      %v692 = vld [vmem:[%s3 + $0x2c] sm:$0xf]
      %v693 = vld [vmem:[%s3 + $0x30] sm:$0xf]
      %v694 = vld [vmem:[%s3 + $0x34] sm:$0xf]
      %v695 = vld [vmem:[%s3 + $0x38] sm:$0xf]
      %v696 = vld [vmem:[%s3 + $0x3c] sm:$0xf]
      %v697 = vld [vmem:[%s6] sm:$0xf]
      %v698 = vld [vmem:[%s6 + $0x4] sm:$0xf]
      %v699 = vld [vmem:[%s6 + $0x8] sm:$0xf]
      %v700 = vld [vmem:[%s6 + $0xc] sm:$0xf]
      %v701 = vld [vmem:[%s7] sm:$0x1]
      %v702 = vpack.c.bf16 %v650, %v647
      %v703 = vpack.c.bf16 %v658, %v655
      %v704 = vpack.c.bf16 %v666, %v663
      %v705 = vpack.c.bf16 %v674, %v671
      %vm706 = vcmask 64512
      %v708 = vsel %vm706, %v702, 0
      %v711 = vsel %vm706, %v703, 0
      %v714 = vsel %vm706, %v704, 0
      %v717 = vsel %vm706, %v705, 0
      %vm719 = vcmask 1043456
      %v721 = vsel %vm719, %v677, 0
      %723 = vmatprep.subr.bf16.mxu0 0
      %724 = vmatpush1.bf16.msra.mxu0 %v721
      %725 = vmatprep.subr.bf16.mxu0 0
      %726 = vmatpush1.bf16.msra.mxu0 0
      %727 = vmatprep.subr.bf16.mxu0 0
      %728 = vmatpush1.bf16.msra.mxu0 0
      %729 = vmatprep.subr.bf16.mxu0 0
      %730 = vmatpush1.bf16.msra.mxu0 0
      %731 = vmatprep.subr.bf16.mxu0 0
      %732 = vmatpush1.bf16.msra.mxu0 0
      %733 = vmatprep.subr.bf16.mxu0 0
      %734 = vmatpush1.bf16.msra.mxu0 0
      %735 = vmatprep.subr.bf16.mxu0 0
      %736 = vmatpush1.bf16.msra.mxu0 0
      %737 = vmatprep.subr.bf16.mxu0 0
      %738 = vmatpush1.bf16.msra.mxu0 0
      %739 = vmatprep.subr.bf16.mxu0 0
      %740 = vmatpush1.bf16.msra.mxu0 0
      %741 = vmatprep.subr.bf16.mxu0 0
      %742 = vmatpush1.bf16.msra.mxu0 0
      %743 = vmatprep.subr.bf16.mxu0 0
      %744 = vmatpush1.bf16.msra.mxu0 0
      %745 = vmatprep.subr.bf16.mxu0 0
      %746 = vmatpush1.bf16.msra.mxu0 0
      %747 = vmatprep.subr.bf16.mxu0 0
      %748 = vmatpush1.bf16.msra.mxu0 0
      %749 = vmatprep.subr.bf16.mxu0 0
      %750 = vmatpush1.bf16.msra.mxu0 0
      %751 = vmatprep.subr.bf16.mxu0 0
      %752 = vmatpush1.bf16.msra.mxu0 0
      %753 = vmatprep.subr.bf16.mxu0 0
      %754 = vmatpush1.bf16.msra.mxu0 0
      %755 = vmatprep.mubr.bf16.mxu0 0
      %756 = vmatmul.mubr.bf16.gmra.mrb[0].mxu0 %v708
      %v757 = vpop.f32.mrb[0].mxu0
      %v758 = vadd.f32 %v564, %v757
      %v759 = vpop.f32.mrb[0].mxu0
      %v760 = vpop.f32.mrb[0].mxu0
      %v761 = vadd.f32 %v565, %v760
      %v762 = vpop.f32.mrb[0].mxu0
      %763 = vmatprep.mubr.bf16.mxu0 0
      %764 = vmatmul.mubr.bf16.gmra.mrb[0].mxu0 %v711
      %v765 = vpop.f32.mrb[0].mxu0
      %v766 = vadd.f32 %v566, %v765
      %v767 = vpop.f32.mrb[0].mxu0
      %v768 = vpop.f32.mrb[0].mxu0
      %v769 = vadd.f32 %v567, %v768
      %v770 = vpop.f32.mrb[0].mxu0
      %771 = vmatprep.mubr.bf16.mxu0 0
      %772 = vmatmul.mubr.bf16.gmra.mrb[0].mxu0 %v714
      %v773 = vpop.f32.mrb[0].mxu0
      %v774 = vadd.f32 %v568, %v773
      %v775 = vpop.f32.mrb[0].mxu0
      %v776 = vpop.f32.mrb[0].mxu0
      %v777 = vadd.f32 %v569, %v776
      %v778 = vpop.f32.mrb[0].mxu0
      %779 = vmatprep.mubr.bf16.mxu0 0
      %780 = vmatmul.mubr.bf16.gmra.mrb[0].mxu0 %v717
      %v781 = vpop.f32.mrb[0].mxu0
      %v782 = vadd.f32 %v570, %v781
      %v783 = vpop.f32.mrb[0].mxu0
      %v784 = vpop.f32.mrb[0].mxu0
      %v785 = vadd.f32 %v571, %v784
      %v786 = vpop.f32.mrb[0].mxu0
      %787 = vdwg.mxu0
      %788 = vmax.xlane.f32.xlu0 %v758
      %v789 = vpop.xlane.xlu0 %788
      %790 = vmax.xlane.f32.xlu0 %v761
      %v791 = vpop.xlane.xlu0 %790
      %792 = vmax.xlane.f32.xlu0 %v766
      %v793 = vpop.xlane.xlu0 %792
      %794 = vmax.xlane.f32.xlu0 %v769
      %v795 = vpop.xlane.xlu0 %794
      %796 = vmax.xlane.f32.xlu0 %v774
      %v797 = vpop.xlane.xlu0 %796
      %798 = vmax.xlane.f32.xlu0 %v777
      %v799 = vpop.xlane.xlu0 %798
      %800 = vmax.xlane.f32.xlu0 %v782
      %v801 = vpop.xlane.xlu0 %800
      %802 = vmax.xlane.f32.xlu0 %v785
      %v803 = vpop.xlane.xlu0 %802
      %v804 = vmax.f32 %v789, -1e+29
      %v805 = vmax.f32 %v791, -1e+29
      %v806 = vmax.f32 %v793, -1e+29
      %v807 = vmax.f32 %v795, -1e+29
      %v808 = vmax.f32 %v797, -1e+29
      %v809 = vmax.f32 %v799, -1e+29
      %v810 = vmax.f32 %v801, -1e+29
      %v811 = vmax.f32 %v803, -1e+29
      %v812 = vsub.f32 %v758, %v804
      %v813 = vsub.f32 %v761, %v805
      %v814 = vsub.f32 %v766, %v806
      %v815 = vsub.f32 %v769, %v807
      %v816 = vsub.f32 %v774, %v808
      %v817 = vsub.f32 %v777, %v809
      %v818 = vsub.f32 %v782, %v810
      %v819 = vsub.f32 %v785, %v811
      %v820 = vpack.c.bf16 %v813, %v812
      %v821 = vpack.c.bf16 %v815, %v814
      %v822 = vpack.c.bf16 %v817, %v816
      %v823 = vpack.c.bf16 %v819, %v818
      %v825 = vmul.bf16 %v820, 1069105081
      %v826 = vpow.bf16.pop %v825
      %v828 = vmul.bf16 %v821, 1069105081
      %v829 = vpow.bf16.pop %v828
      %v831 = vmul.bf16 %v822, 1069105081
      %v832 = vpow.bf16.pop %v831
      %v834 = vmul.bf16 %v823, 1069105081
      %v835 = vpow.bf16.pop %v834
      %v852 = vunpack.c.l.b16 %v681
      %v853 = vunpack.c.l.b16 %v682
      %v854 = vunpack.c.l.b16 %v683
      %v855 = vunpack.c.l.b16 %v684
      %v856 = vunpack.c.l.b16 %v685
      %v857 = vunpack.c.l.b16 %v686
      %v858 = vunpack.c.l.b16 %v687
      %v859 = vunpack.c.l.b16 %v688
      %v860 = vunpack.c.l.b16 %v689
      %v861 = vunpack.c.l.b16 %v690
      %v862 = vunpack.c.l.b16 %v691
      %v863 = vunpack.c.l.b16 %v692
      %v864 = vunpack.c.l.b16 %v693
      %v865 = vunpack.c.l.b16 %v694
      %v866 = vunpack.c.l.b16 %v695
      %v867 = vunpack.c.l.b16 %v696
      %v868 = vpack.c.b16 %v853, %v852
      %v869 = vpack.c.b16 %v855, %v854
      %v870 = vpack.c.b16 %v857, %v856
      %v871 = vpack.c.b16 %v859, %v858
      %v872 = vpack.c.b16 %v861, %v860
      %v873 = vpack.c.b16 %v863, %v862
      %v874 = vpack.c.b16 %v865, %v864
      %v875 = vpack.c.b16 %v867, %v866
      %884 = vmatprep.subr.bf16.mxu0 0
      %885 = vmatpush1.bf16.msra.mxu0 %v868
      %886 = vmatprep.subr.bf16.mxu0 0
      %887 = vmatpush1.bf16.msra.mxu0 %v869
      %888 = vmatprep.subr.bf16.mxu0 0
      %889 = vmatpush1.bf16.msra.mxu0 %v870
      %890 = vmatprep.subr.bf16.mxu0 0
      %891 = vmatpush1.bf16.msra.mxu0 %v871
      %892 = vmatprep.subr.bf16.mxu0 0
      %893 = vmatpush1.bf16.msra.mxu0 %v872
      %894 = vmatprep.subr.bf16.mxu0 0
      %895 = vmatpush1.bf16.msra.mxu0 %v873
      %896 = vmatprep.subr.bf16.mxu0 0
      %897 = vmatpush1.bf16.msra.mxu0 %v874
      %898 = vmatprep.subr.bf16.mxu0 0
      %899 = vmatpush1.bf16.msra.mxu0 %v875
      %900 = vmatprep.subr.bf16.mxu0 0
      %901 = vmatpush1.bf16.msra.mxu0 0
      %902 = vmatprep.subr.bf16.mxu0 0
      %903 = vmatpush1.bf16.msra.mxu0 0
      %904 = vmatprep.subr.bf16.mxu0 0
      %905 = vmatpush1.bf16.msra.mxu0 0
      %906 = vmatprep.subr.bf16.mxu0 0
      %907 = vmatpush1.bf16.msra.mxu0 0
      %908 = vmatprep.subr.bf16.mxu0 0
      %909 = vmatpush1.bf16.msra.mxu0 0
      %910 = vmatprep.subr.bf16.mxu0 0
      %911 = vmatpush1.bf16.msra.mxu0 0
      %912 = vmatprep.subr.bf16.mxu0 0
      %913 = vmatpush1.bf16.msra.mxu0 0
      %914 = vmatprep.subr.bf16.mxu0 0
      %915 = vmatpush1.bf16.msra.mxu0 0
      %916 = vmatprep.mubr.bf16.mxu0 0
      %917 = vmatmul.mubr.bf16.gmra.mrb[0].mxu0 %v826
      %v918 = vpop.f32.mrb[0].mxu0
      %v919 = vadd.f32 0.0, %v918
      %v920 = vpop.f32.mrb[0].mxu0
      %v921 = vpop.f32.mrb[0].mxu0
      %v922 = vadd.f32 0.0, %v921
      %v923 = vpop.f32.mrb[0].mxu0
      %924 = vmatprep.mubr.bf16.mxu0 0
      %925 = vmatmul.mubr.bf16.gmra.mrb[0].mxu0 %v829
      %v926 = vpop.f32.mrb[0].mxu0
      %v927 = vadd.f32 0.0, %v926
      %v928 = vpop.f32.mrb[0].mxu0
      %v929 = vpop.f32.mrb[0].mxu0
      %v930 = vadd.f32 0.0, %v929
      %v931 = vpop.f32.mrb[0].mxu0
      %932 = vmatprep.mubr.bf16.mxu0 0
      %933 = vmatmul.mubr.bf16.gmra.mrb[0].mxu0 %v832
      %v934 = vpop.f32.mrb[0].mxu0
      %v935 = vadd.f32 0.0, %v934
      %v936 = vpop.f32.mrb[0].mxu0
      %v937 = vpop.f32.mrb[0].mxu0
      %v938 = vadd.f32 0.0, %v937
      %v939 = vpop.f32.mrb[0].mxu0
      %940 = vmatprep.mubr.bf16.mxu0 0
      %941 = vmatmul.mubr.bf16.gmra.mrb[0].mxu0 %v835
      %v942 = vpop.f32.mrb[0].mxu0
      %v943 = vadd.f32 0.0, %v942
      %v944 = vpop.f32.mrb[0].mxu0
      %v945 = vpop.f32.mrb[0].mxu0
      %v946 = vadd.f32 0.0, %v945
      %v947 = vpop.f32.mrb[0].mxu0
      %948 = vdwg.mxu0
      %v949 = vadd.f32 %v919, 1e-16
      %v950 = vadd.f32 %v922, 1e-16
      %v951 = vadd.f32 %v927, 1e-16
      %v952 = vadd.f32 %v930, 1e-16
      %v953 = vadd.f32 %v935, 1e-16
      %v954 = vadd.f32 %v938, 1e-16
      %v955 = vadd.f32 %v943, 1e-16
      %v956 = vadd.f32 %v946, 1e-16
      %v957 = vrcp.pop %v949
      %v958 = vrcp.pop %v950
      %v959 = vrcp.pop %v951
      %v960 = vrcp.pop %v952
      %v961 = vrcp.pop %v953
      %v962 = vrcp.pop %v954
      %v963 = vrcp.pop %v955
      %v964 = vrcp.pop %v956
      %966 = vset.pattern.permute.xlu0 8
      %967 = vperm.xlu0 %966, %v957
      %v968 = vpop.permute.xlu0 %967
      %971 = vset.pattern.permute.xlu0 8
      %972 = vperm.xlu0 %971, %v958
      %v973 = vpop.permute.xlu0 %972
      %976 = vset.pattern.permute.xlu0 8
      %977 = vperm.xlu0 %976, %v959
      %v978 = vpop.permute.xlu0 %977
      %981 = vset.pattern.permute.xlu0 8
      %982 = vperm.xlu0 %981, %v960
      %v983 = vpop.permute.xlu0 %982
      %986 = vset.pattern.permute.xlu0 8
      %987 = vperm.xlu0 %986, %v961
      %v988 = vpop.permute.xlu0 %987
      %991 = vset.pattern.permute.xlu0 8
      %992 = vperm.xlu0 %991, %v962
      %v993 = vpop.permute.xlu0 %992
      %996 = vset.pattern.permute.xlu0 8
      %997 = vperm.xlu0 %996, %v963
      %v998 = vpop.permute.xlu0 %997
      %1001 = vset.pattern.permute.xlu0 8
      %1002 = vperm.xlu0 %1001, %v964
      %v1003 = vpop.permute.xlu0 %1002
      %v1005 = vmul.f32 %v919, %v968
      %v1006 = vmul.f32 %v922, %v973
      %v1007 = vmul.f32 %v927, %v978
      %v1008 = vmul.f32 %v930, %v983
      %v1009 = vmul.f32 %v935, %v988
      %v1010 = vmul.f32 %v938, %v993
      %v1011 = vmul.f32 %v943, %v998
      %v1012 = vmul.f32 %v946, %v1003
      %v1013 = vpack.c.bf16 %v1006, %v1005
      %v1014 = vpack.c.bf16 %v1008, %v1007
      %v1015 = vpack.c.bf16 %v1010, %v1009
      %v1016 = vpack.c.bf16 %v1012, %v1011
      %v1018 = vsel %vm706, %v1013, 0
      %v1021 = vsel %vm706, %v1014, 0
      %v1024 = vsel %vm706, %v1015, 0
      %v1027 = vsel %vm706, %v1016, 0
      %v1030 = vsel %vm719, %v697, 0
      %1032 = vmatprep.subr.bf16.mxu0 0
      %1033 = vmatpush1.bf16.msra.mxu0 %v1030
      %1034 = vmatprep.subr.bf16.mxu0 0
      %1035 = vmatpush1.bf16.msra.mxu0 0
      %1036 = vmatprep.subr.bf16.mxu0 0
      %1037 = vmatpush1.bf16.msra.mxu0 0
      %1038 = vmatprep.subr.bf16.mxu0 0
      %1039 = vmatpush1.bf16.msra.mxu0 0
      %1040 = vmatprep.subr.bf16.mxu0 0
      %1041 = vmatpush1.bf16.msra.mxu0 0
      %1042 = vmatprep.subr.bf16.mxu0 0
      %1043 = vmatpush1.bf16.msra.mxu0 0
      %1044 = vmatprep.subr.bf16.mxu0 0
      %1045 = vmatpush1.bf16.msra.mxu0 0
      %1046 = vmatprep.subr.bf16.mxu0 0
      %1047 = vmatpush1.bf16.msra.mxu0 0
      %1048 = vmatprep.subr.bf16.mxu0 0
      %1049 = vmatpush1.bf16.msra.mxu0 0
      %1050 = vmatprep.subr.bf16.mxu0 0
      %1051 = vmatpush1.bf16.msra.mxu0 0
      %1052 = vmatprep.subr.bf16.mxu0 0
      %1053 = vmatpush1.bf16.msra.mxu0 0
      %1054 = vmatprep.subr.bf16.mxu0 0
      %1055 = vmatpush1.bf16.msra.mxu0 0
      %1056 = vmatprep.subr.bf16.mxu0 0
      %1057 = vmatpush1.bf16.msra.mxu0 0
      %1058 = vmatprep.subr.bf16.mxu0 0
      %1059 = vmatpush1.bf16.msra.mxu0 0
      %1060 = vmatprep.subr.bf16.mxu0 0
      %1061 = vmatpush1.bf16.msra.mxu0 0
      %1062 = vmatprep.subr.bf16.mxu0 0
      %1063 = vmatpush1.bf16.msra.mxu0 0
      %1064 = vmatprep.mubr.bf16.mxu0 0
      %1065 = vmatmul.mubr.bf16.gmra.mrb[0].mxu0 %v1018
      %v1066 = vpop.f32.mrb[0].mxu0
      %v1067 = vadd.f32 0.0, %v1066
      %v1068 = vpop.f32.mrb[0].mxu0
      %v1069 = vpop.f32.mrb[0].mxu0
      %v1070 = vadd.f32 0.0, %v1069
      %v1071 = vpop.f32.mrb[0].mxu0
      %1072 = vmatprep.mubr.bf16.mxu0 0
      %1073 = vmatmul.mubr.bf16.gmra.mrb[0].mxu0 %v1021
      %v1074 = vpop.f32.mrb[0].mxu0
      %v1075 = vadd.f32 0.0, %v1074
      %v1076 = vpop.f32.mrb[0].mxu0
      %v1077 = vpop.f32.mrb[0].mxu0
      %v1078 = vadd.f32 0.0, %v1077
      %v1079 = vpop.f32.mrb[0].mxu0
      %1080 = vmatprep.mubr.bf16.mxu0 0
      %1081 = vmatmul.mubr.bf16.gmra.mrb[0].mxu0 %v1024
      %v1082 = vpop.f32.mrb[0].mxu0
      %v1083 = vadd.f32 0.0, %v1082
      %v1084 = vpop.f32.mrb[0].mxu0
      %v1085 = vpop.f32.mrb[0].mxu0
      %v1086 = vadd.f32 0.0, %v1085
      %v1087 = vpop.f32.mrb[0].mxu0
      %1088 = vmatprep.mubr.bf16.mxu0 0
      %1089 = vmatmul.mubr.bf16.gmra.mrb[0].mxu0 %v1027
      %v1090 = vpop.f32.mrb[0].mxu0
      %v1091 = vadd.f32 0.0, %v1090
      %v1092 = vpop.f32.mrb[0].mxu0
      %v1093 = vpop.f32.mrb[0].mxu0
      %v1094 = vadd.f32 0.0, %v1093
      %v1095 = vpop.f32.mrb[0].mxu0
      %1096 = vdwg.mxu0
      %v1098 = vlaneseq
      %v1099 = vshrl.u32 %v1098, 7
      %v1100 = vsub.s32 0, %v1099
      %v1101 = vrot.slane %v701, %v1100
      %v1103 = vadd.f32 %v1101, %v1067
      %v1104 = vadd.f32 %v1101, %v1070
      %v1105 = vadd.f32 %v1101, %v1075
      %v1106 = vadd.f32 %v1101, %v1078
      %v1107 = vadd.f32 %v1101, %v1083
      %v1108 = vadd.f32 %v1101, %v1086
      %v1109 = vadd.f32 %v1101, %v1091
      %v1110 = vadd.f32 %v1101, %v1094
      %1115 = vrot.lane.b32.xlu0 %v702, 120
      %v1116 = vpop.permute.xlu0 %1115
      %1117 = vrot.lane.b32.xlu0 %v703, 120
      %v1118 = vpop.permute.xlu0 %1117
      %1119 = vrot.lane.b32.xlu0 %v704, 120
      %v1120 = vpop.permute.xlu0 %1119
      %1121 = vrot.lane.b32.xlu0 %v705, 120
      %v1122 = vpop.permute.xlu0 %1121
      %v1124 = vsel %vm706, %v1116, 0
      %v1127 = vsel %vm706, %v1118, 0
      %v1130 = vsel %vm706, %v1120, 0
      %v1133 = vsel %vm706, %v1122, 0
      %v1136 = vsel %vm719, %v678, 0
      %1138 = vmatprep.subr.bf16.mxu0 0
      %1139 = vmatpush1.bf16.msra.mxu0 %v1136
      %1140 = vmatprep.subr.bf16.mxu0 0
      %1141 = vmatpush1.bf16.msra.mxu0 0
      %1142 = vmatprep.subr.bf16.mxu0 0
      %1143 = vmatpush1.bf16.msra.mxu0 0
      %1144 = vmatprep.subr.bf16.mxu0 0
      %1145 = vmatpush1.bf16.msra.mxu0 0
      %1146 = vmatprep.subr.bf16.mxu0 0
      %1147 = vmatpush1.bf16.msra.mxu0 0
      %1148 = vmatprep.subr.bf16.mxu0 0
      %1149 = vmatpush1.bf16.msra.mxu0 0
      %1150 = vmatprep.subr.bf16.mxu0 0
      %1151 = vmatpush1.bf16.msra.mxu0 0
      %1152 = vmatprep.subr.bf16.mxu0 0
      %1153 = vmatpush1.bf16.msra.mxu0 0
      %1154 = vmatprep.subr.bf16.mxu0 0
      %1155 = vmatpush1.bf16.msra.mxu0 0
      %1156 = vmatprep.subr.bf16.mxu0 0
      %1157 = vmatpush1.bf16.msra.mxu0 0
      %1158 = vmatprep.subr.bf16.mxu0 0
      %1159 = vmatpush1.bf16.msra.mxu0 0
      %1160 = vmatprep.subr.bf16.mxu0 0
      %1161 = vmatpush1.bf16.msra.mxu0 0
      %1162 = vmatprep.subr.bf16.mxu0 0
      %1163 = vmatpush1.bf16.msra.mxu0 0
      %1164 = vmatprep.subr.bf16.mxu0 0
      %1165 = vmatpush1.bf16.msra.mxu0 0
      %1166 = vmatprep.subr.bf16.mxu0 0
      %1167 = vmatpush1.bf16.msra.mxu0 0
      %1168 = vmatprep.subr.bf16.mxu0 0
      %1169 = vmatpush1.bf16.msra.mxu0 0
      %1170 = vmatprep.mubr.bf16.mxu0 0
      %1171 = vmatmul.mubr.bf16.gmra.mrb[0].mxu0 %v1124
      %v1172 = vpop.f32.mrb[0].mxu0
      %v1173 = vadd.f32 %v564, %v1172
      %v1174 = vpop.f32.mrb[0].mxu0
      %v1175 = vpop.f32.mrb[0].mxu0
      %v1176 = vadd.f32 %v565, %v1175
      %v1177 = vpop.f32.mrb[0].mxu0
      %1178 = vmatprep.mubr.bf16.mxu0 0
      %1179 = vmatmul.mubr.bf16.gmra.mrb[0].mxu0 %v1127
      %v1180 = vpop.f32.mrb[0].mxu0
      %v1181 = vadd.f32 %v566, %v1180
      %v1182 = vpop.f32.mrb[0].mxu0
      %v1183 = vpop.f32.mrb[0].mxu0
      %v1184 = vadd.f32 %v567, %v1183
      %v1185 = vpop.f32.mrb[0].mxu0
      %1186 = vmatprep.mubr.bf16.mxu0 0
      %1187 = vmatmul.mubr.bf16.gmra.mrb[0].mxu0 %v1130
      %v1188 = vpop.f32.mrb[0].mxu0
      %v1189 = vadd.f32 %v568, %v1188
      %v1190 = vpop.f32.mrb[0].mxu0
      %v1191 = vpop.f32.mrb[0].mxu0
      %v1192 = vadd.f32 %v569, %v1191
      %v1193 = vpop.f32.mrb[0].mxu0
      %1194 = vmatprep.mubr.bf16.mxu0 0
      %1195 = vmatmul.mubr.bf16.gmra.mrb[0].mxu0 %v1133
      %v1196 = vpop.f32.mrb[0].mxu0
      %v1197 = vadd.f32 %v570, %v1196
      %v1198 = vpop.f32.mrb[0].mxu0
      %v1199 = vpop.f32.mrb[0].mxu0
      %v1200 = vadd.f32 %v571, %v1199
      %v1201 = vpop.f32.mrb[0].mxu0
      %1202 = vdwg.mxu0
      %1203 = vmax.xlane.f32.xlu0 %v1173
      %v1204 = vpop.xlane.xlu0 %1203
      %1205 = vmax.xlane.f32.xlu0 %v1176
      %v1206 = vpop.xlane.xlu0 %1205
      %1207 = vmax.xlane.f32.xlu0 %v1181
      %v1208 = vpop.xlane.xlu0 %1207
      %1209 = vmax.xlane.f32.xlu0 %v1184
      %v1210 = vpop.xlane.xlu0 %1209
      %1211 = vmax.xlane.f32.xlu0 %v1189
      %v1212 = vpop.xlane.xlu0 %1211
      %1213 = vmax.xlane.f32.xlu0 %v1192
      %v1214 = vpop.xlane.xlu0 %1213
      %1215 = vmax.xlane.f32.xlu0 %v1197
      %v1216 = vpop.xlane.xlu0 %1215
      %1217 = vmax.xlane.f32.xlu0 %v1200
      %v1218 = vpop.xlane.xlu0 %1217
      %v1219 = vmax.f32 %v1204, -1e+29
      %v1220 = vmax.f32 %v1206, -1e+29
      %v1221 = vmax.f32 %v1208, -1e+29
      %v1222 = vmax.f32 %v1210, -1e+29
      %v1223 = vmax.f32 %v1212, -1e+29
      %v1224 = vmax.f32 %v1214, -1e+29
      %v1225 = vmax.f32 %v1216, -1e+29
      %v1226 = vmax.f32 %v1218, -1e+29
      %v1227 = vsub.f32 %v1173, %v1219
      %v1228 = vsub.f32 %v1176, %v1220
      %v1229 = vsub.f32 %v1181, %v1221
      %v1230 = vsub.f32 %v1184, %v1222
      %v1231 = vsub.f32 %v1189, %v1223
      %v1232 = vsub.f32 %v1192, %v1224
      %v1233 = vsub.f32 %v1197, %v1225
      %v1234 = vsub.f32 %v1200, %v1226
      %v1235 = vpack.c.bf16 %v1228, %v1227
      %v1236 = vpack.c.bf16 %v1230, %v1229
      %v1237 = vpack.c.bf16 %v1232, %v1231
      %v1238 = vpack.c.bf16 %v1234, %v1233
      %v1240 = vmul.bf16 %v1235, 1069105081
      %v1241 = vpow.bf16.pop %v1240
      %v1243 = vmul.bf16 %v1236, 1069105081
      %v1244 = vpow.bf16.pop %v1243
      %v1246 = vmul.bf16 %v1237, 1069105081
      %v1247 = vpow.bf16.pop %v1246
      %v1249 = vmul.bf16 %v1238, 1069105081
      %v1250 = vpow.bf16.pop %v1249
      %1251 = vrot.lane.b32.xlu0 %v868, 112
      %v1252 = vpop.permute.xlu0 %1251
      %1253 = vrot.lane.b32.xlu0 %v869, 112
      %v1254 = vpop.permute.xlu0 %1253
      %1255 = vrot.lane.b32.xlu0 %v870, 112
      %v1256 = vpop.permute.xlu0 %1255
      %1257 = vrot.lane.b32.xlu0 %v871, 112
      %v1258 = vpop.permute.xlu0 %1257
      %1259 = vrot.lane.b32.xlu0 %v872, 112
      %v1260 = vpop.permute.xlu0 %1259
      %1261 = vrot.lane.b32.xlu0 %v873, 112
      %v1262 = vpop.permute.xlu0 %1261
      %1263 = vrot.lane.b32.xlu0 %v874, 112
      %v1264 = vpop.permute.xlu0 %1263
      %1265 = vrot.lane.b32.xlu0 %v875, 112
      %v1266 = vpop.permute.xlu0 %1265
      %1275 = vmatprep.subr.bf16.mxu0 0
      %1276 = vmatpush1.bf16.msra.mxu0 %v1252
      %1277 = vmatprep.subr.bf16.mxu0 0
      %1278 = vmatpush1.bf16.msra.mxu0 %v1254
      %1279 = vmatprep.subr.bf16.mxu0 0
      %1280 = vmatpush1.bf16.msra.mxu0 %v1256
      %1281 = vmatprep.subr.bf16.mxu0 0
      %1282 = vmatpush1.bf16.msra.mxu0 %v1258
      %1283 = vmatprep.subr.bf16.mxu0 0
      %1284 = vmatpush1.bf16.msra.mxu0 %v1260
      %1285 = vmatprep.subr.bf16.mxu0 0
      %1286 = vmatpush1.bf16.msra.mxu0 %v1262
      %1287 = vmatprep.subr.bf16.mxu0 0
      %1288 = vmatpush1.bf16.msra.mxu0 %v1264
      %1289 = vmatprep.subr.bf16.mxu0 0
      %1290 = vmatpush1.bf16.msra.mxu0 %v1266
      %1291 = vmatprep.subr.bf16.mxu0 0
      %1292 = vmatpush1.bf16.msra.mxu0 0
      %1293 = vmatprep.subr.bf16.mxu0 0
      %1294 = vmatpush1.bf16.msra.mxu0 0
      %1295 = vmatprep.subr.bf16.mxu0 0
      %1296 = vmatpush1.bf16.msra.mxu0 0
      %1297 = vmatprep.subr.bf16.mxu0 0
      %1298 = vmatpush1.bf16.msra.mxu0 0
      %1299 = vmatprep.subr.bf16.mxu0 0
      %1300 = vmatpush1.bf16.msra.mxu0 0
      %1301 = vmatprep.subr.bf16.mxu0 0
      %1302 = vmatpush1.bf16.msra.mxu0 0
      %1303 = vmatprep.subr.bf16.mxu0 0
      %1304 = vmatpush1.bf16.msra.mxu0 0
      %1305 = vmatprep.subr.bf16.mxu0 0
      %1306 = vmatpush1.bf16.msra.mxu0 0
      %1307 = vmatprep.mubr.bf16.mxu0 0
      %1308 = vmatmul.mubr.bf16.gmra.mrb[0].mxu0 %v1241
      %v1309 = vpop.f32.mrb[0].mxu0
      %v1310 = vadd.f32 0.0, %v1309
      %v1311 = vpop.f32.mrb[0].mxu0
      %v1312 = vpop.f32.mrb[0].mxu0
      %v1313 = vadd.f32 0.0, %v1312
      %v1314 = vpop.f32.mrb[0].mxu0
      %1315 = vmatprep.mubr.bf16.mxu0 0
      %1316 = vmatmul.mubr.bf16.gmra.mrb[0].mxu0 %v1244
      %v1317 = vpop.f32.mrb[0].mxu0
      %v1318 = vadd.f32 0.0, %v1317
      %v1319 = vpop.f32.mrb[0].mxu0
      %v1320 = vpop.f32.mrb[0].mxu0
      %v1321 = vadd.f32 0.0, %v1320
      %v1322 = vpop.f32.mrb[0].mxu0
      %1323 = vmatprep.mubr.bf16.mxu0 0
      %1324 = vmatmul.mubr.bf16.gmra.mrb[0].mxu0 %v1247
      %v1325 = vpop.f32.mrb[0].mxu0
      %v1326 = vadd.f32 0.0, %v1325
      %v1327 = vpop.f32.mrb[0].mxu0
      %v1328 = vpop.f32.mrb[0].mxu0
      %v1329 = vadd.f32 0.0, %v1328
      %v1330 = vpop.f32.mrb[0].mxu0
      %1331 = vmatprep.mubr.bf16.mxu0 0
      %1332 = vmatmul.mubr.bf16.gmra.mrb[0].mxu0 %v1250
      %v1333 = vpop.f32.mrb[0].mxu0
      %v1334 = vadd.f32 0.0, %v1333
      %v1335 = vpop.f32.mrb[0].mxu0
      %v1336 = vpop.f32.mrb[0].mxu0
      %v1337 = vadd.f32 0.0, %v1336
      %v1338 = vpop.f32.mrb[0].mxu0
      %1339 = vdwg.mxu0
      %v1340 = vadd.f32 %v1310, 1e-16
      %v1341 = vadd.f32 %v1313, 1e-16
      %v1342 = vadd.f32 %v1318, 1e-16
      %v1343 = vadd.f32 %v1321, 1e-16
      %v1344 = vadd.f32 %v1326, 1e-16
      %v1345 = vadd.f32 %v1329, 1e-16
      %v1346 = vadd.f32 %v1334, 1e-16
      %v1347 = vadd.f32 %v1337, 1e-16
      %v1348 = vrcp.pop %v1340
      %v1349 = vrcp.pop %v1341
      %v1350 = vrcp.pop %v1342
      %v1351 = vrcp.pop %v1343
      %v1352 = vrcp.pop %v1344
      %v1353 = vrcp.pop %v1345
      %v1354 = vrcp.pop %v1346
      %v1355 = vrcp.pop %v1347
      %1357 = vset.pattern.permute.xlu0 8
      %1358 = vperm.xlu0 %1357, %v1348
      %v1359 = vpop.permute.xlu0 %1358
      %1362 = vset.pattern.permute.xlu0 8
      %1363 = vperm.xlu0 %1362, %v1349
      %v1364 = vpop.permute.xlu0 %1363
      %1367 = vset.pattern.permute.xlu0 8
      %1368 = vperm.xlu0 %1367, %v1350
      %v1369 = vpop.permute.xlu0 %1368
      %1372 = vset.pattern.permute.xlu0 8
      %1373 = vperm.xlu0 %1372, %v1351
      %v1374 = vpop.permute.xlu0 %1373
      %1377 = vset.pattern.permute.xlu0 8
      %1378 = vperm.xlu0 %1377, %v1352
      %v1379 = vpop.permute.xlu0 %1378
      %1382 = vset.pattern.permute.xlu0 8
      %1383 = vperm.xlu0 %1382, %v1353
      %v1384 = vpop.permute.xlu0 %1383
      %1387 = vset.pattern.permute.xlu0 8
      %1388 = vperm.xlu0 %1387, %v1354
      %v1389 = vpop.permute.xlu0 %1388
      %1392 = vset.pattern.permute.xlu0 8
      %1393 = vperm.xlu0 %1392, %v1355
      %v1394 = vpop.permute.xlu0 %1393
      %v1396 = vmul.f32 %v1310, %v1359
      %v1397 = vmul.f32 %v1313, %v1364
      %v1398 = vmul.f32 %v1318, %v1369
      %v1399 = vmul.f32 %v1321, %v1374
      %v1400 = vmul.f32 %v1326, %v1379
      %v1401 = vmul.f32 %v1329, %v1384
      %v1402 = vmul.f32 %v1334, %v1389
      %v1403 = vmul.f32 %v1337, %v1394
      %v1404 = vpack.c.bf16 %v1397, %v1396
      %v1405 = vpack.c.bf16 %v1399, %v1398
      %v1406 = vpack.c.bf16 %v1401, %v1400
      %v1407 = vpack.c.bf16 %v1403, %v1402
      %v1409 = vsel %vm706, %v1404, 0
      %v1412 = vsel %vm706, %v1405, 0
      %v1415 = vsel %vm706, %v1406, 0
      %v1418 = vsel %vm706, %v1407, 0
      %v1421 = vsel %vm719, %v698, 0
      %1423 = vmatprep.subr.bf16.mxu0 0
      %1424 = vmatpush1.bf16.msra.mxu0 %v1421
      %1425 = vmatprep.subr.bf16.mxu0 0
      %1426 = vmatpush1.bf16.msra.mxu0 0
      %1427 = vmatprep.subr.bf16.mxu0 0
      %1428 = vmatpush1.bf16.msra.mxu0 0
      %1429 = vmatprep.subr.bf16.mxu0 0
      %1430 = vmatpush1.bf16.msra.mxu0 0
      %1431 = vmatprep.subr.bf16.mxu0 0
      %1432 = vmatpush1.bf16.msra.mxu0 0
      %1433 = vmatprep.subr.bf16.mxu0 0
      %1434 = vmatpush1.bf16.msra.mxu0 0
      %1435 = vmatprep.subr.bf16.mxu0 0
      %1436 = vmatpush1.bf16.msra.mxu0 0
      %1437 = vmatprep.subr.bf16.mxu0 0
      %1438 = vmatpush1.bf16.msra.mxu0 0
      %1439 = vmatprep.subr.bf16.mxu0 0
      %1440 = vmatpush1.bf16.msra.mxu0 0
      %1441 = vmatprep.subr.bf16.mxu0 0
      %1442 = vmatpush1.bf16.msra.mxu0 0
      %1443 = vmatprep.subr.bf16.mxu0 0
      %1444 = vmatpush1.bf16.msra.mxu0 0
      %1445 = vmatprep.subr.bf16.mxu0 0
      %1446 = vmatpush1.bf16.msra.mxu0 0
      %1447 = vmatprep.subr.bf16.mxu0 0
      %1448 = vmatpush1.bf16.msra.mxu0 0
      %1449 = vmatprep.subr.bf16.mxu0 0
      %1450 = vmatpush1.bf16.msra.mxu0 0
      %1451 = vmatprep.subr.bf16.mxu0 0
      %1452 = vmatpush1.bf16.msra.mxu0 0
      %1453 = vmatprep.subr.bf16.mxu0 0
      %1454 = vmatpush1.bf16.msra.mxu0 0
      %1455 = vmatprep.mubr.bf16.mxu0 0
      %1456 = vmatmul.mubr.bf16.gmra.mrb[0].mxu0 %v1409
      %v1457 = vpop.f32.mrb[0].mxu0
      %v1458 = vadd.f32 0.0, %v1457
      %v1459 = vpop.f32.mrb[0].mxu0
      %v1460 = vpop.f32.mrb[0].mxu0
      %v1461 = vadd.f32 0.0, %v1460
      %v1462 = vpop.f32.mrb[0].mxu0
      %1463 = vmatprep.mubr.bf16.mxu0 0
      %1464 = vmatmul.mubr.bf16.gmra.mrb[0].mxu0 %v1412
      %v1465 = vpop.f32.mrb[0].mxu0
      %v1466 = vadd.f32 0.0, %v1465
      %v1467 = vpop.f32.mrb[0].mxu0
      %v1468 = vpop.f32.mrb[0].mxu0
      %v1469 = vadd.f32 0.0, %v1468
      %v1470 = vpop.f32.mrb[0].mxu0
      %1471 = vmatprep.mubr.bf16.mxu0 0
      %1472 = vmatmul.mubr.bf16.gmra.mrb[0].mxu0 %v1415
      %v1473 = vpop.f32.mrb[0].mxu0
      %v1474 = vadd.f32 0.0, %v1473
      %v1475 = vpop.f32.mrb[0].mxu0
      %v1476 = vpop.f32.mrb[0].mxu0
      %v1477 = vadd.f32 0.0, %v1476
      %v1478 = vpop.f32.mrb[0].mxu0
      %1479 = vmatprep.mubr.bf16.mxu0 0
      %1480 = vmatmul.mubr.bf16.gmra.mrb[0].mxu0 %v1418
      %v1481 = vpop.f32.mrb[0].mxu0
      %v1482 = vadd.f32 0.0, %v1481
      %v1483 = vpop.f32.mrb[0].mxu0
      %v1484 = vpop.f32.mrb[0].mxu0
      %v1485 = vadd.f32 0.0, %v1484
      %v1486 = vpop.f32.mrb[0].mxu0
      %1487 = vdwg.mxu0
      %v1488 = vadd.f32 %v1103, %v1458
      %v1489 = vadd.f32 %v1104, %v1461
      %v1490 = vadd.f32 %v1105, %v1466
      %v1491 = vadd.f32 %v1106, %v1469
      %v1492 = vadd.f32 %v1107, %v1474
      %v1493 = vadd.f32 %v1108, %v1477
      %v1494 = vadd.f32 %v1109, %v1482
      %v1495 = vadd.f32 %v1110, %v1485
      %1496 = vrot.lane.b32.xlu0 %v702, 112
      %v1497 = vpop.permute.xlu0 %1496
      %1498 = vrot.lane.b32.xlu0 %v703, 112
      %v1499 = vpop.permute.xlu0 %1498
      %1500 = vrot.lane.b32.xlu0 %v704, 112
      %v1501 = vpop.permute.xlu0 %1500
      %1502 = vrot.lane.b32.xlu0 %v705, 112
      %v1503 = vpop.permute.xlu0 %1502
      %v1505 = vsel %vm706, %v1497, 0
      %v1508 = vsel %vm706, %v1499, 0
      %v1511 = vsel %vm706, %v1501, 0
      %v1514 = vsel %vm706, %v1503, 0
      %v1517 = vsel %vm719, %v679, 0
      %1519 = vmatprep.subr.bf16.mxu0 0
      %1520 = vmatpush1.bf16.msra.mxu0 %v1517
      %1521 = vmatprep.subr.bf16.mxu0 0
      %1522 = vmatpush1.bf16.msra.mxu0 0
      %1523 = vmatprep.subr.bf16.mxu0 0
      %1524 = vmatpush1.bf16.msra.mxu0 0
      %1525 = vmatprep.subr.bf16.mxu0 0
      %1526 = vmatpush1.bf16.msra.mxu0 0
      %1527 = vmatprep.subr.bf16.mxu0 0
      %1528 = vmatpush1.bf16.msra.mxu0 0
      %1529 = vmatprep.subr.bf16.mxu0 0
      %1530 = vmatpush1.bf16.msra.mxu0 0
      %1531 = vmatprep.subr.bf16.mxu0 0
      %1532 = vmatpush1.bf16.msra.mxu0 0
      %1533 = vmatprep.subr.bf16.mxu0 0
      %1534 = vmatpush1.bf16.msra.mxu0 0
      %1535 = vmatprep.subr.bf16.mxu0 0
      %1536 = vmatpush1.bf16.msra.mxu0 0
      %1537 = vmatprep.subr.bf16.mxu0 0
      %1538 = vmatpush1.bf16.msra.mxu0 0
      %1539 = vmatprep.subr.bf16.mxu0 0
      %1540 = vmatpush1.bf16.msra.mxu0 0
      %1541 = vmatprep.subr.bf16.mxu0 0
      %1542 = vmatpush1.bf16.msra.mxu0 0
      %1543 = vmatprep.subr.bf16.mxu0 0
      %1544 = vmatpush1.bf16.msra.mxu0 0
      %1545 = vmatprep.subr.bf16.mxu0 0
      %1546 = vmatpush1.bf16.msra.mxu0 0
      %1547 = vmatprep.subr.bf16.mxu0 0
      %1548 = vmatpush1.bf16.msra.mxu0 0
      %1549 = vmatprep.subr.bf16.mxu0 0
      %1550 = vmatpush1.bf16.msra.mxu0 0
      %1551 = vmatprep.mubr.bf16.mxu0 0
      %1552 = vmatmul.mubr.bf16.gmra.mrb[0].mxu0 %v1505
      %v1553 = vpop.f32.mrb[0].mxu0
      %v1554 = vadd.f32 %v564, %v1553
      %v1555 = vpop.f32.mrb[0].mxu0
      %v1556 = vpop.f32.mrb[0].mxu0
      %v1557 = vadd.f32 %v565, %v1556
      %v1558 = vpop.f32.mrb[0].mxu0
      %1559 = vmatprep.mubr.bf16.mxu0 0
      %1560 = vmatmul.mubr.bf16.gmra.mrb[0].mxu0 %v1508
      %v1561 = vpop.f32.mrb[0].mxu0
      %v1562 = vadd.f32 %v566, %v1561
      %v1563 = vpop.f32.mrb[0].mxu0
      %v1564 = vpop.f32.mrb[0].mxu0
      %v1565 = vadd.f32 %v567, %v1564
      %v1566 = vpop.f32.mrb[0].mxu0
      %1567 = vmatprep.mubr.bf16.mxu0 0
      %1568 = vmatmul.mubr.bf16.gmra.mrb[0].mxu0 %v1511
      %v1569 = vpop.f32.mrb[0].mxu0
      %v1570 = vadd.f32 %v568, %v1569
      %v1571 = vpop.f32.mrb[0].mxu0
      %v1572 = vpop.f32.mrb[0].mxu0
      %v1573 = vadd.f32 %v569, %v1572
      %v1574 = vpop.f32.mrb[0].mxu0
      %1575 = vmatprep.mubr.bf16.mxu0 0
      %1576 = vmatmul.mubr.bf16.gmra.mrb[0].mxu0 %v1514
      %v1577 = vpop.f32.mrb[0].mxu0
      %v1578 = vadd.f32 %v570, %v1577
      %v1579 = vpop.f32.mrb[0].mxu0
      %v1580 = vpop.f32.mrb[0].mxu0
      %v1581 = vadd.f32 %v571, %v1580
      %v1582 = vpop.f32.mrb[0].mxu0
      %1583 = vdwg.mxu0
      %1584 = vmax.xlane.f32.xlu0 %v1554
      %v1585 = vpop.xlane.xlu0 %1584
      %1586 = vmax.xlane.f32.xlu0 %v1557
      %v1587 = vpop.xlane.xlu0 %1586
      %1588 = vmax.xlane.f32.xlu0 %v1562
      %v1589 = vpop.xlane.xlu0 %1588
      %1590 = vmax.xlane.f32.xlu0 %v1565
      %v1591 = vpop.xlane.xlu0 %1590
      %1592 = vmax.xlane.f32.xlu0 %v1570
      %v1593 = vpop.xlane.xlu0 %1592
      %1594 = vmax.xlane.f32.xlu0 %v1573
      %v1595 = vpop.xlane.xlu0 %1594
      %1596 = vmax.xlane.f32.xlu0 %v1578
      %v1597 = vpop.xlane.xlu0 %1596
      %1598 = vmax.xlane.f32.xlu0 %v1581
      %v1599 = vpop.xlane.xlu0 %1598
      %v1600 = vmax.f32 %v1585, -1e+29
      %v1601 = vmax.f32 %v1587, -1e+29
      %v1602 = vmax.f32 %v1589, -1e+29
      %v1603 = vmax.f32 %v1591, -1e+29
      %v1604 = vmax.f32 %v1593, -1e+29
      %v1605 = vmax.f32 %v1595, -1e+29
      %v1606 = vmax.f32 %v1597, -1e+29
      %v1607 = vmax.f32 %v1599, -1e+29
      %v1608 = vsub.f32 %v1554, %v1600
      %v1609 = vsub.f32 %v1557, %v1601
      %v1610 = vsub.f32 %v1562, %v1602
      %v1611 = vsub.f32 %v1565, %v1603
      %v1612 = vsub.f32 %v1570, %v1604
      %v1613 = vsub.f32 %v1573, %v1605
      %v1614 = vsub.f32 %v1578, %v1606
      %v1615 = vsub.f32 %v1581, %v1607
      %v1616 = vpack.c.bf16 %v1609, %v1608
      %v1617 = vpack.c.bf16 %v1611, %v1610
      %v1618 = vpack.c.bf16 %v1613, %v1612
      %v1619 = vpack.c.bf16 %v1615, %v1614
      %v1621 = vmul.bf16 %v1616, 1069105081
      %v1622 = vpow.bf16.pop %v1621
      %v1624 = vmul.bf16 %v1617, 1069105081
      %v1625 = vpow.bf16.pop %v1624
      %v1627 = vmul.bf16 %v1618, 1069105081
      %v1628 = vpow.bf16.pop %v1627
      %v1630 = vmul.bf16 %v1619, 1069105081
      %v1631 = vpow.bf16.pop %v1630
      %1632 = vrot.lane.b32.xlu0 %v868, 96
      %v1633 = vpop.permute.xlu0 %1632
      %1634 = vrot.lane.b32.xlu0 %v869, 96
      %v1635 = vpop.permute.xlu0 %1634
      %1636 = vrot.lane.b32.xlu0 %v870, 96
      %v1637 = vpop.permute.xlu0 %1636
      %1638 = vrot.lane.b32.xlu0 %v871, 96
      %v1639 = vpop.permute.xlu0 %1638
      %1640 = vrot.lane.b32.xlu0 %v872, 96
      %v1641 = vpop.permute.xlu0 %1640
      %1642 = vrot.lane.b32.xlu0 %v873, 96
      %v1643 = vpop.permute.xlu0 %1642
      %1644 = vrot.lane.b32.xlu0 %v874, 96
      %v1645 = vpop.permute.xlu0 %1644
      %1646 = vrot.lane.b32.xlu0 %v875, 96
      %v1647 = vpop.permute.xlu0 %1646
      %1656 = vmatprep.subr.bf16.mxu0 0
      %1657 = vmatpush1.bf16.msra.mxu0 %v1633
      %1658 = vmatprep.subr.bf16.mxu0 0
      %1659 = vmatpush1.bf16.msra.mxu0 %v1635
      %1660 = vmatprep.subr.bf16.mxu0 0
      %1661 = vmatpush1.bf16.msra.mxu0 %v1637
      %1662 = vmatprep.subr.bf16.mxu0 0
      %1663 = vmatpush1.bf16.msra.mxu0 %v1639
      %1664 = vmatprep.subr.bf16.mxu0 0
      %1665 = vmatpush1.bf16.msra.mxu0 %v1641
      %1666 = vmatprep.subr.bf16.mxu0 0
      %1667 = vmatpush1.bf16.msra.mxu0 %v1643
      %1668 = vmatprep.subr.bf16.mxu0 0
      %1669 = vmatpush1.bf16.msra.mxu0 %v1645
      %1670 = vmatprep.subr.bf16.mxu0 0
      %1671 = vmatpush1.bf16.msra.mxu0 %v1647
      %1672 = vmatprep.subr.bf16.mxu0 0
      %1673 = vmatpush1.bf16.msra.mxu0 0
      %1674 = vmatprep.subr.bf16.mxu0 0
      %1675 = vmatpush1.bf16.msra.mxu0 0
      %1676 = vmatprep.subr.bf16.mxu0 0
      %1677 = vmatpush1.bf16.msra.mxu0 0
      %1678 = vmatprep.subr.bf16.mxu0 0
      %1679 = vmatpush1.bf16.msra.mxu0 0
      %1680 = vmatprep.subr.bf16.mxu0 0
      %1681 = vmatpush1.bf16.msra.mxu0 0
      %1682 = vmatprep.subr.bf16.mxu0 0
      %1683 = vmatpush1.bf16.msra.mxu0 0
      %1684 = vmatprep.subr.bf16.mxu0 0
      %1685 = vmatpush1.bf16.msra.mxu0 0
      %1686 = vmatprep.subr.bf16.mxu0 0
      %1687 = vmatpush1.bf16.msra.mxu0 0
      %1688 = vmatprep.mubr.bf16.mxu0 0
      %1689 = vmatmul.mubr.bf16.gmra.mrb[0].mxu0 %v1622
      %v1690 = vpop.f32.mrb[0].mxu0
      %v1691 = vadd.f32 0.0, %v1690
      %v1692 = vpop.f32.mrb[0].mxu0
      %v1693 = vpop.f32.mrb[0].mxu0
      %v1694 = vadd.f32 0.0, %v1693
      %v1695 = vpop.f32.mrb[0].mxu0
      %1696 = vmatprep.mubr.bf16.mxu0 0
      %1697 = vmatmul.mubr.bf16.gmra.mrb[0].mxu0 %v1625
      %v1698 = vpop.f32.mrb[0].mxu0
      %v1699 = vadd.f32 0.0, %v1698
      %v1700 = vpop.f32.mrb[0].mxu0
      %v1701 = vpop.f32.mrb[0].mxu0
      %v1702 = vadd.f32 0.0, %v1701
      %v1703 = vpop.f32.mrb[0].mxu0
      %1704 = vmatprep.mubr.bf16.mxu0 0
      %1705 = vmatmul.mubr.bf16.gmra.mrb[0].mxu0 %v1628
      %v1706 = vpop.f32.mrb[0].mxu0
      %v1707 = vadd.f32 0.0, %v1706
      %v1708 = vpop.f32.mrb[0].mxu0
      %v1709 = vpop.f32.mrb[0].mxu0
      %v1710 = vadd.f32 0.0, %v1709
      %v1711 = vpop.f32.mrb[0].mxu0
      %1712 = vmatprep.mubr.bf16.mxu0 0
      %1713 = vmatmul.mubr.bf16.gmra.mrb[0].mxu0 %v1631
      %v1714 = vpop.f32.mrb[0].mxu0
      %v1715 = vadd.f32 0.0, %v1714
      %v1716 = vpop.f32.mrb[0].mxu0
      %v1717 = vpop.f32.mrb[0].mxu0
      %v1718 = vadd.f32 0.0, %v1717
      %v1719 = vpop.f32.mrb[0].mxu0
      %1720 = vdwg.mxu0
      %v1721 = vadd.f32 %v1691, 1e-16
      %v1722 = vadd.f32 %v1694, 1e-16
      %v1723 = vadd.f32 %v1699, 1e-16
      %v1724 = vadd.f32 %v1702, 1e-16
      %v1725 = vadd.f32 %v1707, 1e-16
      %v1726 = vadd.f32 %v1710, 1e-16
      %v1727 = vadd.f32 %v1715, 1e-16
      %v1728 = vadd.f32 %v1718, 1e-16
      %v1729 = vrcp.pop %v1721
      %v1730 = vrcp.pop %v1722
      %v1731 = vrcp.pop %v1723
      %v1732 = vrcp.pop %v1724
      %v1733 = vrcp.pop %v1725
      %v1734 = vrcp.pop %v1726
      %v1735 = vrcp.pop %v1727
      %v1736 = vrcp.pop %v1728
      %1738 = vset.pattern.permute.xlu0 8
      %1739 = vperm.xlu0 %1738, %v1729
      %v1740 = vpop.permute.xlu0 %1739
      %1743 = vset.pattern.permute.xlu0 8
      %1744 = vperm.xlu0 %1743, %v1730
      %v1745 = vpop.permute.xlu0 %1744
      %1748 = vset.pattern.permute.xlu0 8
      %1749 = vperm.xlu0 %1748, %v1731
      %v1750 = vpop.permute.xlu0 %1749
      %1753 = vset.pattern.permute.xlu0 8
      %1754 = vperm.xlu0 %1753, %v1732
      %v1755 = vpop.permute.xlu0 %1754
      %1758 = vset.pattern.permute.xlu0 8
      %1759 = vperm.xlu0 %1758, %v1733
      %v1760 = vpop.permute.xlu0 %1759
      %1763 = vset.pattern.permute.xlu0 8
      %1764 = vperm.xlu0 %1763, %v1734
      %v1765 = vpop.permute.xlu0 %1764
      %1768 = vset.pattern.permute.xlu0 8
      %1769 = vperm.xlu0 %1768, %v1735
      %v1770 = vpop.permute.xlu0 %1769
      %1773 = vset.pattern.permute.xlu0 8
      %1774 = vperm.xlu0 %1773, %v1736
      %v1775 = vpop.permute.xlu0 %1774
      %v1777 = vmul.f32 %v1691, %v1740
      %v1778 = vmul.f32 %v1694, %v1745
      %v1779 = vmul.f32 %v1699, %v1750
      %v1780 = vmul.f32 %v1702, %v1755
      %v1781 = vmul.f32 %v1707, %v1760
      %v1782 = vmul.f32 %v1710, %v1765
      %v1783 = vmul.f32 %v1715, %v1770
      %v1784 = vmul.f32 %v1718, %v1775
      %v1785 = vpack.c.bf16 %v1778, %v1777
      %v1786 = vpack.c.bf16 %v1780, %v1779
      %v1787 = vpack.c.bf16 %v1782, %v1781
      %v1788 = vpack.c.bf16 %v1784, %v1783
      %v1790 = vsel %vm706, %v1785, 0
      %v1793 = vsel %vm706, %v1786, 0
      %v1796 = vsel %vm706, %v1787, 0
      %v1799 = vsel %vm706, %v1788, 0
      %v1802 = vsel %vm719, %v699, 0
      %1804 = vmatprep.subr.bf16.mxu0 0
      %1805 = vmatpush1.bf16.msra.mxu0 %v1802
      %1806 = vmatprep.subr.bf16.mxu0 0
      %1807 = vmatpush1.bf16.msra.mxu0 0
      %1808 = vmatprep.subr.bf16.mxu0 0
      %1809 = vmatpush1.bf16.msra.mxu0 0
      %1810 = vmatprep.subr.bf16.mxu0 0
      %1811 = vmatpush1.bf16.msra.mxu0 0
      %1812 = vmatprep.subr.bf16.mxu0 0
      %1813 = vmatpush1.bf16.msra.mxu0 0
      %1814 = vmatprep.subr.bf16.mxu0 0
      %1815 = vmatpush1.bf16.msra.mxu0 0
      %1816 = vmatprep.subr.bf16.mxu0 0
      %1817 = vmatpush1.bf16.msra.mxu0 0
      %1818 = vmatprep.subr.bf16.mxu0 0
      %1819 = vmatpush1.bf16.msra.mxu0 0
      %1820 = vmatprep.subr.bf16.mxu0 0
      %1821 = vmatpush1.bf16.msra.mxu0 0
      %1822 = vmatprep.subr.bf16.mxu0 0
      %1823 = vmatpush1.bf16.msra.mxu0 0
      %1824 = vmatprep.subr.bf16.mxu0 0
      %1825 = vmatpush1.bf16.msra.mxu0 0
      %1826 = vmatprep.subr.bf16.mxu0 0
      %1827 = vmatpush1.bf16.msra.mxu0 0
      %1828 = vmatprep.subr.bf16.mxu0 0
      %1829 = vmatpush1.bf16.msra.mxu0 0
      %1830 = vmatprep.subr.bf16.mxu0 0
      %1831 = vmatpush1.bf16.msra.mxu0 0
      %1832 = vmatprep.subr.bf16.mxu0 0
      %1833 = vmatpush1.bf16.msra.mxu0 0
      %1834 = vmatprep.subr.bf16.mxu0 0
      %1835 = vmatpush1.bf16.msra.mxu0 0
      %1836 = vmatprep.mubr.bf16.mxu0 0
      %1837 = vmatmul.mubr.bf16.gmra.mrb[0].mxu0 %v1790
      %v1838 = vpop.f32.mrb[0].mxu0
      %v1839 = vadd.f32 0.0, %v1838
      %v1840 = vpop.f32.mrb[0].mxu0
      %v1841 = vpop.f32.mrb[0].mxu0
      %v1842 = vadd.f32 0.0, %v1841
      %v1843 = vpop.f32.mrb[0].mxu0
      %1844 = vmatprep.mubr.bf16.mxu0 0
      %1845 = vmatmul.mubr.bf16.gmra.mrb[0].mxu0 %v1793
      %v1846 = vpop.f32.mrb[0].mxu0
      %v1847 = vadd.f32 0.0, %v1846
      %v1848 = vpop.f32.mrb[0].mxu0
      %v1849 = vpop.f32.mrb[0].mxu0
      %v1850 = vadd.f32 0.0, %v1849
      %v1851 = vpop.f32.mrb[0].mxu0
      %1852 = vmatprep.mubr.bf16.mxu0 0
      %1853 = vmatmul.mubr.bf16.gmra.mrb[0].mxu0 %v1796
      %v1854 = vpop.f32.mrb[0].mxu0
      %v1855 = vadd.f32 0.0, %v1854
      %v1856 = vpop.f32.mrb[0].mxu0
      %v1857 = vpop.f32.mrb[0].mxu0
      %v1858 = vadd.f32 0.0, %v1857
      %v1859 = vpop.f32.mrb[0].mxu0
      %1860 = vmatprep.mubr.bf16.mxu0 0
      %1861 = vmatmul.mubr.bf16.gmra.mrb[0].mxu0 %v1799
      %v1862 = vpop.f32.mrb[0].mxu0
      %v1863 = vadd.f32 0.0, %v1862
      %v1864 = vpop.f32.mrb[0].mxu0
      %v1865 = vpop.f32.mrb[0].mxu0
      %v1866 = vadd.f32 0.0, %v1865
      %v1867 = vpop.f32.mrb[0].mxu0
      %1868 = vdwg.mxu0
      %v1869 = vadd.f32 %v1488, %v1839
      %v1870 = vadd.f32 %v1489, %v1842
      %v1871 = vadd.f32 %v1490, %v1847
      %v1872 = vadd.f32 %v1491, %v1850
      %v1873 = vadd.f32 %v1492, %v1855
      %v1874 = vadd.f32 %v1493, %v1858
      %v1875 = vadd.f32 %v1494, %v1863
      %v1876 = vadd.f32 %v1495, %v1866
      %1877 = vrot.lane.b32.xlu0 %v702, 104
      %v1878 = vpop.permute.xlu0 %1877
      %1879 = vrot.lane.b32.xlu0 %v703, 104
      %v1880 = vpop.permute.xlu0 %1879
      %1881 = vrot.lane.b32.xlu0 %v704, 104
      %v1882 = vpop.permute.xlu0 %1881
      %1883 = vrot.lane.b32.xlu0 %v705, 104
      %v1884 = vpop.permute.xlu0 %1883
      %v1886 = vsel %vm706, %v1878, 0
      %v1889 = vsel %vm706, %v1880, 0
      %v1892 = vsel %vm706, %v1882, 0
      %v1895 = vsel %vm706, %v1884, 0
      %v1898 = vsel %vm719, %v680, 0
      %1900 = vmatprep.subr.bf16.mxu0 0
      %1901 = vmatpush1.bf16.msra.mxu0 %v1898
      %1902 = vmatprep.subr.bf16.mxu0 0
      %1903 = vmatpush1.bf16.msra.mxu0 0
      %1904 = vmatprep.subr.bf16.mxu0 0
      %1905 = vmatpush1.bf16.msra.mxu0 0
      %1906 = vmatprep.subr.bf16.mxu0 0
      %1907 = vmatpush1.bf16.msra.mxu0 0
      %1908 = vmatprep.subr.bf16.mxu0 0
      %1909 = vmatpush1.bf16.msra.mxu0 0
      %1910 = vmatprep.subr.bf16.mxu0 0
      %1911 = vmatpush1.bf16.msra.mxu0 0
      %1912 = vmatprep.subr.bf16.mxu0 0
      %1913 = vmatpush1.bf16.msra.mxu0 0
      %1914 = vmatprep.subr.bf16.mxu0 0
      %1915 = vmatpush1.bf16.msra.mxu0 0
      %1916 = vmatprep.subr.bf16.mxu0 0
      %1917 = vmatpush1.bf16.msra.mxu0 0
      %1918 = vmatprep.subr.bf16.mxu0 0
      %1919 = vmatpush1.bf16.msra.mxu0 0
      %1920 = vmatprep.subr.bf16.mxu0 0
      %1921 = vmatpush1.bf16.msra.mxu0 0
      %1922 = vmatprep.subr.bf16.mxu0 0
      %1923 = vmatpush1.bf16.msra.mxu0 0
      %1924 = vmatprep.subr.bf16.mxu0 0
      %1925 = vmatpush1.bf16.msra.mxu0 0
      %1926 = vmatprep.subr.bf16.mxu0 0
      %1927 = vmatpush1.bf16.msra.mxu0 0
      %1928 = vmatprep.subr.bf16.mxu0 0
      %1929 = vmatpush1.bf16.msra.mxu0 0
      %1930 = vmatprep.subr.bf16.mxu0 0
      %1931 = vmatpush1.bf16.msra.mxu0 0
      %1932 = vmatprep.mubr.bf16.mxu0 0
      %1933 = vmatmul.mubr.bf16.gmra.mrb[0].mxu0 %v1886
      %v1934 = vpop.f32.mrb[0].mxu0
      %v1935 = vadd.f32 %v564, %v1934
      %v1936 = vpop.f32.mrb[0].mxu0
      %v1937 = vpop.f32.mrb[0].mxu0
      %v1938 = vadd.f32 %v565, %v1937
      %v1939 = vpop.f32.mrb[0].mxu0
      %1940 = vmatprep.mubr.bf16.mxu0 0
      %1941 = vmatmul.mubr.bf16.gmra.mrb[0].mxu0 %v1889
      %v1942 = vpop.f32.mrb[0].mxu0
      %v1943 = vadd.f32 %v566, %v1942
      %v1944 = vpop.f32.mrb[0].mxu0
      %v1945 = vpop.f32.mrb[0].mxu0
      %v1946 = vadd.f32 %v567, %v1945
      %v1947 = vpop.f32.mrb[0].mxu0
      %1948 = vmatprep.mubr.bf16.mxu0 0
      %1949 = vmatmul.mubr.bf16.gmra.mrb[0].mxu0 %v1892
      %v1950 = vpop.f32.mrb[0].mxu0
      %v1951 = vadd.f32 %v568, %v1950
      %v1952 = vpop.f32.mrb[0].mxu0
      %v1953 = vpop.f32.mrb[0].mxu0
      %v1954 = vadd.f32 %v569, %v1953
      %v1955 = vpop.f32.mrb[0].mxu0
      %1956 = vmatprep.mubr.bf16.mxu0 0
      %1957 = vmatmul.mubr.bf16.gmra.mrb[0].mxu0 %v1895
      %v1958 = vpop.f32.mrb[0].mxu0
      %v1959 = vadd.f32 %v570, %v1958
      %v1960 = vpop.f32.mrb[0].mxu0
      %v1961 = vpop.f32.mrb[0].mxu0
      %v1962 = vadd.f32 %v571, %v1961
      %v1963 = vpop.f32.mrb[0].mxu0
      %1964 = vdwg.mxu0
      %1965 = vmax.xlane.f32.xlu0 %v1935
      %v1966 = vpop.xlane.xlu0 %1965
      %1967 = vmax.xlane.f32.xlu0 %v1938
      %v1968 = vpop.xlane.xlu0 %1967
      %1969 = vmax.xlane.f32.xlu0 %v1943
      %v1970 = vpop.xlane.xlu0 %1969
      %1971 = vmax.xlane.f32.xlu0 %v1946
      %v1972 = vpop.xlane.xlu0 %1971
      %1973 = vmax.xlane.f32.xlu0 %v1951
      %v1974 = vpop.xlane.xlu0 %1973
      %1975 = vmax.xlane.f32.xlu0 %v1954
      %v1976 = vpop.xlane.xlu0 %1975
      %1977 = vmax.xlane.f32.xlu0 %v1959
      %v1978 = vpop.xlane.xlu0 %1977
      %1979 = vmax.xlane.f32.xlu0 %v1962
      %v1980 = vpop.xlane.xlu0 %1979
      %v1981 = vmax.f32 %v1966, -1e+29
      %v1982 = vmax.f32 %v1968, -1e+29
      %v1983 = vmax.f32 %v1970, -1e+29
      %v1984 = vmax.f32 %v1972, -1e+29
      %v1985 = vmax.f32 %v1974, -1e+29
      %v1986 = vmax.f32 %v1976, -1e+29
      %v1987 = vmax.f32 %v1978, -1e+29
      %v1988 = vmax.f32 %v1980, -1e+29
      %v1989 = vsub.f32 %v1935, %v1981
      %v1990 = vsub.f32 %v1938, %v1982
      %v1991 = vsub.f32 %v1943, %v1983
      %v1992 = vsub.f32 %v1946, %v1984
      %v1993 = vsub.f32 %v1951, %v1985
      %v1994 = vsub.f32 %v1954, %v1986
      %v1995 = vsub.f32 %v1959, %v1987
      %v1996 = vsub.f32 %v1962, %v1988
      %v1997 = vpack.c.bf16 %v1990, %v1989
      %v1998 = vpack.c.bf16 %v1992, %v1991
      %v1999 = vpack.c.bf16 %v1994, %v1993
      %v2000 = vpack.c.bf16 %v1996, %v1995
      %v2002 = vmul.bf16 %v1997, 1069105081
      %v2003 = vpow.bf16.pop %v2002
      %v2005 = vmul.bf16 %v1998, 1069105081
      %v2006 = vpow.bf16.pop %v2005
      %v2008 = vmul.bf16 %v1999, 1069105081
      %v2009 = vpow.bf16.pop %v2008
      %v2011 = vmul.bf16 %v2000, 1069105081
      %v2012 = vpow.bf16.pop %v2011
      %2013 = vrot.lane.b32.xlu0 %v868, 80
      %v2014 = vpop.permute.xlu0 %2013
      %2015 = vrot.lane.b32.xlu0 %v869, 80
      %v2016 = vpop.permute.xlu0 %2015
      %2017 = vrot.lane.b32.xlu0 %v870, 80
      %v2018 = vpop.permute.xlu0 %2017
      %2019 = vrot.lane.b32.xlu0 %v871, 80
      %v2020 = vpop.permute.xlu0 %2019
      %2021 = vrot.lane.b32.xlu0 %v872, 80
      %v2022 = vpop.permute.xlu0 %2021
      %2023 = vrot.lane.b32.xlu0 %v873, 80
      %v2024 = vpop.permute.xlu0 %2023
      %2025 = vrot.lane.b32.xlu0 %v874, 80
      %v2026 = vpop.permute.xlu0 %2025
      %2027 = vrot.lane.b32.xlu0 %v875, 80
      %v2028 = vpop.permute.xlu0 %2027
      %2037 = vmatprep.subr.bf16.mxu0 0
      %2038 = vmatpush1.bf16.msra.mxu0 %v2014
      %2039 = vmatprep.subr.bf16.mxu0 0
      %2040 = vmatpush1.bf16.msra.mxu0 %v2016
      %2041 = vmatprep.subr.bf16.mxu0 0
      %2042 = vmatpush1.bf16.msra.mxu0 %v2018
      %2043 = vmatprep.subr.bf16.mxu0 0
      %2044 = vmatpush1.bf16.msra.mxu0 %v2020
      %2045 = vmatprep.subr.bf16.mxu0 0
      %2046 = vmatpush1.bf16.msra.mxu0 %v2022
      %2047 = vmatprep.subr.bf16.mxu0 0
      %2048 = vmatpush1.bf16.msra.mxu0 %v2024
      %2049 = vmatprep.subr.bf16.mxu0 0
      %2050 = vmatpush1.bf16.msra.mxu0 %v2026
      %2051 = vmatprep.subr.bf16.mxu0 0
      %2052 = vmatpush1.bf16.msra.mxu0 %v2028
      %2053 = vmatprep.subr.bf16.mxu0 0
      %2054 = vmatpush1.bf16.msra.mxu0 0
      %2055 = vmatprep.subr.bf16.mxu0 0
      %2056 = vmatpush1.bf16.msra.mxu0 0
      %2057 = vmatprep.subr.bf16.mxu0 0
      %2058 = vmatpush1.bf16.msra.mxu0 0
      %2059 = vmatprep.subr.bf16.mxu0 0
      %2060 = vmatpush1.bf16.msra.mxu0 0
      %2061 = vmatprep.subr.bf16.mxu0 0
      %2062 = vmatpush1.bf16.msra.mxu0 0
      %2063 = vmatprep.subr.bf16.mxu0 0
      %2064 = vmatpush1.bf16.msra.mxu0 0
      %2065 = vmatprep.subr.bf16.mxu0 0
      %2066 = vmatpush1.bf16.msra.mxu0 0
      %2067 = vmatprep.subr.bf16.mxu0 0
      %2068 = vmatpush1.bf16.msra.mxu0 0
      %2069 = vmatprep.mubr.bf16.mxu0 0
      %2070 = vmatmul.mubr.bf16.gmra.mrb[0].mxu0 %v2003
      %v2071 = vpop.f32.mrb[0].mxu0
      %v2072 = vadd.f32 0.0, %v2071
      %v2073 = vpop.f32.mrb[0].mxu0
      %v2074 = vpop.f32.mrb[0].mxu0
      %v2075 = vadd.f32 0.0, %v2074
      %v2076 = vpop.f32.mrb[0].mxu0
      %2077 = vmatprep.mubr.bf16.mxu0 0
      %2078 = vmatmul.mubr.bf16.gmra.mrb[0].mxu0 %v2006
      %v2079 = vpop.f32.mrb[0].mxu0
      %v2080 = vadd.f32 0.0, %v2079
      %v2081 = vpop.f32.mrb[0].mxu0
      %v2082 = vpop.f32.mrb[0].mxu0
      %v2083 = vadd.f32 0.0, %v2082
      %v2084 = vpop.f32.mrb[0].mxu0
      %2085 = vmatprep.mubr.bf16.mxu0 0
      %2086 = vmatmul.mubr.bf16.gmra.mrb[0].mxu0 %v2009
      %v2087 = vpop.f32.mrb[0].mxu0
      %v2088 = vadd.f32 0.0, %v2087
      %v2089 = vpop.f32.mrb[0].mxu0
      %v2090 = vpop.f32.mrb[0].mxu0
      %v2091 = vadd.f32 0.0, %v2090
      %v2092 = vpop.f32.mrb[0].mxu0
      %2093 = vmatprep.mubr.bf16.mxu0 0
      %2094 = vmatmul.mubr.bf16.gmra.mrb[0].mxu0 %v2012
      %v2095 = vpop.f32.mrb[0].mxu0
      %v2096 = vadd.f32 0.0, %v2095
      %v2097 = vpop.f32.mrb[0].mxu0
      %v2098 = vpop.f32.mrb[0].mxu0
      %v2099 = vadd.f32 0.0, %v2098
      %v2100 = vpop.f32.mrb[0].mxu0
      %2101 = vdwg.mxu0
      %v2102 = vadd.f32 %v2072, 1e-16
      %v2103 = vadd.f32 %v2075, 1e-16
      %v2104 = vadd.f32 %v2080, 1e-16
      %v2105 = vadd.f32 %v2083, 1e-16
      %v2106 = vadd.f32 %v2088, 1e-16
      %v2107 = vadd.f32 %v2091, 1e-16
      %v2108 = vadd.f32 %v2096, 1e-16
      %v2109 = vadd.f32 %v2099, 1e-16
      %v2110 = vrcp.pop %v2102
      %v2111 = vrcp.pop %v2103
      %v2112 = vrcp.pop %v2104
      %v2113 = vrcp.pop %v2105
      %v2114 = vrcp.pop %v2106
      %v2115 = vrcp.pop %v2107
      %v2116 = vrcp.pop %v2108
      %v2117 = vrcp.pop %v2109
      %2119 = vset.pattern.permute.xlu0 8
      %2120 = vperm.xlu0 %2119, %v2110
      %v2121 = vpop.permute.xlu0 %2120
      %2124 = vset.pattern.permute.xlu0 8
      %2125 = vperm.xlu0 %2124, %v2111
      %v2126 = vpop.permute.xlu0 %2125
      %2129 = vset.pattern.permute.xlu0 8
      %2130 = vperm.xlu0 %2129, %v2112
      %v2131 = vpop.permute.xlu0 %2130
      %2134 = vset.pattern.permute.xlu0 8
      %2135 = vperm.xlu0 %2134, %v2113
      %v2136 = vpop.permute.xlu0 %2135
      %2139 = vset.pattern.permute.xlu0 8
      %2140 = vperm.xlu0 %2139, %v2114
      %v2141 = vpop.permute.xlu0 %2140
      %2144 = vset.pattern.permute.xlu0 8
      %2145 = vperm.xlu0 %2144, %v2115
      %v2146 = vpop.permute.xlu0 %2145
      %2149 = vset.pattern.permute.xlu0 8
      %2150 = vperm.xlu0 %2149, %v2116
      %v2151 = vpop.permute.xlu0 %2150
      %2154 = vset.pattern.permute.xlu0 8
      %2155 = vperm.xlu0 %2154, %v2117
      %v2156 = vpop.permute.xlu0 %2155
      %v2158 = vmul.f32 %v2072, %v2121
      %v2159 = vmul.f32 %v2075, %v2126
      %v2160 = vmul.f32 %v2080, %v2131
      %v2161 = vmul.f32 %v2083, %v2136
      %v2162 = vmul.f32 %v2088, %v2141
      %v2163 = vmul.f32 %v2091, %v2146
      %v2164 = vmul.f32 %v2096, %v2151
      %v2165 = vmul.f32 %v2099, %v2156
      %v2166 = vpack.c.bf16 %v2159, %v2158
      %v2167 = vpack.c.bf16 %v2161, %v2160
      %v2168 = vpack.c.bf16 %v2163, %v2162
      %v2169 = vpack.c.bf16 %v2165, %v2164
      %v2171 = vsel %vm706, %v2166, 0
      %v2174 = vsel %vm706, %v2167, 0
      %v2177 = vsel %vm706, %v2168, 0
      %v2180 = vsel %vm706, %v2169, 0
      %v2183 = vsel %vm719, %v700, 0
      %2185 = vmatprep.subr.bf16.mxu0 0
      %2186 = vmatpush1.bf16.msra.mxu0 %v2183
      %2187 = vmatprep.subr.bf16.mxu0 0
      %2188 = vmatpush1.bf16.msra.mxu0 0
      %2189 = vmatprep.subr.bf16.mxu0 0
      %2190 = vmatpush1.bf16.msra.mxu0 0
      %2191 = vmatprep.subr.bf16.mxu0 0
      %2192 = vmatpush1.bf16.msra.mxu0 0
      %2193 = vmatprep.subr.bf16.mxu0 0
      %2194 = vmatpush1.bf16.msra.mxu0 0
      %2195 = vmatprep.subr.bf16.mxu0 0
      %2196 = vmatpush1.bf16.msra.mxu0 0
      %2197 = vmatprep.subr.bf16.mxu0 0
      %2198 = vmatpush1.bf16.msra.mxu0 0
      %2199 = vmatprep.subr.bf16.mxu0 0
      %2200 = vmatpush1.bf16.msra.mxu0 0
      %2201 = vmatprep.subr.bf16.mxu0 0
      %2202 = vmatpush1.bf16.msra.mxu0 0
      %2203 = vmatprep.subr.bf16.mxu0 0
      %2204 = vmatpush1.bf16.msra.mxu0 0
      %2205 = vmatprep.subr.bf16.mxu0 0
      %2206 = vmatpush1.bf16.msra.mxu0 0
      %2207 = vmatprep.subr.bf16.mxu0 0
      %2208 = vmatpush1.bf16.msra.mxu0 0
      %2209 = vmatprep.subr.bf16.mxu0 0
      %2210 = vmatpush1.bf16.msra.mxu0 0
      %2211 = vmatprep.subr.bf16.mxu0 0
      %2212 = vmatpush1.bf16.msra.mxu0 0
      %2213 = vmatprep.subr.bf16.mxu0 0
      %2214 = vmatpush1.bf16.msra.mxu0 0
      %2215 = vmatprep.subr.bf16.mxu0 0
      %2216 = vmatpush1.bf16.msra.mxu0 0
      %2217 = vmatprep.mubr.bf16.mxu0 0
      %2218 = vmatmul.mubr.bf16.gmra.mrb[0].mxu0 %v2171
      %v2219 = vpop.f32.mrb[0].mxu0
      %v2220 = vadd.f32 0.0, %v2219
      %v2221 = vpop.f32.mrb[0].mxu0
      %v2222 = vpop.f32.mrb[0].mxu0
      %v2223 = vadd.f32 0.0, %v2222
      %v2224 = vpop.f32.mrb[0].mxu0
      %2225 = vmatprep.mubr.bf16.mxu0 0
      %2226 = vmatmul.mubr.bf16.gmra.mrb[0].mxu0 %v2174
      %v2227 = vpop.f32.mrb[0].mxu0
      %v2228 = vadd.f32 0.0, %v2227
      %v2229 = vpop.f32.mrb[0].mxu0
      %v2230 = vpop.f32.mrb[0].mxu0
      %v2231 = vadd.f32 0.0, %v2230
      %v2232 = vpop.f32.mrb[0].mxu0
      %2233 = vmatprep.mubr.bf16.mxu0 0
      %2234 = vmatmul.mubr.bf16.gmra.mrb[0].mxu0 %v2177
      %v2235 = vpop.f32.mrb[0].mxu0
      %v2236 = vadd.f32 0.0, %v2235
      %v2237 = vpop.f32.mrb[0].mxu0
      %v2238 = vpop.f32.mrb[0].mxu0
      %v2239 = vadd.f32 0.0, %v2238
      %v2240 = vpop.f32.mrb[0].mxu0
      %2241 = vmatprep.mubr.bf16.mxu0 0
      %2242 = vmatmul.mubr.bf16.gmra.mrb[0].mxu0 %v2180
      %v2243 = vpop.f32.mrb[0].mxu0
      %v2244 = vadd.f32 0.0, %v2243
      %v2245 = vpop.f32.mrb[0].mxu0
      %v2246 = vpop.f32.mrb[0].mxu0
      %v2247 = vadd.f32 0.0, %v2246
      %v2248 = vpop.f32.mrb[0].mxu0
      %2249 = vdwg.mxu0
      %v2250 = vadd.f32 %v1869, %v2220
      %v2251 = vadd.f32 %v1870, %v2223
      %v2252 = vadd.f32 %v1871, %v2228
      %v2253 = vadd.f32 %v1872, %v2231
      %v2254 = vadd.f32 %v1873, %v2236
      %v2255 = vadd.f32 %v1874, %v2239
      %v2256 = vadd.f32 %v1875, %v2244
      %v2257 = vadd.f32 %v1876, %v2247
      %v2258 = vadd.f32 %v548, %v2250
      %v2259 = vadd.f32 %v549, %v2251
      %v2260 = vadd.f32 %v550, %v2252
      %v2261 = vadd.f32 %v551, %v2253
      %v2262 = vadd.f32 %v552, %v2254
      %v2263 = vadd.f32 %v553, %v2255
      %v2264 = vadd.f32 %v554, %v2256
      %v2265 = vadd.f32 %v555, %v2257
      %v2266 = vsel %vm599, %v2258, 0.0
      %2267 = vadd.xlane.f32.xlu0 %v2266
      %v2268 = vpop.xlane.xlu0 %2267
      %v2269 = vsel %vm599, %v2259, 0.0
      %2270 = vadd.xlane.f32.xlu0 %v2269
      %v2271 = vpop.xlane.xlu0 %2270
      %v2272 = vsel %vm599, %v2260, 0.0
      %2273 = vadd.xlane.f32.xlu0 %v2272
      %v2274 = vpop.xlane.xlu0 %2273
      %v2275 = vsel %vm599, %v2261, 0.0
      %2276 = vadd.xlane.f32.xlu0 %v2275
      %v2277 = vpop.xlane.xlu0 %2276
      %v2278 = vsel %vm599, %v2262, 0.0
      %2279 = vadd.xlane.f32.xlu0 %v2278
      %v2280 = vpop.xlane.xlu0 %2279
      %v2281 = vsel %vm599, %v2263, 0.0
      %2282 = vadd.xlane.f32.xlu0 %v2281
      %v2283 = vpop.xlane.xlu0 %2282
      %v2284 = vsel %vm599, %v2264, 0.0
      %2285 = vadd.xlane.f32.xlu0 %v2284
      %v2286 = vpop.xlane.xlu0 %2285
      %v2287 = vsel %vm599, %v2265, 0.0
      %2288 = vadd.xlane.f32.xlu0 %v2287
      %v2289 = vpop.xlane.xlu0 %2288
      %v2290 = vrcp.pop 32.0
      %v2291 = vmul.f32 %v2268, %v2290
      %v2292 = vmul.f32 %v2271, %v2290
      %v2293 = vmul.f32 %v2274, %v2290
      %v2294 = vmul.f32 %v2277, %v2290
      %v2295 = vmul.f32 %v2280, %v2290
      %v2296 = vmul.f32 %v2283, %v2290
      %v2297 = vmul.f32 %v2286, %v2290
      %v2298 = vmul.f32 %v2289, %v2290
      %v2299 = vsub.f32 %v2258, %v2291
      %v2300 = vsub.f32 %v2259, %v2292
      %v2301 = vsub.f32 %v2260, %v2293
      %v2302 = vsub.f32 %v2261, %v2294
      %v2303 = vsub.f32 %v2262, %v2295
      %v2304 = vsub.f32 %v2263, %v2296
      %v2305 = vsub.f32 %v2264, %v2297
      %v2306 = vsub.f32 %v2265, %v2298
      %v2307 = vmul.f32 %v2299, %v2299
      %v2308 = vmul.f32 %v2300, %v2300
      %v2309 = vmul.f32 %v2301, %v2301
      %v2310 = vmul.f32 %v2302, %v2302
      %v2311 = vmul.f32 %v2303, %v2303
      %v2312 = vmul.f32 %v2304, %v2304
      %v2313 = vmul.f32 %v2305, %v2305
      %v2314 = vmul.f32 %v2306, %v2306
      %v2315 = vsel %vm599, %v2307, 0.0
      %2316 = vadd.xlane.f32.xlu0 %v2315
      %v2317 = vpop.xlane.xlu0 %2316
      %v2318 = vsel %vm599, %v2308, 0.0
      %2319 = vadd.xlane.f32.xlu0 %v2318
      %v2320 = vpop.xlane.xlu0 %2319
      %v2321 = vsel %vm599, %v2309, 0.0
      %2322 = vadd.xlane.f32.xlu0 %v2321
      %v2323 = vpop.xlane.xlu0 %2322
      %v2324 = vsel %vm599, %v2310, 0.0
      %2325 = vadd.xlane.f32.xlu0 %v2324
      %v2326 = vpop.xlane.xlu0 %2325
      %v2327 = vsel %vm599, %v2311, 0.0
      %2328 = vadd.xlane.f32.xlu0 %v2327
      %v2329 = vpop.xlane.xlu0 %2328
      %v2330 = vsel %vm599, %v2312, 0.0
      %2331 = vadd.xlane.f32.xlu0 %v2330
      %v2332 = vpop.xlane.xlu0 %2331
      %v2333 = vsel %vm599, %v2313, 0.0
      %2334 = vadd.xlane.f32.xlu0 %v2333
      %v2335 = vpop.xlane.xlu0 %2334
      %v2336 = vsel %vm599, %v2314, 0.0
      %2337 = vadd.xlane.f32.xlu0 %v2336
      %v2338 = vpop.xlane.xlu0 %2337
      %v2339 = vmul.f32 %v2317, %v2290
      %v2340 = vmul.f32 %v2320, %v2290
      %v2341 = vmul.f32 %v2323, %v2290
      %v2342 = vmul.f32 %v2326, %v2290
      %v2343 = vmul.f32 %v2329, %v2290
      %v2344 = vmul.f32 %v2332, %v2290
      %v2345 = vmul.f32 %v2335, %v2290
      %v2346 = vmul.f32 %v2338, %v2290
      %v2347 = vadd.f32 %v2339, 1e-05
      %v2348 = vadd.f32 %v2340, 1e-05
      %v2349 = vadd.f32 %v2341, 1e-05
      %v2350 = vadd.f32 %v2342, 1e-05
      %v2351 = vadd.f32 %v2343, 1e-05
      %v2352 = vadd.f32 %v2344, 1e-05
      %v2353 = vadd.f32 %v2345, 1e-05
      %v2354 = vadd.f32 %v2346, 1e-05
      %v2355 = vrsqrt.pop %v2347
      %v2356 = vrsqrt.pop %v2348
      %v2357 = vrsqrt.pop %v2349
      %v2358 = vrsqrt.pop %v2350
      %v2359 = vrsqrt.pop %v2351
      %v2360 = vrsqrt.pop %v2352
      %v2361 = vrsqrt.pop %v2353
      %v2362 = vrsqrt.pop %v2354
      %v2363 = vmul.f32 %v2299, %v2355
      %v2364 = vmul.f32 %v2300, %v2356
      %v2365 = vmul.f32 %v2301, %v2357
      %v2366 = vmul.f32 %v2302, %v2358
      %v2367 = vmul.f32 %v2303, %v2359
      %v2368 = vmul.f32 %v2304, %v2360
      %v2369 = vmul.f32 %v2305, %v2361
      %v2370 = vmul.f32 %v2306, %v2362
      %v2371 = vld [vmem:[%s8] sm:$0x1]
      %v2373 = vlaneseq
      %v2374 = vshrl.u32 %v2373, 7
      %v2375 = vsub.s32 0, %v2374
      %v2376 = vrot.slane %v2371, %v2375
      %v2378 = vmul.f32 %v2363, %v2376
      %v2379 = vmul.f32 %v2364, %v2376
      %v2380 = vmul.f32 %v2365, %v2376
      %v2381 = vmul.f32 %v2366, %v2376
      %v2382 = vmul.f32 %v2367, %v2376
      %v2383 = vmul.f32 %v2368, %v2376
      %v2384 = vmul.f32 %v2369, %v2376
      %v2385 = vmul.f32 %v2370, %v2376
      %v2386 = vld [vmem:[%s9] sm:$0x1]
      %v2388 = vlaneseq
      %v2389 = vshrl.u32 %v2388, 7
      %v2390 = vsub.s32 0, %v2389
      %v2391 = vrot.slane %v2386, %v2390
      %v2393 = vadd.f32 %v2378, %v2391
      %v2394 = vadd.f32 %v2379, %v2391
      %v2395 = vadd.f32 %v2380, %v2391
      %v2396 = vadd.f32 %v2381, %v2391
      %v2397 = vadd.f32 %v2382, %v2391
      %v2398 = vadd.f32 %v2383, %v2391
      %v2399 = vadd.f32 %v2384, %v2391
      %v2400 = vadd.f32 %v2385, %v2391
      %v2401 = vpack.c.bf16 %v2394, %v2393
      %v2402 = vpack.c.bf16 %v2396, %v2395
      %v2403 = vpack.c.bf16 %v2398, %v2397
      %v2404 = vpack.c.bf16 %v2400, %v2399
      %v2405 = vld [vmem:[%s10] sm:$0xf]
      %v2406 = vld [vmem:[%s10 + $0x4] sm:$0xf]
      %v2407 = vld [vmem:[%s10 + $0x8] sm:$0xf]
      %v2408 = vld [vmem:[%s10 + $0xc] sm:$0xf]
      %v2409 = vld [vmem:[%s11] sm:$0x1]
      %v2411 = vlaneseq
      %v2412 = vshrl.u32 %v2411, 7
      %v2413 = vsub.s32 0, %v2412
      %v2414 = vrot.slane %v2409, %v2413
      %v2420 = vunpack.c.l.b16 %v2405
      %v2421 = vunpack.c.l.b16 %v2406
      %v2422 = vunpack.c.l.b16 %v2407
      %v2423 = vunpack.c.l.b16 %v2408
      %v2424 = vpack.c.b16 %v2421, %v2420
      %v2425 = vpack.c.b16 %v2423, %v2422
      %v2429 = vsel %vm599, %v2401, 0
      %v2432 = vsel %vm599, %v2402, 0
      %v2435 = vsel %vm599, %v2403, 0
      %v2438 = vsel %vm599, %v2404, 0
      %2440 = vmatprep.subr.bf16.mxu0 0
      %2441 = vmatpush1.bf16.msra.mxu0 %v2424
      %2442 = vmatprep.subr.bf16.mxu0 0
      %2443 = vmatpush1.bf16.msra.mxu0 %v2425
      %2444 = vmatprep.subr.bf16.mxu0 0
      %2445 = vmatpush1.bf16.msra.mxu0 0
      %2446 = vmatprep.subr.bf16.mxu0 0
      %2447 = vmatpush1.bf16.msra.mxu0 0
      %2448 = vmatprep.subr.bf16.mxu0 0
      %2449 = vmatpush1.bf16.msra.mxu0 0
      %2450 = vmatprep.subr.bf16.mxu0 0
      %2451 = vmatpush1.bf16.msra.mxu0 0
      %2452 = vmatprep.subr.bf16.mxu0 0
      %2453 = vmatpush1.bf16.msra.mxu0 0
      %2454 = vmatprep.subr.bf16.mxu0 0
      %2455 = vmatpush1.bf16.msra.mxu0 0
      %2456 = vmatprep.subr.bf16.mxu0 0
      %2457 = vmatpush1.bf16.msra.mxu0 0
      %2458 = vmatprep.subr.bf16.mxu0 0
      %2459 = vmatpush1.bf16.msra.mxu0 0
      %2460 = vmatprep.subr.bf16.mxu0 0
      %2461 = vmatpush1.bf16.msra.mxu0 0
      %2462 = vmatprep.subr.bf16.mxu0 0
      %2463 = vmatpush1.bf16.msra.mxu0 0
      %2464 = vmatprep.subr.bf16.mxu0 0
      %2465 = vmatpush1.bf16.msra.mxu0 0
      %2466 = vmatprep.subr.bf16.mxu0 0
      %2467 = vmatpush1.bf16.msra.mxu0 0
      %2468 = vmatprep.subr.bf16.mxu0 0
      %2469 = vmatpush1.bf16.msra.mxu0 0
      %2470 = vmatprep.subr.bf16.mxu0 0
      %2471 = vmatpush1.bf16.msra.mxu0 0
      %2472 = vmatprep.mubr.bf16.mxu0 0
      %2473 = vmatmul.mubr.bf16.gmra.mrb[0].mxu0 %v2429
      %v2474 = vpop.f32.mrb[0].mxu0
      %v2475 = vadd.f32 %v2414, %v2474
      %v2476 = vpop.f32.mrb[0].mxu0
      %v2477 = vpop.f32.mrb[0].mxu0
      %v2478 = vadd.f32 %v2414, %v2477
      %v2479 = vpop.f32.mrb[0].mxu0
      %2480 = vmatprep.mubr.bf16.mxu0 0
      %2481 = vmatmul.mubr.bf16.gmra.mrb[0].mxu0 %v2432
      %v2482 = vpop.f32.mrb[0].mxu0
      %v2483 = vadd.f32 %v2414, %v2482
      %v2484 = vpop.f32.mrb[0].mxu0
      %v2485 = vpop.f32.mrb[0].mxu0
      %v2486 = vadd.f32 %v2414, %v2485
      %v2487 = vpop.f32.mrb[0].mxu0
      %2488 = vmatprep.mubr.bf16.mxu0 0
      %2489 = vmatmul.mubr.bf16.gmra.mrb[0].mxu0 %v2435
      %v2490 = vpop.f32.mrb[0].mxu0
      %v2491 = vadd.f32 %v2414, %v2490
      %v2492 = vpop.f32.mrb[0].mxu0
      %v2493 = vpop.f32.mrb[0].mxu0
      %v2494 = vadd.f32 %v2414, %v2493
      %v2495 = vpop.f32.mrb[0].mxu0
      %2496 = vmatprep.mubr.bf16.mxu0 0
      %2497 = vmatmul.mubr.bf16.gmra.mrb[0].mxu0 %v2438
      %v2498 = vpop.f32.mrb[0].mxu0
      %v2499 = vadd.f32 %v2414, %v2498
      %v2500 = vpop.f32.mrb[0].mxu0
      %v2501 = vpop.f32.mrb[0].mxu0
      %v2502 = vadd.f32 %v2414, %v2501
      %v2503 = vpop.f32.mrb[0].mxu0
      %2504 = vdwg.mxu0
      %v2505 = vmax.f32 %v2475, 0.0
      %v2506 = vmax.f32 %v2478, 0.0
      %v2507 = vmax.f32 %v2483, 0.0
      %v2508 = vmax.f32 %v2486, 0.0
      %v2509 = vmax.f32 %v2491, 0.0
      %v2510 = vmax.f32 %v2494, 0.0
      %v2511 = vmax.f32 %v2499, 0.0
      %v2512 = vmax.f32 %v2502, 0.0
      %v2513 = vpack.c.bf16 %v2506, %v2505
      %v2514 = vpack.c.bf16 %v2508, %v2507
      %v2515 = vpack.c.bf16 %v2510, %v2509
      %v2516 = vpack.c.bf16 %v2512, %v2511
      %v2517 = vld [vmem:[%s12] sm:$0xf]
      %v2518 = vld [vmem:[%s12 + $0x4] sm:$0xf]
      %v2519 = vld [vmem:[%s12 + $0x8] sm:$0xf]
      %v2520 = vld [vmem:[%s12 + $0xc] sm:$0xf]
      %v2521 = vld [vmem:[%s12 + $0x10] sm:$0xf]
      %v2522 = vld [vmem:[%s12 + $0x14] sm:$0xf]
      %v2523 = vld [vmem:[%s12 + $0x18] sm:$0xf]
      %v2524 = vld [vmem:[%s12 + $0x1c] sm:$0xf]
      %v2525 = vld [vmem:[%s12 + $0x20] sm:$0xf]
      %v2526 = vld [vmem:[%s12 + $0x24] sm:$0xf]
      %v2527 = vld [vmem:[%s12 + $0x28] sm:$0xf]
      %v2528 = vld [vmem:[%s12 + $0x2c] sm:$0xf]
      %v2529 = vld [vmem:[%s12 + $0x30] sm:$0xf]
      %v2530 = vld [vmem:[%s12 + $0x34] sm:$0xf]
      %v2531 = vld [vmem:[%s12 + $0x38] sm:$0xf]
      %v2532 = vld [vmem:[%s12 + $0x3c] sm:$0xf]
      %v2533 = vld [vmem:[%s13] sm:$0x1]
      %v2535 = vlaneseq
      %v2536 = vshrl.u32 %v2535, 7
      %v2537 = vsub.s32 0, %v2536
      %v2538 = vrot.slane %v2533, %v2537
      %v2556 = vunpack.c.l.b16 %v2517
      %v2557 = vunpack.c.l.b16 %v2518
      %v2558 = vunpack.c.l.b16 %v2519
      %v2559 = vunpack.c.l.b16 %v2520
      %v2560 = vunpack.c.l.b16 %v2521
      %v2561 = vunpack.c.l.b16 %v2522
      %v2562 = vunpack.c.l.b16 %v2523
      %v2563 = vunpack.c.l.b16 %v2524
      %v2564 = vunpack.c.l.b16 %v2525
      %v2565 = vunpack.c.l.b16 %v2526
      %v2566 = vunpack.c.l.b16 %v2527
      %v2567 = vunpack.c.l.b16 %v2528
      %v2568 = vunpack.c.l.b16 %v2529
      %v2569 = vunpack.c.l.b16 %v2530
      %v2570 = vunpack.c.l.b16 %v2531
      %v2571 = vunpack.c.l.b16 %v2532
      %v2572 = vpack.c.b16 %v2557, %v2556
      %v2573 = vpack.c.b16 %v2559, %v2558
      %v2574 = vpack.c.b16 %v2561, %v2560
      %v2575 = vpack.c.b16 %v2563, %v2562
      %v2576 = vpack.c.b16 %v2565, %v2564
      %v2577 = vpack.c.b16 %v2567, %v2566
      %v2578 = vpack.c.b16 %v2569, %v2568
      %v2579 = vpack.c.b16 %v2571, %v2570
      %2588 = vmatprep.subr.bf16.mxu0 0
      %2589 = vmatpush1.bf16.msra.mxu0 %v2572
      %2590 = vmatprep.subr.bf16.mxu0 0
      %2591 = vmatpush1.bf16.msra.mxu0 %v2573
      %2592 = vmatprep.subr.bf16.mxu0 0
      %2593 = vmatpush1.bf16.msra.mxu0 %v2574
      %2594 = vmatprep.subr.bf16.mxu0 0
      %2595 = vmatpush1.bf16.msra.mxu0 %v2575
      %2596 = vmatprep.subr.bf16.mxu0 0
      %2597 = vmatpush1.bf16.msra.mxu0 %v2576
      %2598 = vmatprep.subr.bf16.mxu0 0
      %2599 = vmatpush1.bf16.msra.mxu0 %v2577
      %2600 = vmatprep.subr.bf16.mxu0 0
      %2601 = vmatpush1.bf16.msra.mxu0 %v2578
      %2602 = vmatprep.subr.bf16.mxu0 0
      %2603 = vmatpush1.bf16.msra.mxu0 %v2579
      %2604 = vmatprep.subr.bf16.mxu0 0
      %2605 = vmatpush1.bf16.msra.mxu0 0
      %2606 = vmatprep.subr.bf16.mxu0 0
      %2607 = vmatpush1.bf16.msra.mxu0 0
      %2608 = vmatprep.subr.bf16.mxu0 0
      %2609 = vmatpush1.bf16.msra.mxu0 0
      %2610 = vmatprep.subr.bf16.mxu0 0
      %2611 = vmatpush1.bf16.msra.mxu0 0
      %2612 = vmatprep.subr.bf16.mxu0 0
      %2613 = vmatpush1.bf16.msra.mxu0 0
      %2614 = vmatprep.subr.bf16.mxu0 0
      %2615 = vmatpush1.bf16.msra.mxu0 0
      %2616 = vmatprep.subr.bf16.mxu0 0
      %2617 = vmatpush1.bf16.msra.mxu0 0
      %2618 = vmatprep.subr.bf16.mxu0 0
      %2619 = vmatpush1.bf16.msra.mxu0 0
      %2620 = vmatprep.mubr.bf16.mxu0 0
      %2621 = vmatmul.mubr.bf16.gmra.mrb[0].mxu0 %v2513
      %v2622 = vpop.f32.mrb[0].mxu0
      %v2623 = vadd.f32 %v2538, %v2622
      %v2624 = vpop.f32.mrb[0].mxu0
      %v2625 = vpop.f32.mrb[0].mxu0
      %v2626 = vadd.f32 %v2538, %v2625
      %v2627 = vpop.f32.mrb[0].mxu0
      %2628 = vmatprep.mubr.bf16.mxu0 0
      %2629 = vmatmul.mubr.bf16.gmra.mrb[0].mxu0 %v2514
      %v2630 = vpop.f32.mrb[0].mxu0
      %v2631 = vadd.f32 %v2538, %v2630
      %v2632 = vpop.f32.mrb[0].mxu0
      %v2633 = vpop.f32.mrb[0].mxu0
      %v2634 = vadd.f32 %v2538, %v2633
      %v2635 = vpop.f32.mrb[0].mxu0
      %2636 = vmatprep.mubr.bf16.mxu0 0
      %2637 = vmatmul.mubr.bf16.gmra.mrb[0].mxu0 %v2515
      %v2638 = vpop.f32.mrb[0].mxu0
      %v2639 = vadd.f32 %v2538, %v2638
      %v2640 = vpop.f32.mrb[0].mxu0
      %v2641 = vpop.f32.mrb[0].mxu0
      %v2642 = vadd.f32 %v2538, %v2641
      %v2643 = vpop.f32.mrb[0].mxu0
      %2644 = vmatprep.mubr.bf16.mxu0 0
      %2645 = vmatmul.mubr.bf16.gmra.mrb[0].mxu0 %v2516
      %v2646 = vpop.f32.mrb[0].mxu0
      %v2647 = vadd.f32 %v2538, %v2646
      %v2648 = vpop.f32.mrb[0].mxu0
      %v2649 = vpop.f32.mrb[0].mxu0
      %v2650 = vadd.f32 %v2538, %v2649
      %v2651 = vpop.f32.mrb[0].mxu0
      %2652 = vdwg.mxu0
      %v2653 = vadd.f32 %v2393, %v2623
      %v2654 = vadd.f32 %v2394, %v2626
      %v2655 = vadd.f32 %v2395, %v2631
      %v2656 = vadd.f32 %v2396, %v2634
      %v2657 = vadd.f32 %v2397, %v2639
      %v2658 = vadd.f32 %v2398, %v2642
      %v2659 = vadd.f32 %v2399, %v2647
      %v2660 = vadd.f32 %v2400, %v2650
      %v2661 = vsel %vm599, %v2653, 0.0
      %2662 = vadd.xlane.f32.xlu0 %v2661
      %v2663 = vpop.xlane.xlu0 %2662
      %v2664 = vsel %vm599, %v2654, 0.0
      %2665 = vadd.xlane.f32.xlu0 %v2664
      %v2666 = vpop.xlane.xlu0 %2665
      %v2667 = vsel %vm599, %v2655, 0.0
      %2668 = vadd.xlane.f32.xlu0 %v2667
      %v2669 = vpop.xlane.xlu0 %2668
      %v2670 = vsel %vm599, %v2656, 0.0
      %2671 = vadd.xlane.f32.xlu0 %v2670
      %v2672 = vpop.xlane.xlu0 %2671
      %v2673 = vsel %vm599, %v2657, 0.0
      %2674 = vadd.xlane.f32.xlu0 %v2673
      %v2675 = vpop.xlane.xlu0 %2674
      %v2676 = vsel %vm599, %v2658, 0.0
      %2677 = vadd.xlane.f32.xlu0 %v2676
      %v2678 = vpop.xlane.xlu0 %2677
      %v2679 = vsel %vm599, %v2659, 0.0
      %2680 = vadd.xlane.f32.xlu0 %v2679
      %v2681 = vpop.xlane.xlu0 %2680
      %v2682 = vsel %vm599, %v2660, 0.0
      %2683 = vadd.xlane.f32.xlu0 %v2682
      %v2684 = vpop.xlane.xlu0 %2683
      %v2685 = vmul.f32 %v2663, %v2290
      %v2686 = vmul.f32 %v2666, %v2290
      %v2687 = vmul.f32 %v2669, %v2290
      %v2688 = vmul.f32 %v2672, %v2290
      %v2689 = vmul.f32 %v2675, %v2290
      %v2690 = vmul.f32 %v2678, %v2290
      %v2691 = vmul.f32 %v2681, %v2290
      %v2692 = vmul.f32 %v2684, %v2290
      %v2693 = vsub.f32 %v2653, %v2685
      %v2694 = vsub.f32 %v2654, %v2686
      %v2695 = vsub.f32 %v2655, %v2687
      %v2696 = vsub.f32 %v2656, %v2688
      %v2697 = vsub.f32 %v2657, %v2689
      %v2698 = vsub.f32 %v2658, %v2690
      %v2699 = vsub.f32 %v2659, %v2691
      %v2700 = vsub.f32 %v2660, %v2692
      %v2701 = vmul.f32 %v2693, %v2693
      %v2702 = vmul.f32 %v2694, %v2694
      %v2703 = vmul.f32 %v2695, %v2695
      %v2704 = vmul.f32 %v2696, %v2696
      %v2705 = vmul.f32 %v2697, %v2697
      %v2706 = vmul.f32 %v2698, %v2698
      %v2707 = vmul.f32 %v2699, %v2699
      %v2708 = vmul.f32 %v2700, %v2700
      %v2709 = vsel %vm599, %v2701, 0.0
      %2710 = vadd.xlane.f32.xlu0 %v2709
      %v2711 = vpop.xlane.xlu0 %2710
      %v2712 = vsel %vm599, %v2702, 0.0
      %2713 = vadd.xlane.f32.xlu0 %v2712
      %v2714 = vpop.xlane.xlu0 %2713
      %v2715 = vsel %vm599, %v2703, 0.0
      %2716 = vadd.xlane.f32.xlu0 %v2715
      %v2717 = vpop.xlane.xlu0 %2716
      %v2718 = vsel %vm599, %v2704, 0.0
      %2719 = vadd.xlane.f32.xlu0 %v2718
      %v2720 = vpop.xlane.xlu0 %2719
      %v2721 = vsel %vm599, %v2705, 0.0
      %2722 = vadd.xlane.f32.xlu0 %v2721
      %v2723 = vpop.xlane.xlu0 %2722
      %v2724 = vsel %vm599, %v2706, 0.0
      %2725 = vadd.xlane.f32.xlu0 %v2724
      %v2726 = vpop.xlane.xlu0 %2725
      %v2727 = vsel %vm599, %v2707, 0.0
      %2728 = vadd.xlane.f32.xlu0 %v2727
      %v2729 = vpop.xlane.xlu0 %2728
      %v2730 = vsel %vm599, %v2708, 0.0
      %2731 = vadd.xlane.f32.xlu0 %v2730
      %v2732 = vpop.xlane.xlu0 %2731
      %v2733 = vmul.f32 %v2711, %v2290
      %v2734 = vmul.f32 %v2714, %v2290
      %v2735 = vmul.f32 %v2717, %v2290
      %v2736 = vmul.f32 %v2720, %v2290
      %v2737 = vmul.f32 %v2723, %v2290
      %v2738 = vmul.f32 %v2726, %v2290
      %v2739 = vmul.f32 %v2729, %v2290
      %v2740 = vmul.f32 %v2732, %v2290
      %v2741 = vadd.f32 %v2733, 1e-05
      %v2742 = vadd.f32 %v2734, 1e-05
      %v2743 = vadd.f32 %v2735, 1e-05
      %v2744 = vadd.f32 %v2736, 1e-05
      %v2745 = vadd.f32 %v2737, 1e-05
      %v2746 = vadd.f32 %v2738, 1e-05
      %v2747 = vadd.f32 %v2739, 1e-05
      %v2748 = vadd.f32 %v2740, 1e-05
      %v2749 = vrsqrt.pop %v2741
      %v2750 = vrsqrt.pop %v2742
      %v2751 = vrsqrt.pop %v2743
      %v2752 = vrsqrt.pop %v2744
      %v2753 = vrsqrt.pop %v2745
      %v2754 = vrsqrt.pop %v2746
      %v2755 = vrsqrt.pop %v2747
      %v2756 = vrsqrt.pop %v2748
      %v2757 = vmul.f32 %v2693, %v2749
      %v2758 = vmul.f32 %v2694, %v2750
      %v2759 = vmul.f32 %v2695, %v2751
      %v2760 = vmul.f32 %v2696, %v2752
      %v2761 = vmul.f32 %v2697, %v2753
      %v2762 = vmul.f32 %v2698, %v2754
      %v2763 = vmul.f32 %v2699, %v2755
      %v2764 = vmul.f32 %v2700, %v2756
      %v2765 = vld [vmem:[%s14] sm:$0x1]
      %v2767 = vlaneseq
      %v2768 = vshrl.u32 %v2767, 7
      %v2769 = vsub.s32 0, %v2768
      %v2770 = vrot.slane %v2765, %v2769
      %v2772 = vmul.f32 %v2757, %v2770
      %v2773 = vmul.f32 %v2758, %v2770
      %v2774 = vmul.f32 %v2759, %v2770
      %v2775 = vmul.f32 %v2760, %v2770
      %v2776 = vmul.f32 %v2761, %v2770
      %v2777 = vmul.f32 %v2762, %v2770
      %v2778 = vmul.f32 %v2763, %v2770
      %v2779 = vmul.f32 %v2764, %v2770
      %v2780 = vld [vmem:[%s15] sm:$0x1]
      %v2782 = vlaneseq
      %v2783 = vshrl.u32 %v2782, 7
      %v2784 = vsub.s32 0, %v2783
      %v2785 = vrot.slane %v2780, %v2784
      %v2787 = vadd.f32 %v2772, %v2785
      %v2788 = vadd.f32 %v2773, %v2785
      %v2789 = vadd.f32 %v2774, %v2785
      %v2790 = vadd.f32 %v2775, %v2785
      %v2791 = vadd.f32 %v2776, %v2785
      %v2792 = vadd.f32 %v2777, %v2785
      %v2793 = vadd.f32 %v2778, %v2785
      %v2794 = vadd.f32 %v2779, %v2785
      %2795 = vst.msk [vmem:[%s545] sm:$0xff] %vm599, %v2787
      %2796 = vst.msk [vmem:[%s545 + $0x8] sm:$0xff] %vm599, %v2788
      %2797 = vst.msk [vmem:[%s545 + $0x10] sm:$0xff] %vm599, %v2789
      %2798 = vst.msk [vmem:[%s545 + $0x18] sm:$0xff] %vm599, %v2790
      %2799 = vst.msk [vmem:[%s545 + $0x20] sm:$0xff] %vm599, %v2791
      %2800 = vst.msk [vmem:[%s545 + $0x28] sm:$0xff] %vm599, %v2792
      %2801 = vst.msk [vmem:[%s545 + $0x30] sm:$0xff] %vm599, %v2793
      %2802 = vst.msk [vmem:[%s545 + $0x38] sm:$0xff] %vm599, %v2794
      %s2803 = smul.u32 8, %s27
      %p2804 = scmp.lt.s32.totalorder %s2803, 15
      %s2805 = scalar_select %p2804, %s2803, 15
      %s2806 = smul.addr %s2805, 8
      %s2807 = scalar_lea.vmem %s16, %s2806
      // Predicated region
      $region85: #{tpu_custom_call.1} parent=83 // pred_check
        %p2808 = pneg %p391
      $region86: #{tpu_custom_call.1} parent=83 // pred_check_branch
        %2810 = sbr.rel (%p2808) target = $region88
      $region87: #{tpu_custom_call.1} parent=83 // pred_region
        %s2811 = smul.u32 8, %s27
      $region88: #{tpu_custom_call.1} parent=83 // pred_fallthru
        _
    $region84: #{tpu_custom_call.1} parent=5 // pred_fallthru
      _
    %p2812 = scmp.le.s32.totalorder 2, %s22
    // Predicated region
    $region89: #{tpu_custom_call.1} parent=5 // pred_check
      %p2813 = pneg %p2812
    $region90: #{tpu_custom_call.1} parent=5 // pred_check_branch
      %2815 = sbr.rel (%p2813) target = $region92
    $region91: #{tpu_custom_call.1} parent=5 // pred_region
      %s2816 = ssub.s32 %s22, 2
      // Predicated region
      $region93: #{tpu_custom_call.1} parent=91 // pred_check
        %p2817 = pneg %p397
      $region94: #{tpu_custom_call.1} parent=91 // pred_check_branch
        %2819 = sbr.rel (%p2817) target = $region96
      $region95: #{tpu_custom_call.1} parent=91 // pred_region
        %s2820 = smul.u32 8, %s28
        %p2821 = scmp.lt.s32.totalorder %s2820, 15
        %s2822 = scalar_select %p2821, %s2820, 15
        %s2823 = smul.addr %s2822, 8
        %s2824 = scalar_lea.vmem %s16, %s2823
      $region96: #{tpu_custom_call.1} parent=91 // pred_fallthru
        _
    $region92: #{tpu_custom_call.1} parent=5 // pred_fallthru
      _
  $region6: #{tpu_custom_call.1} parent=0 // loop_footer
    %s26 = sadd.s32 1, %s22
  $region7: #{tpu_custom_call.1} parent=0 // loop_footer_branch
    %21 = sbr.rel target = $region3
  $region8: #{tpu_custom_call.1} parent=0 // loop_exit
    _

// kernel: tpu_custom_call.1
$region0: #{tpu_custom_call.1}
  #allocation0 [shape = 'u32[]', space=smem, size = 0x4, offset = 0x4, fixed_abs, tag = 'smem constant byte address 0x4 - core index']
  #allocation1 [shape = 'u32[144,128]{1,0:T(1,128)}', space=vmem, size = 0x12000, scoped, tag = 'internal scratch']
  %s0 = inlined_call_operand.vmem [shape: bf16[128,128], index: 0, kind: input, shape index: {}]
  %s1 = inlined_call_operand.vmem [shape: f32[128,32], index: 1, kind: input, shape index: {}]
  %s2 = inlined_call_operand.vmem [shape: bf16[32,128], index: 2, kind: input, shape index: {}]
  %s3 = inlined_call_operand.vmem [shape: bf16[128,64], index: 3, kind: input, shape index: {}]
  %s4 = inlined_call_operand.vmem [shape: bf16[32,32], index: 4, kind: input, shape index: {}]
  %s5 = inlined_call_operand.vmem [shape: f32[1,32], index: 5, kind: input, shape index: {}]
  %s6 = inlined_call_operand.vmem [shape: bf16[32,32], index: 6, kind: input, shape index: {}]
  %s7 = inlined_call_operand.vmem [shape: f32[1,32], index: 7, kind: input, shape index: {}]
  %s8 = inlined_call_operand.vmem [shape: f32[1,32], index: 8, kind: input, shape index: {}]
  %s9 = inlined_call_operand.vmem [shape: f32[1,32], index: 9, kind: input, shape index: {}]
  %s10 = inlined_call_operand.vmem [shape: bf16[32,128], index: 10, kind: input, shape index: {}]
  %s11 = inlined_call_operand.vmem [shape: f32[1,128], index: 11, kind: input, shape index: {}]
  %s12 = inlined_call_operand.vmem [shape: bf16[128,32], index: 12, kind: input, shape index: {}]
  %s13 = inlined_call_operand.vmem [shape: f32[1,32], index: 13, kind: input, shape index: {}]
  %s14 = inlined_call_operand.vmem [shape: f32[1,32], index: 14, kind: input, shape index: {}]
  %s15 = inlined_call_operand.vmem [shape: f32[1,32], index: 15, kind: input, shape index: {}]
  %s16 = inlined_call_operand.vmem [shape: f32[128,32], index: 16, kind: output, shape index: {}]
  %s17 = sld [smem:[#allocation0]]
  $region97: #{tpu_custom_call.1} parent=0
    _
  %s19 = ssub.s32 1, %s17
  %s20 = scalar_select 0, %s19, %s17
  loop: start=0, step=1, limit=4
  $region2: #{tpu_custom_call.1} parent=0 // loop_pre_header
    _
  $region3: #{tpu_custom_call.1} parent=0 // loop_header
    %s22 = sphi 0, %s26
    %p23 = scmp.ge.s32.totalorder %s22, 4
    %s32 = sphi 0, %s34
    %s35 = sphi 0, %s32
    %s36 = sphi 0, %s35
    %s52 = sphi 0, %s36
    %s58 = sphi 0, %s60
    %s61 = sphi 0, %s58
    %s62 = sphi 0, %s61
    %s78 = sphi 0, %s62
    %s82 = sphi 0, %s82
    %s84 = sphi 0, %s82
    %s85 = sphi 0, %s84
    %s99 = sphi 0, %s85
    %s103 = sphi 0, %s103
    %s105 = sphi 0, %s103
    %s106 = sphi 0, %s105
    %s120 = sphi 0, %s106
    %s124 = sphi 0, %s124
    %s126 = sphi 0, %s124
    %s127 = sphi 0, %s126
    %s141 = sphi 0, %s127
    %s145 = sphi 0, %s145
    %s147 = sphi 0, %s145
    %s148 = sphi 0, %s147
    %s162 = sphi 0, %s148
    %s166 = sphi 0, %s166
    %s168 = sphi 0, %s166
    %s169 = sphi 0, %s168
    %s183 = sphi 0, %s169
    %s187 = sphi 0, %s187
    %s189 = sphi 0, %s187
    %s190 = sphi 0, %s189
    %s204 = sphi 0, %s190
    %s208 = sphi 0, %s208
    %s210 = sphi 0, %s208
    %s211 = sphi 0, %s210
    %s225 = sphi 0, %s211
    %s229 = sphi 0, %s229
    %s231 = sphi 0, %s229
    %s232 = sphi 0, %s231
    %s246 = sphi 0, %s232
    %s250 = sphi 0, %s250
    %s252 = sphi 0, %s250
    %s253 = sphi 0, %s252
    %s267 = sphi 0, %s253
    %s271 = sphi 0, %s271
    %s273 = sphi 0, %s271
    %s274 = sphi 0, %s273
    %s288 = sphi 0, %s274
    %s292 = sphi 0, %s292
    %s294 = sphi 0, %s292
    %s295 = sphi 0, %s294
    %s309 = sphi 0, %s295
    %s313 = sphi 0, %s313
    %s315 = sphi 0, %s313
    %s316 = sphi 0, %s315
    %s330 = sphi 0, %s316
    %s334 = sphi 0, %s334
    %s336 = sphi 0, %s334
    %s337 = sphi 0, %s336
    %s351 = sphi 0, %s337
    %s355 = sphi 0, %s355
    %s357 = sphi 0, %s355
    %s358 = sphi 0, %s357
    %s372 = sphi 0, %s358
    %s378 = sphi 0, %s380
    %s381 = sphi 0, %s378
    %s382 = sphi 0, %s381
    %s398 = sphi 0, %s382
  $region4: #{tpu_custom_call.1} parent=0 // loop_header_branch
    %25 = sbr.rel (%p23) target = $region8
  $region5: #{tpu_custom_call.1} parent=0 // loop_body
    %s27 = ssub.s32 %s22, 1
    %s28 = ssub.s32 %s22, 2
    %s29 = sadd.s32 %s22, 1
    %s30 = ssub.s32 %s22, %s29
    %p31 = scmp.eq.s32.totalorder %s30, 0
    %s33 = sadd.s32 %s32, 1
    %s34 = scalar_select %p31, %s32, %s33
    %p37 = pneg %p31
    %p38 = scmp.eq.s32.totalorder %s22, 1
    %p39 = por %p37, %p38
    %p40 = scmp.ne.s32.totalorder %s32, %s35
    %p41 = scmp.eq.s32.totalorder %s22, 0
    %p42 = por %p40, %p41
    %p43 = scmp.ne.s32.totalorder %s32, %s35
    %p44 = scmp.eq.s32.totalorder %s27, 1
    %p45 = por %p43, %p44
    %p46 = scmp.ne.s32.totalorder %s35, %s36
    %p47 = scmp.eq.s32.totalorder %s27, 0
    %p48 = por %p46, %p47
    %p49 = scmp.ne.s32.totalorder %s35, %s36
    %p50 = scmp.eq.s32.totalorder %s28, 1
    %p51 = por %p49, %p50
    %p53 = scmp.ne.s32.totalorder %s36, %s52
    %p54 = scmp.eq.s32.totalorder %s28, 0
    %p55 = por %p53, %p54
    %s56 = ssub.s32 %s22, %s29
    %p57 = scmp.eq.s32.totalorder %s56, 0
    %s59 = sadd.s32 %s58, 1
    %s60 = scalar_select %p57, %s58, %s59
    %p63 = pneg %p57
    %p64 = scmp.eq.s32.totalorder %s22, 1
    %p65 = por %p63, %p64
    %p66 = scmp.ne.s32.totalorder %s58, %s61
    %p67 = scmp.eq.s32.totalorder %s22, 0
    %p68 = por %p66, %p67
    %p69 = scmp.ne.s32.totalorder %s58, %s61
    %p70 = scmp.eq.s32.totalorder %s27, 1
    %p71 = por %p69, %p70
    %p72 = scmp.ne.s32.totalorder %s61, %s62
    %p73 = scmp.eq.s32.totalorder %s27, 0
    %p74 = por %p72, %p73
    %p75 = scmp.ne.s32.totalorder %s61, %s62
    %p76 = scmp.eq.s32.totalorder %s28, 1
    %p77 = por %p75, %p76
    %p79 = scmp.ne.s32.totalorder %s62, %s78
    %p80 = scmp.eq.s32.totalorder %s28, 0
    %p81 = por %p79, %p80
    %s83 = sadd.s32 %s82, 1
    %p86 = scmp.eq.s32.totalorder %s22, 1
    %p87 = scmp.ne.s32.totalorder %s82, %s84
    %p88 = scmp.eq.s32.totalorder %s22, 0
    %p89 = por %p87, %p88
    %p90 = scmp.ne.s32.totalorder %s82, %s84
    %p91 = scmp.eq.s32.totalorder %s27, 1
    %p92 = por %p90, %p91
    %p93 = scmp.ne.s32.totalorder %s84, %s85
    %p94 = scmp.eq.s32.totalorder %s27, 0
    %p95 = por %p93, %p94
    %p96 = scmp.ne.s32.totalorder %s84, %s85
    %p97 = scmp.eq.s32.totalorder %s28, 1
    %p98 = por %p96, %p97
    %p100 = scmp.ne.s32.totalorder %s85, %s99
    %p101 = scmp.eq.s32.totalorder %s28, 0
    %p102 = por %p100, %p101
    %s104 = sadd.s32 %s103, 1
    %p107 = scmp.eq.s32.totalorder %s22, 1
    %p108 = scmp.ne.s32.totalorder %s103, %s105
    %p109 = scmp.eq.s32.totalorder %s22, 0
    %p110 = por %p108, %p109
    %p111 = scmp.ne.s32.totalorder %s103, %s105
    %p112 = scmp.eq.s32.totalorder %s27, 1
    %p113 = por %p111, %p112
    %p114 = scmp.ne.s32.totalorder %s105, %s106
    %p115 = scmp.eq.s32.totalorder %s27, 0
    %p116 = por %p114, %p115
    %p117 = scmp.ne.s32.totalorder %s105, %s106
    %p118 = scmp.eq.s32.totalorder %s28, 1
    %p119 = por %p117, %p118
    %p121 = scmp.ne.s32.totalorder %s106, %s120
    %p122 = scmp.eq.s32.totalorder %s28, 0
    %p123 = por %p121, %p122
    %s125 = sadd.s32 %s124, 1
    %p128 = scmp.eq.s32.totalorder %s22, 1
    %p129 = scmp.ne.s32.totalorder %s124, %s126
    %p130 = scmp.eq.s32.totalorder %s22, 0
    %p131 = por %p129, %p130
    %p132 = scmp.ne.s32.totalorder %s124, %s126
    %p133 = scmp.eq.s32.totalorder %s27, 1
    %p134 = por %p132, %p133
    %p135 = scmp.ne.s32.totalorder %s126, %s127
    %p136 = scmp.eq.s32.totalorder %s27, 0
    %p137 = por %p135, %p136
    %p138 = scmp.ne.s32.totalorder %s126, %s127
    %p139 = scmp.eq.s32.totalorder %s28, 1
    %p140 = por %p138, %p139
    %p142 = scmp.ne.s32.totalorder %s127, %s141
    %p143 = scmp.eq.s32.totalorder %s28, 0
    %p144 = por %p142, %p143
    %s146 = sadd.s32 %s145, 1
    %p149 = scmp.eq.s32.totalorder %s22, 1
    %p150 = scmp.ne.s32.totalorder %s145, %s147
    %p151 = scmp.eq.s32.totalorder %s22, 0
    %p152 = por %p150, %p151
    %p153 = scmp.ne.s32.totalorder %s145, %s147
    %p154 = scmp.eq.s32.totalorder %s27, 1
    %p155 = por %p153, %p154
    %p156 = scmp.ne.s32.totalorder %s147, %s148
    %p157 = scmp.eq.s32.totalorder %s27, 0
    %p158 = por %p156, %p157
    %p159 = scmp.ne.s32.totalorder %s147, %s148
    %p160 = scmp.eq.s32.totalorder %s28, 1
    %p161 = por %p159, %p160
    %p163 = scmp.ne.s32.totalorder %s148, %s162
    %p164 = scmp.eq.s32.totalorder %s28, 0
    %p165 = por %p163, %p164
    %s167 = sadd.s32 %s166, 1
    %p170 = scmp.eq.s32.totalorder %s22, 1
    %p171 = scmp.ne.s32.totalorder %s166, %s168
    %p172 = scmp.eq.s32.totalorder %s22, 0
    %p173 = por %p171, %p172
    %p174 = scmp.ne.s32.totalorder %s166, %s168
    %p175 = scmp.eq.s32.totalorder %s27, 1
    %p176 = por %p174, %p175
    %p177 = scmp.ne.s32.totalorder %s168, %s169
    %p178 = scmp.eq.s32.totalorder %s27, 0
    %p179 = por %p177, %p178
    %p180 = scmp.ne.s32.totalorder %s168, %s169
    %p181 = scmp.eq.s32.totalorder %s28, 1
    %p182 = por %p180, %p181
    %p184 = scmp.ne.s32.totalorder %s169, %s183
    %p185 = scmp.eq.s32.totalorder %s28, 0
    %p186 = por %p184, %p185
    %s188 = sadd.s32 %s187, 1
    %p191 = scmp.eq.s32.totalorder %s22, 1
    %p192 = scmp.ne.s32.totalorder %s187, %s189
    %p193 = scmp.eq.s32.totalorder %s22, 0
    %p194 = por %p192, %p193
    %p195 = scmp.ne.s32.totalorder %s187, %s189
    %p196 = scmp.eq.s32.totalorder %s27, 1
    %p197 = por %p195, %p196
    %p198 = scmp.ne.s32.totalorder %s189, %s190
    %p199 = scmp.eq.s32.totalorder %s27, 0
    %p200 = por %p198, %p199
    %p201 = scmp.ne.s32.totalorder %s189, %s190
    %p202 = scmp.eq.s32.totalorder %s28, 1
    %p203 = por %p201, %p202
    %p205 = scmp.ne.s32.totalorder %s190, %s204
    %p206 = scmp.eq.s32.totalorder %s28, 0
    %p207 = por %p205, %p206
    %s209 = sadd.s32 %s208, 1
    %p212 = scmp.eq.s32.totalorder %s22, 1
    %p213 = scmp.ne.s32.totalorder %s208, %s210
    %p214 = scmp.eq.s32.totalorder %s22, 0
    %p215 = por %p213, %p214
    %p216 = scmp.ne.s32.totalorder %s208, %s210
    %p217 = scmp.eq.s32.totalorder %s27, 1
    %p218 = por %p216, %p217
    %p219 = scmp.ne.s32.totalorder %s210, %s211
    %p220 = scmp.eq.s32.totalorder %s27, 0
    %p221 = por %p219, %p220
    %p222 = scmp.ne.s32.totalorder %s210, %s211
    %p223 = scmp.eq.s32.totalorder %s28, 1
    %p224 = por %p222, %p223
    %p226 = scmp.ne.s32.totalorder %s211, %s225
    %p227 = scmp.eq.s32.totalorder %s28, 0
    %p228 = por %p226, %p227
    %s230 = sadd.s32 %s229, 1
    %p233 = scmp.eq.s32.totalorder %s22, 1
    %p234 = scmp.ne.s32.totalorder %s229, %s231
    %p235 = scmp.eq.s32.totalorder %s22, 0
    %p236 = por %p234, %p235
    %p237 = scmp.ne.s32.totalorder %s229, %s231
    %p238 = scmp.eq.s32.totalorder %s27, 1
    %p239 = por %p237, %p238
    %p240 = scmp.ne.s32.totalorder %s231, %s232
    %p241 = scmp.eq.s32.totalorder %s27, 0
    %p242 = por %p240, %p241
    %p243 = scmp.ne.s32.totalorder %s231, %s232
    %p244 = scmp.eq.s32.totalorder %s28, 1
    %p245 = por %p243, %p244
    %p247 = scmp.ne.s32.totalorder %s232, %s246
    %p248 = scmp.eq.s32.totalorder %s28, 0
    %p249 = por %p247, %p248
    %s251 = sadd.s32 %s250, 1
    %p254 = scmp.eq.s32.totalorder %s22, 1
    %p255 = scmp.ne.s32.totalorder %s250, %s252
    %p256 = scmp.eq.s32.totalorder %s22, 0
    %p257 = por %p255, %p256
    %p258 = scmp.ne.s32.totalorder %s250, %s252
    %p259 = scmp.eq.s32.totalorder %s27, 1
    %p260 = por %p258, %p259
    %p261 = scmp.ne.s32.totalorder %s252, %s253
    %p262 = scmp.eq.s32.totalorder %s27, 0
    %p263 = por %p261, %p262
    %p264 = scmp.ne.s32.totalorder %s252, %s253
    %p265 = scmp.eq.s32.totalorder %s28, 1
    %p266 = por %p264, %p265
    %p268 = scmp.ne.s32.totalorder %s253, %s267
    %p269 = scmp.eq.s32.totalorder %s28, 0
    %p270 = por %p268, %p269
    %s272 = sadd.s32 %s271, 1
    %p275 = scmp.eq.s32.totalorder %s22, 1
    %p276 = scmp.ne.s32.totalorder %s271, %s273
    %p277 = scmp.eq.s32.totalorder %s22, 0
    %p278 = por %p276, %p277
    %p279 = scmp.ne.s32.totalorder %s271, %s273
    %p280 = scmp.eq.s32.totalorder %s27, 1
    %p281 = por %p279, %p280
    %p282 = scmp.ne.s32.totalorder %s273, %s274
    %p283 = scmp.eq.s32.totalorder %s27, 0
    %p284 = por %p282, %p283
    %p285 = scmp.ne.s32.totalorder %s273, %s274
    %p286 = scmp.eq.s32.totalorder %s28, 1
    %p287 = por %p285, %p286
    %p289 = scmp.ne.s32.totalorder %s274, %s288
    %p290 = scmp.eq.s32.totalorder %s28, 0
    %p291 = por %p289, %p290
    %s293 = sadd.s32 %s292, 1
    %p296 = scmp.eq.s32.totalorder %s22, 1
    %p297 = scmp.ne.s32.totalorder %s292, %s294
    %p298 = scmp.eq.s32.totalorder %s22, 0
    %p299 = por %p297, %p298
    %p300 = scmp.ne.s32.totalorder %s292, %s294
    %p301 = scmp.eq.s32.totalorder %s27, 1
    %p302 = por %p300, %p301
    %p303 = scmp.ne.s32.totalorder %s294, %s295
    %p304 = scmp.eq.s32.totalorder %s27, 0
    %p305 = por %p303, %p304
    %p306 = scmp.ne.s32.totalorder %s294, %s295
    %p307 = scmp.eq.s32.totalorder %s28, 1
    %p308 = por %p306, %p307
    %p310 = scmp.ne.s32.totalorder %s295, %s309
    %p311 = scmp.eq.s32.totalorder %s28, 0
    %p312 = por %p310, %p311
    %s314 = sadd.s32 %s313, 1
    %p317 = scmp.eq.s32.totalorder %s22, 1
    %p318 = scmp.ne.s32.totalorder %s313, %s315
    %p319 = scmp.eq.s32.totalorder %s22, 0
    %p320 = por %p318, %p319
    %p321 = scmp.ne.s32.totalorder %s313, %s315
    %p322 = scmp.eq.s32.totalorder %s27, 1
    %p323 = por %p321, %p322
    %p324 = scmp.ne.s32.totalorder %s315, %s316
    %p325 = scmp.eq.s32.totalorder %s27, 0
    %p326 = por %p324, %p325
    %p327 = scmp.ne.s32.totalorder %s315, %s316
    %p328 = scmp.eq.s32.totalorder %s28, 1
    %p329 = por %p327, %p328
    %p331 = scmp.ne.s32.totalorder %s316, %s330
    %p332 = scmp.eq.s32.totalorder %s28, 0
    %p333 = por %p331, %p332
    %s335 = sadd.s32 %s334, 1
    %p338 = scmp.eq.s32.totalorder %s22, 1
    %p339 = scmp.ne.s32.totalorder %s334, %s336
    %p340 = scmp.eq.s32.totalorder %s22, 0
    %p341 = por %p339, %p340
    %p342 = scmp.ne.s32.totalorder %s334, %s336
    %p343 = scmp.eq.s32.totalorder %s27, 1
    %p344 = por %p342, %p343
    %p345 = scmp.ne.s32.totalorder %s336, %s337
    %p346 = scmp.eq.s32.totalorder %s27, 0
    %p347 = por %p345, %p346
    %p348 = scmp.ne.s32.totalorder %s336, %s337
    %p349 = scmp.eq.s32.totalorder %s28, 1
    %p350 = por %p348, %p349
    %p352 = scmp.ne.s32.totalorder %s337, %s351
    %p353 = scmp.eq.s32.totalorder %s28, 0
    %p354 = por %p352, %p353
    %s356 = sadd.s32 %s355, 1
    %p359 = scmp.eq.s32.totalorder %s22, 1
    %p360 = scmp.ne.s32.totalorder %s355, %s357
    %p361 = scmp.eq.s32.totalorder %s22, 0
    %p362 = por %p360, %p361
    %p363 = scmp.ne.s32.totalorder %s355, %s357
    %p364 = scmp.eq.s32.totalorder %s27, 1
    %p365 = por %p363, %p364
    %p366 = scmp.ne.s32.totalorder %s357, %s358
    %p367 = scmp.eq.s32.totalorder %s27, 0
    %p368 = por %p366, %p367
    %p369 = scmp.ne.s32.totalorder %s357, %s358
    %p370 = scmp.eq.s32.totalorder %s28, 1
    %p371 = por %p369, %p370
    %p373 = scmp.ne.s32.totalorder %s358, %s372
    %p374 = scmp.eq.s32.totalorder %s28, 0
    %p375 = por %p373, %p374
    %s376 = ssub.s32 %s22, %s29
    %p377 = scmp.eq.s32.totalorder %s376, 0
    %s379 = sadd.s32 %s378, 1
    %s380 = scalar_select %p377, %s378, %s379
    %p383 = pneg %p377
    %p384 = scmp.eq.s32.totalorder %s22, 1
    %p385 = por %p383, %p384
    %p386 = scmp.ne.s32.totalorder %s378, %s381
    %p387 = scmp.eq.s32.totalorder %s22, 0
    %p388 = por %p386, %p387
    %p389 = scmp.ne.s32.totalorder %s378, %s381
    %p390 = scmp.eq.s32.totalorder %s27, 1
    %p391 = por %p389, %p390
    %p392 = scmp.ne.s32.totalorder %s381, %s382
    %p393 = scmp.eq.s32.totalorder %s27, 0
    %p394 = por %p392, %p393
    %p395 = scmp.ne.s32.totalorder %s381, %s382
    %p396 = scmp.eq.s32.totalorder %s28, 1
    %p397 = por %p395, %p396
    %p399 = scmp.ne.s32.totalorder %s382, %s398
    %p400 = scmp.eq.s32.totalorder %s28, 0
    %p401 = por %p399, %p400
    %p402 = scmp.le.s32.totalorder 1, %s22
    %p403 = scmp.lt.s32.totalorder %s22, 3
    %p404 = pnand %p402, %p403
    %p405 = pneg %p404
    // Predicated region
    $region9: #{tpu_custom_call.1} parent=5 // pred_check
      _
    $region10: #{tpu_custom_call.1} parent=5 // pred_check_branch
      %407 = sbr.rel (%p404) target = $region12
    $region11: #{tpu_custom_call.1} parent=5 // pred_region
      %s408 = ssub.s32 %s22, 1
      // Predicated region
      $region13: #{tpu_custom_call.1} parent=11 // pred_check
        %p409 = pneg %p95
      $region14: #{tpu_custom_call.1} parent=11 // pred_check_branch
        %411 = sbr.rel (%p409) target = $region16
      $region15: #{tpu_custom_call.1} parent=11 // pred_region
        _
      $region16: #{tpu_custom_call.1} parent=11 // pred_fallthru
        _
      // Predicated region
      $region17: #{tpu_custom_call.1} parent=11 // pred_check
        %p412 = pneg %p116
      $region18: #{tpu_custom_call.1} parent=11 // pred_check_branch
        %414 = sbr.rel (%p412) target = $region20
      $region19: #{tpu_custom_call.1} parent=11 // pred_region
        _
      $region20: #{tpu_custom_call.1} parent=11 // pred_fallthru
        _
      // Predicated region
      $region21: #{tpu_custom_call.1} parent=11 // pred_check
        %p415 = pneg %p137
      $region22: #{tpu_custom_call.1} parent=11 // pred_check_branch
        %417 = sbr.rel (%p415) target = $region24
      $region23: #{tpu_custom_call.1} parent=11 // pred_region
        _
      $region24: #{tpu_custom_call.1} parent=11 // pred_fallthru
        _
      // Predicated region
      $region25: #{tpu_custom_call.1} parent=11 // pred_check
        %p418 = pneg %p158
      $region26: #{tpu_custom_call.1} parent=11 // pred_check_branch
        %420 = sbr.rel (%p418) target = $region28
      $region27: #{tpu_custom_call.1} parent=11 // pred_region
        _
      $region28: #{tpu_custom_call.1} parent=11 // pred_fallthru
        _
      // Predicated region
      $region29: #{tpu_custom_call.1} parent=11 // pred_check
        %p421 = pneg %p179
      $region30: #{tpu_custom_call.1} parent=11 // pred_check_branch
        %423 = sbr.rel (%p421) target = $region32
      $region31: #{tpu_custom_call.1} parent=11 // pred_region
        _
      $region32: #{tpu_custom_call.1} parent=11 // pred_fallthru
        _
      // Predicated region
      $region33: #{tpu_custom_call.1} parent=11 // pred_check
        %p424 = pneg %p200
      $region34: #{tpu_custom_call.1} parent=11 // pred_check_branch
        %426 = sbr.rel (%p424) target = $region36
      $region35: #{tpu_custom_call.1} parent=11 // pred_region
        _
      $region36: #{tpu_custom_call.1} parent=11 // pred_fallthru
        _
      // Predicated region
      $region37: #{tpu_custom_call.1} parent=11 // pred_check
        %p427 = pneg %p221
      $region38: #{tpu_custom_call.1} parent=11 // pred_check_branch
        %429 = sbr.rel (%p427) target = $region40
      $region39: #{tpu_custom_call.1} parent=11 // pred_region
        _
      $region40: #{tpu_custom_call.1} parent=11 // pred_fallthru
        _
      // Predicated region
      $region41: #{tpu_custom_call.1} parent=11 // pred_check
        %p430 = pneg %p242
      $region42: #{tpu_custom_call.1} parent=11 // pred_check_branch
        %432 = sbr.rel (%p430) target = $region44
      $region43: #{tpu_custom_call.1} parent=11 // pred_region
        _
      $region44: #{tpu_custom_call.1} parent=11 // pred_fallthru
        _
      // Predicated region
      $region45: #{tpu_custom_call.1} parent=11 // pred_check
        %p433 = pneg %p263
      $region46: #{tpu_custom_call.1} parent=11 // pred_check_branch
        %435 = sbr.rel (%p433) target = $region48
      $region47: #{tpu_custom_call.1} parent=11 // pred_region
        _
      $region48: #{tpu_custom_call.1} parent=11 // pred_fallthru
        _
      // Predicated region
      $region49: #{tpu_custom_call.1} parent=11 // pred_check
        %p436 = pneg %p284
      $region50: #{tpu_custom_call.1} parent=11 // pred_check_branch
        %438 = sbr.rel (%p436) target = $region52
      $region51: #{tpu_custom_call.1} parent=11 // pred_region
        _
      $region52: #{tpu_custom_call.1} parent=11 // pred_fallthru
        _
      // Predicated region
      $region53: #{tpu_custom_call.1} parent=11 // pred_check
        %p439 = pneg %p305
      $region54: #{tpu_custom_call.1} parent=11 // pred_check_branch
        %441 = sbr.rel (%p439) target = $region56
      $region55: #{tpu_custom_call.1} parent=11 // pred_region
        _
      $region56: #{tpu_custom_call.1} parent=11 // pred_fallthru
        _
      // Predicated region
      $region57: #{tpu_custom_call.1} parent=11 // pred_check
        %p442 = pneg %p326
      $region58: #{tpu_custom_call.1} parent=11 // pred_check_branch
        %444 = sbr.rel (%p442) target = $region60
      $region59: #{tpu_custom_call.1} parent=11 // pred_region
        _
      $region60: #{tpu_custom_call.1} parent=11 // pred_fallthru
        _
      // Predicated region
      $region61: #{tpu_custom_call.1} parent=11 // pred_check
        %p445 = pneg %p347
      $region62: #{tpu_custom_call.1} parent=11 // pred_check_branch
        %447 = sbr.rel (%p445) target = $region64
      $region63: #{tpu_custom_call.1} parent=11 // pred_region
        _
      $region64: #{tpu_custom_call.1} parent=11 // pred_fallthru
        _
      // Predicated region
      $region65: #{tpu_custom_call.1} parent=11 // pred_check
        %p448 = pneg %p368
      $region66: #{tpu_custom_call.1} parent=11 // pred_check_branch
        %450 = sbr.rel (%p448) target = $region68
      $region67: #{tpu_custom_call.1} parent=11 // pred_region
        _
      $region68: #{tpu_custom_call.1} parent=11 // pred_fallthru
        _
    $region12: #{tpu_custom_call.1} parent=5 // pred_fallthru
      _
    %p451 = scmp.lt.s32.totalorder %s22, 2
    // Predicated region
    $region69: #{tpu_custom_call.1} parent=5 // pred_check
      %p452 = pneg %p451
    $region70: #{tpu_custom_call.1} parent=5 // pred_check_branch
      %454 = sbr.rel (%p452) target = $region72
    $region71: #{tpu_custom_call.1} parent=5 // pred_region
      // Predicated region
      $region73: #{tpu_custom_call.1} parent=71 // pred_check
        %p455 = pneg %p42
      $region74: #{tpu_custom_call.1} parent=71 // pred_check_branch
        %457 = sbr.rel (%p455) target = $region76
      $region75: #{tpu_custom_call.1} parent=71 // pred_region
        %s458 = smul.u32 8, %s22
        %p459 = scmp.lt.s32.totalorder %s458, 15
        %s460 = scalar_select %p459, %s458, 15
        %s461 = smul.addr %s460, 4
        %s462 = scalar_lea.vmem %s0, %s461
        %s463 = smul.u32 8, %s22
      $region76: #{tpu_custom_call.1} parent=71 // pred_fallthru
        _
      // Predicated region
      $region77: #{tpu_custom_call.1} parent=71 // pred_check
        %p464 = pneg %p68
      $region78: #{tpu_custom_call.1} parent=71 // pred_check_branch
        %466 = sbr.rel (%p464) target = $region80
      $region79: #{tpu_custom_call.1} parent=71 // pred_region
        %s467 = smul.u32 8, %s22
        %p468 = scmp.lt.s32.totalorder %s467, 15
        %s469 = scalar_select %p468, %s467, 15
        %s470 = smul.addr %s469, 8
        %s471 = scalar_lea.vmem %s1, %s470
        %s472 = smul.u32 8, %s22
      $region80: #{tpu_custom_call.1} parent=71 // pred_fallthru
        _
    $region72: #{tpu_custom_call.1} parent=5 // pred_fallthru
      _
    %p473 = scmp.le.s32.totalorder 1, %s22
    %p474 = scmp.lt.s32.totalorder %s22, 3
    %p475 = pnand %p473, %p474
    %p476 = pneg %p475
    // Predicated region
    $region81: #{tpu_custom_call.1} parent=5 // pred_check
      _
    $region82: #{tpu_custom_call.1} parent=5 // pred_check_branch
      %478 = sbr.rel (%p475) target = $region84
    $region83: #{tpu_custom_call.1} parent=5 // pred_region
      %s479 = ssub.s32 %s22, 1
      %s480 = smul.u32 8, %s27
      %p481 = scmp.lt.s32.totalorder %s480, 15
      %s482 = scalar_select %p481, %s480, 15
      %s483 = smul.addr %s482, 4
      %s484 = scalar_lea.vmem %s0, %s483
      %p485 = pneg %p48
      %p486 = pneg %p45
      %s487 = smul.u32 8, %s27
      %p488 = scmp.lt.s32.totalorder %s487, 15
      %s489 = scalar_select %p488, %s487, 15
      %s490 = smul.addr %s489, 8
      %s491 = scalar_lea.vmem %s1, %s490
      %p492 = pneg %p74
      %p493 = pneg %p71
      %p494 = pneg %p95
      %p495 = pneg %p92
      %p496 = pneg %p116
      %p497 = pneg %p113
      %p498 = pneg %p137
      %p499 = pneg %p134
      %p500 = pneg %p158
      %p501 = pneg %p155
      %p502 = pneg %p179
      %p503 = pneg %p176
      %p504 = pneg %p200
      %p505 = pneg %p197
      %p506 = pneg %p221
      %p507 = pneg %p218
      %p508 = pneg %p242
      %p509 = pneg %p239
      %p510 = pneg %p263
      %p511 = pneg %p260
      %p512 = pneg %p284
      %p513 = pneg %p281
      %p514 = pneg %p305
      %p515 = pneg %p302
      %p516 = pneg %p326
      %p517 = pneg %p323
      %p518 = pneg %p347
      %p519 = pneg %p344
      %p520 = pneg %p368
      %p521 = pneg %p365
      %p522 = pneg %p394
      %p523 = pneg %p391
      %s524 = smul.u32 8, %s27
      %p525 = scmp.lt.s32.totalorder %s524, 15
      %s526 = scalar_select %p525, %s524, 15
      %s527 = smul.addr %s526, 8
      %s528 = scalar_lea.vmem %s16, %s527
      %s529 = smul.u32 8, %s27
      %p530 = scmp.lt.s32.totalorder %s529, 15
      %s531 = scalar_select %p530, %s529, 15
      %s532 = smul.addr %s531, 4
      %s533 = scalar_lea.vmem %s0, %s532
      %s534 = smul.u32 8, %s27
      %s535 = smul.u32 8, %s27
      %p536 = scmp.lt.s32.totalorder %s535, 15
      %s537 = scalar_select %p536, %s535, 15
      %s538 = smul.addr %s537, 8
      %s539 = scalar_lea.vmem %s1, %s538
      %s540 = smul.u32 8, %s27
      %s541 = smul.u32 8, %s27
      %p542 = scmp.lt.s32.totalorder %s541, 15
      %s543 = scalar_select %p542, %s541, 15
      %s544 = smul.addr %s543, 8
      %s545 = scalar_lea.vmem %s16, %s544
      %s546 = smul.u32 8, %s27
      %v548 = vld [vmem:[%s539] sm:$0xff]
      %v549 = vld [vmem:[%s539 + $0x8] sm:$0xff]
      %v550 = vld [vmem:[%s539 + $0x10] sm:$0xff]
      %v551 = vld [vmem:[%s539 + $0x18] sm:$0xff]
      %v552 = vld [vmem:[%s539 + $0x20] sm:$0xff]
      %v553 = vld [vmem:[%s539 + $0x28] sm:$0xff]
      %v554 = vld [vmem:[%s539 + $0x30] sm:$0xff]
      %v555 = vld [vmem:[%s539 + $0x38] sm:$0xff]
      %v556 = vld [vmem:[%s533] sm:$0xf]
      %v557 = vld [vmem:[%s533 + $0x4] sm:$0xf]
      %v558 = vld [vmem:[%s533 + $0x8] sm:$0xf]
      %v559 = vld [vmem:[%s533 + $0xc] sm:$0xf]
      %v560 = vld [vmem:[%s533 + $0x10] sm:$0xf]
      %v561 = vld [vmem:[%s533 + $0x14] sm:$0xf]
      %v562 = vld [vmem:[%s533 + $0x18] sm:$0xf]
      %v563 = vld [vmem:[%s533 + $0x1c] sm:$0xf]
      %v564 = vunpack.c.l.bf16 %v556
      %v565 = vunpack.c.l.bf16 %v557
      %v566 = vunpack.c.l.bf16 %v558
      %v567 = vunpack.c.l.bf16 %v559
      %v568 = vunpack.c.l.bf16 %v560
      %v569 = vunpack.c.l.bf16 %v561
      %v570 = vunpack.c.l.bf16 %v562
      %v571 = vunpack.c.l.bf16 %v563
      %v572 = vpack.c.bf16 %v549, %v548
      %v573 = vpack.c.bf16 %v551, %v550
      %v574 = vpack.c.bf16 %v553, %v552
      %v575 = vpack.c.bf16 %v555, %v554
      %v576 = vld [vmem:[%s4] sm:$0xf]
      %v577 = vld [vmem:[%s4 + $0x4] sm:$0xf]
      %v578 = vld [vmem:[%s4 + $0x8] sm:$0xf]
      %v579 = vld [vmem:[%s4 + $0xc] sm:$0xf]
      %v580 = vld [vmem:[%s5] sm:$0x1]
      %v582 = vlaneseq
      %v583 = vshrl.u32 %v582, 7
      %v584 = vsub.s32 0, %v583
      %v585 = vrot.slane %v580, %v584
      %v591 = vunpack.c.l.b16 %v576
      %v592 = vunpack.c.l.b16 %v577
      %v593 = vunpack.c.l.b16 %v578
      %v594 = vunpack.c.l.b16 %v579
      %v595 = vpack.c.b16 %v592, %v591
      %v596 = vpack.c.b16 %v594, %v593
      %vm599 = vcmask 261120
      %v601 = vsel %vm599, %v572, 0
      %v604 = vsel %vm599, %v573, 0
      %v607 = vsel %vm599, %v574, 0
      %v610 = vsel %vm599, %v575, 0
      %612 = vmatprep.subr.bf16.mxu0 0
      %613 = vmatpush1.bf16.msra.mxu0 %v595
      %614 = vmatprep.subr.bf16.mxu0 0
      %615 = vmatpush1.bf16.msra.mxu0 %v596
      %616 = vmatprep.subr.bf16.mxu0 0
      %617 = vmatpush1.bf16.msra.mxu0 0
      %618 = vmatprep.subr.bf16.mxu0 0
      %619 = vmatpush1.bf16.msra.mxu0 0
      %620 = vmatprep.subr.bf16.mxu0 0
      %621 = vmatpush1.bf16.msra.mxu0 0
      %622 = vmatprep.subr.bf16.mxu0 0
      %623 = vmatpush1.bf16.msra.mxu0 0
      %624 = vmatprep.subr.bf16.mxu0 0
      %625 = vmatpush1.bf16.msra.mxu0 0
      %626 = vmatprep.subr.bf16.mxu0 0
      %627 = vmatpush1.bf16.msra.mxu0 0
      %628 = vmatprep.subr.bf16.mxu0 0
      %629 = vmatpush1.bf16.msra.mxu0 0
      %630 = vmatprep.subr.bf16.mxu0 0
      %631 = vmatpush1.bf16.msra.mxu0 0
      %632 = vmatprep.subr.bf16.mxu0 0
      %633 = vmatpush1.bf16.msra.mxu0 0
      %634 = vmatprep.subr.bf16.mxu0 0
      %635 = vmatpush1.bf16.msra.mxu0 0
      %636 = vmatprep.subr.bf16.mxu0 0
      %637 = vmatpush1.bf16.msra.mxu0 0
      %638 = vmatprep.subr.bf16.mxu0 0
      %639 = vmatpush1.bf16.msra.mxu0 0
      %640 = vmatprep.subr.bf16.mxu0 0
      %641 = vmatpush1.bf16.msra.mxu0 0
      %642 = vmatprep.subr.bf16.mxu0 0
      %643 = vmatpush1.bf16.msra.mxu0 0
      %644 = vmatprep.mubr.bf16.mxu0 0
      %645 = vmatmul.mubr.bf16.gmra.mrb[0].mxu0 %v601
      %v646 = vpop.f32.mrb[0].mxu0
      %v647 = vadd.f32 %v585, %v646
      %v648 = vpop.f32.mrb[0].mxu0
      %v649 = vpop.f32.mrb[0].mxu0
      %v650 = vadd.f32 %v585, %v649
      %v651 = vpop.f32.mrb[0].mxu0
      %652 = vmatprep.mubr.bf16.mxu0 0
      %653 = vmatmul.mubr.bf16.gmra.mrb[0].mxu0 %v604
      %v654 = vpop.f32.mrb[0].mxu0
      %v655 = vadd.f32 %v585, %v654
      %v656 = vpop.f32.mrb[0].mxu0
      %v657 = vpop.f32.mrb[0].mxu0
      %v658 = vadd.f32 %v585, %v657
      %v659 = vpop.f32.mrb[0].mxu0
      %660 = vmatprep.mubr.bf16.mxu0 0
      %661 = vmatmul.mubr.bf16.gmra.mrb[0].mxu0 %v607
      %v662 = vpop.f32.mrb[0].mxu0
      %v663 = vadd.f32 %v585, %v662
      %v664 = vpop.f32.mrb[0].mxu0
      %v665 = vpop.f32.mrb[0].mxu0
      %v666 = vadd.f32 %v585, %v665
      %v667 = vpop.f32.mrb[0].mxu0
      %668 = vmatprep.mubr.bf16.mxu0 0
      %669 = vmatmul.mubr.bf16.gmra.mrb[0].mxu0 %v610
      %v670 = vpop.f32.mrb[0].mxu0
      %v671 = vadd.f32 %v585, %v670
      %v672 = vpop.f32.mrb[0].mxu0
      %v673 = vpop.f32.mrb[0].mxu0
      %v674 = vadd.f32 %v585, %v673
      %v675 = vpop.f32.mrb[0].mxu0
      %676 = vdwg.mxu0
      %v677 = vld [vmem:[%s2] sm:$0xf]
      %v678 = vld [vmem:[%s2 + $0x4] sm:$0xf]
      %v679 = vld [vmem:[%s2 + $0x8] sm:$0xf]
      %v680 = vld [vmem:[%s2 + $0xc] sm:$0xf]
      %v681 = vld [vmem:[%s3] sm:$0xf]
      %v682 = vld [vmem:[%s3 + $0x4] sm:$0xf]
      %v683 = vld [vmem:[%s3 + $0x8] sm:$0xf]
      %v684 = vld [vmem:[%s3 + $0xc] sm:$0xf]
      %v685 = vld [vmem:[%s3 + $0x10] sm:$0xf]
      %v686 = vld [vmem:[%s3 + $0x14] sm:$0xf]
      %v687 = vld [vmem:[%s3 + $0x18] sm:$0xf]
      %v688 = vld [vmem:[%s3 + $0x1c] sm:$0xf]
      %v689 = vld [vmem:[%s3 + $0x20] sm:$0xf]
      %v690 = vld [vmem:[%s3 + $0x24] sm:$0xf]
      %v691 = vld [vmem:[%s3 + $0x28] sm:$0xf]
      %v692 = vld [vmem:[%s3 + $0x2c] sm:$0xf]
      %v693 = vld [vmem:[%s3 + $0x30] sm:$0xf]
      %v694 = vld [vmem:[%s3 + $0x34] sm:$0xf]
      %v695 = vld [vmem:[%s3 + $0x38] sm:$0xf]
      %v696 = vld [vmem:[%s3 + $0x3c] sm:$0xf]
      %v697 = vld [vmem:[%s6] sm:$0xf]
      %v698 = vld [vmem:[%s6 + $0x4] sm:$0xf]
      %v699 = vld [vmem:[%s6 + $0x8] sm:$0xf]
      %v700 = vld [vmem:[%s6 + $0xc] sm:$0xf]
      %v701 = vld [vmem:[%s7] sm:$0x1]
      %v702 = vpack.c.bf16 %v650, %v647
      %v703 = vpack.c.bf16 %v658, %v655
      %v704 = vpack.c.bf16 %v666, %v663
      %v705 = vpack.c.bf16 %v674, %v671
      %vm706 = vcmask 64512
      %v708 = vsel %vm706, %v702, 0
      %v711 = vsel %vm706, %v703, 0
      %v714 = vsel %vm706, %v704, 0
      %v717 = vsel %vm706, %v705, 0
      %vm719 = vcmask 1043456
      %v721 = vsel %vm719, %v677, 0
      %723 = vmatprep.subr.bf16.mxu0 0
      %724 = vmatpush1.bf16.msra.mxu0 %v721
      %725 = vmatprep.subr.bf16.mxu0 0
      %726 = vmatpush1.bf16.msra.mxu0 0
      %727 = vmatprep.subr.bf16.mxu0 0
      %728 = vmatpush1.bf16.msra.mxu0 0
      %729 = vmatprep.subr.bf16.mxu0 0
      %730 = vmatpush1.bf16.msra.mxu0 0
      %731 = vmatprep.subr.bf16.mxu0 0
      %732 = vmatpush1.bf16.msra.mxu0 0
      %733 = vmatprep.subr.bf16.mxu0 0
      %734 = vmatpush1.bf16.msra.mxu0 0
      %735 = vmatprep.subr.bf16.mxu0 0
      %736 = vmatpush1.bf16.msra.mxu0 0
      %737 = vmatprep.subr.bf16.mxu0 0
      %738 = vmatpush1.bf16.msra.mxu0 0
      %739 = vmatprep.subr.bf16.mxu0 0
      %740 = vmatpush1.bf16.msra.mxu0 0
      %741 = vmatprep.subr.bf16.mxu0 0
      %742 = vmatpush1.bf16.msra.mxu0 0
      %743 = vmatprep.subr.bf16.mxu0 0
      %744 = vmatpush1.bf16.msra.mxu0 0
      %745 = vmatprep.subr.bf16.mxu0 0
      %746 = vmatpush1.bf16.msra.mxu0 0
      %747 = vmatprep.subr.bf16.mxu0 0
      %748 = vmatpush1.bf16.msra.mxu0 0
      %749 = vmatprep.subr.bf16.mxu0 0
      %750 = vmatpush1.bf16.msra.mxu0 0
      %751 = vmatprep.subr.bf16.mxu0 0
      %752 = vmatpush1.bf16.msra.mxu0 0
      %753 = vmatprep.subr.bf16.mxu0 0
      %754 = vmatpush1.bf16.msra.mxu0 0
      %755 = vmatprep.mubr.bf16.mxu0 0
      %756 = vmatmul.mubr.bf16.gmra.mrb[0].mxu0 %v708
      %v757 = vpop.f32.mrb[0].mxu0
      %v758 = vadd.f32 %v564, %v757
      %v759 = vpop.f32.mrb[0].mxu0
      %v760 = vpop.f32.mrb[0].mxu0
      %v761 = vadd.f32 %v565, %v760
      %v762 = vpop.f32.mrb[0].mxu0
      %763 = vmatprep.mubr.bf16.mxu0 0
      %764 = vmatmul.mubr.bf16.gmra.mrb[0].mxu0 %v711
      %v765 = vpop.f32.mrb[0].mxu0
      %v766 = vadd.f32 %v566, %v765
      %v767 = vpop.f32.mrb[0].mxu0
      %v768 = vpop.f32.mrb[0].mxu0
      %v769 = vadd.f32 %v567, %v768
      %v770 = vpop.f32.mrb[0].mxu0
      %771 = vmatprep.mubr.bf16.mxu0 0
      %772 = vmatmul.mubr.bf16.gmra.mrb[0].mxu0 %v714
      %v773 = vpop.f32.mrb[0].mxu0
      %v774 = vadd.f32 %v568, %v773
      %v775 = vpop.f32.mrb[0].mxu0
      %v776 = vpop.f32.mrb[0].mxu0
      %v777 = vadd.f32 %v569, %v776
      %v778 = vpop.f32.mrb[0].mxu0
      %779 = vmatprep.mubr.bf16.mxu0 0
      %780 = vmatmul.mubr.bf16.gmra.mrb[0].mxu0 %v717
      %v781 = vpop.f32.mrb[0].mxu0
      %v782 = vadd.f32 %v570, %v781
      %v783 = vpop.f32.mrb[0].mxu0
      %v784 = vpop.f32.mrb[0].mxu0
      %v785 = vadd.f32 %v571, %v784
      %v786 = vpop.f32.mrb[0].mxu0
      %787 = vdwg.mxu0
      %788 = vmax.xlane.f32.xlu0 %v758
      %v789 = vpop.xlane.xlu0 %788
      %790 = vmax.xlane.f32.xlu0 %v761
      %v791 = vpop.xlane.xlu0 %790
      %792 = vmax.xlane.f32.xlu0 %v766
      %v793 = vpop.xlane.xlu0 %792
      %794 = vmax.xlane.f32.xlu0 %v769
      %v795 = vpop.xlane.xlu0 %794
      %796 = vmax.xlane.f32.xlu0 %v774
      %v797 = vpop.xlane.xlu0 %796
      %798 = vmax.xlane.f32.xlu0 %v777
      %v799 = vpop.xlane.xlu0 %798
      %800 = vmax.xlane.f32.xlu0 %v782
      %v801 = vpop.xlane.xlu0 %800
      %802 = vmax.xlane.f32.xlu0 %v785
      %v803 = vpop.xlane.xlu0 %802
      %v804 = vmax.f32 %v789, -1e+29
      %v805 = vmax.f32 %v791, -1e+29
      %v806 = vmax.f32 %v793, -1e+29
      %v807 = vmax.f32 %v795, -1e+29
      %v808 = vmax.f32 %v797, -1e+29
      %v809 = vmax.f32 %v799, -1e+29
      %v810 = vmax.f32 %v801, -1e+29
      %v811 = vmax.f32 %v803, -1e+29
      %v812 = vsub.f32 %v758, %v804
      %v813 = vsub.f32 %v761, %v805
      %v814 = vsub.f32 %v766, %v806
      %v815 = vsub.f32 %v769, %v807
      %v816 = vsub.f32 %v774, %v808
      %v817 = vsub.f32 %v777, %v809
      %v818 = vsub.f32 %v782, %v810
      %v819 = vsub.f32 %v785, %v811
      %v820 = vpack.c.bf16 %v813, %v812
      %v821 = vpack.c.bf16 %v815, %v814
      %v822 = vpack.c.bf16 %v817, %v816
      %v823 = vpack.c.bf16 %v819, %v818
      %v825 = vmul.bf16 %v820, 1069105081
      %v826 = vpow.bf16.pop %v825
      %v828 = vmul.bf16 %v821, 1069105081
      %v829 = vpow.bf16.pop %v828
      %v831 = vmul.bf16 %v822, 1069105081
      %v832 = vpow.bf16.pop %v831
      %v834 = vmul.bf16 %v823, 1069105081
      %v835 = vpow.bf16.pop %v834
      %v852 = vunpack.c.l.b16 %v681
      %v853 = vunpack.c.l.b16 %v682
      %v854 = vunpack.c.l.b16 %v683
      %v855 = vunpack.c.l.b16 %v684
      %v856 = vunpack.c.l.b16 %v685
      %v857 = vunpack.c.l.b16 %v686
      %v858 = vunpack.c.l.b16 %v687
      %v859 = vunpack.c.l.b16 %v688
      %v860 = vunpack.c.l.b16 %v689
      %v861 = vunpack.c.l.b16 %v690
      %v862 = vunpack.c.l.b16 %v691
      %v863 = vunpack.c.l.b16 %v692
      %v864 = vunpack.c.l.b16 %v693
      %v865 = vunpack.c.l.b16 %v694
      %v866 = vunpack.c.l.b16 %v695
      %v867 = vunpack.c.l.b16 %v696
      %v868 = vpack.c.b16 %v853, %v852
      %v869 = vpack.c.b16 %v855, %v854
      %v870 = vpack.c.b16 %v857, %v856
      %v871 = vpack.c.b16 %v859, %v858
      %v872 = vpack.c.b16 %v861, %v860
      %v873 = vpack.c.b16 %v863, %v862
      %v874 = vpack.c.b16 %v865, %v864
      %v875 = vpack.c.b16 %v867, %v866
      %884 = vmatprep.subr.bf16.mxu0 0
      %885 = vmatpush1.bf16.msra.mxu0 %v868
      %886 = vmatprep.subr.bf16.mxu0 0
      %887 = vmatpush1.bf16.msra.mxu0 %v869
      %888 = vmatprep.subr.bf16.mxu0 0
      %889 = vmatpush1.bf16.msra.mxu0 %v870
      %890 = vmatprep.subr.bf16.mxu0 0
      %891 = vmatpush1.bf16.msra.mxu0 %v871
      %892 = vmatprep.subr.bf16.mxu0 0
      %893 = vmatpush1.bf16.msra.mxu0 %v872
      %894 = vmatprep.subr.bf16.mxu0 0
      %895 = vmatpush1.bf16.msra.mxu0 %v873
      %896 = vmatprep.subr.bf16.mxu0 0
      %897 = vmatpush1.bf16.msra.mxu0 %v874
      %898 = vmatprep.subr.bf16.mxu0 0
      %899 = vmatpush1.bf16.msra.mxu0 %v875
      %900 = vmatprep.subr.bf16.mxu0 0
      %901 = vmatpush1.bf16.msra.mxu0 0
      %902 = vmatprep.subr.bf16.mxu0 0
      %903 = vmatpush1.bf16.msra.mxu0 0
      %904 = vmatprep.subr.bf16.mxu0 0
      %905 = vmatpush1.bf16.msra.mxu0 0
      %906 = vmatprep.subr.bf16.mxu0 0
      %907 = vmatpush1.bf16.msra.mxu0 0
      %908 = vmatprep.subr.bf16.mxu0 0
      %909 = vmatpush1.bf16.msra.mxu0 0
      %910 = vmatprep.subr.bf16.mxu0 0
      %911 = vmatpush1.bf16.msra.mxu0 0
      %912 = vmatprep.subr.bf16.mxu0 0
      %913 = vmatpush1.bf16.msra.mxu0 0
      %914 = vmatprep.subr.bf16.mxu0 0
      %915 = vmatpush1.bf16.msra.mxu0 0
      %916 = vmatprep.mubr.bf16.mxu0 0
      %917 = vmatmul.mubr.bf16.gmra.mrb[0].mxu0 %v826
      %v918 = vpop.f32.mrb[0].mxu0
      %v919 = vadd.f32 0.0, %v918
      %v920 = vpop.f32.mrb[0].mxu0
      %v921 = vpop.f32.mrb[0].mxu0
      %v922 = vadd.f32 0.0, %v921
      %v923 = vpop.f32.mrb[0].mxu0
      %924 = vmatprep.mubr.bf16.mxu0 0
      %925 = vmatmul.mubr.bf16.gmra.mrb[0].mxu0 %v829
      %v926 = vpop.f32.mrb[0].mxu0
      %v927 = vadd.f32 0.0, %v926
      %v928 = vpop.f32.mrb[0].mxu0
      %v929 = vpop.f32.mrb[0].mxu0
      %v930 = vadd.f32 0.0, %v929
      %v931 = vpop.f32.mrb[0].mxu0
      %932 = vmatprep.mubr.bf16.mxu0 0
      %933 = vmatmul.mubr.bf16.gmra.mrb[0].mxu0 %v832
      %v934 = vpop.f32.mrb[0].mxu0
      %v935 = vadd.f32 0.0, %v934
      %v936 = vpop.f32.mrb[0].mxu0
      %v937 = vpop.f32.mrb[0].mxu0
      %v938 = vadd.f32 0.0, %v937
      %v939 = vpop.f32.mrb[0].mxu0
      %940 = vmatprep.mubr.bf16.mxu0 0
      %941 = vmatmul.mubr.bf16.gmra.mrb[0].mxu0 %v835
      %v942 = vpop.f32.mrb[0].mxu0
      %v943 = vadd.f32 0.0, %v942
      %v944 = vpop.f32.mrb[0].mxu0
      %v945 = vpop.f32.mrb[0].mxu0
      %v946 = vadd.f32 0.0, %v945
      %v947 = vpop.f32.mrb[0].mxu0
      %948 = vdwg.mxu0
      %v949 = vadd.f32 %v919, 1e-16
      %v950 = vadd.f32 %v922, 1e-16
      %v951 = vadd.f32 %v927, 1e-16
      %v952 = vadd.f32 %v930, 1e-16
      %v953 = vadd.f32 %v935, 1e-16
      %v954 = vadd.f32 %v938, 1e-16
      %v955 = vadd.f32 %v943, 1e-16
      %v956 = vadd.f32 %v946, 1e-16
      %v957 = vrcp.pop %v949
      %v958 = vrcp.pop %v950
      %v959 = vrcp.pop %v951
      %v960 = vrcp.pop %v952
      %v961 = vrcp.pop %v953
      %v962 = vrcp.pop %v954
      %v963 = vrcp.pop %v955
      %v964 = vrcp.pop %v956
      %966 = vset.pattern.permute.xlu0 8
      %967 = vperm.xlu0 %966, %v957
      %v968 = vpop.permute.xlu0 %967
      %971 = vset.pattern.permute.xlu0 8
      %972 = vperm.xlu0 %971, %v958
      %v973 = vpop.permute.xlu0 %972
      %976 = vset.pattern.permute.xlu0 8
      %977 = vperm.xlu0 %976, %v959
      %v978 = vpop.permute.xlu0 %977
      %981 = vset.pattern.permute.xlu0 8
      %982 = vperm.xlu0 %981, %v960
      %v983 = vpop.permute.xlu0 %982
      %986 = vset.pattern.permute.xlu0 8
      %987 = vperm.xlu0 %986, %v961
      %v988 = vpop.permute.xlu0 %987
      %991 = vset.pattern.permute.xlu0 8
      %992 = vperm.xlu0 %991, %v962
      %v993 = vpop.permute.xlu0 %992
      %996 = vset.pattern.permute.xlu0 8
      %997 = vperm.xlu0 %996, %v963
      %v998 = vpop.permute.xlu0 %997
      %1001 = vset.pattern.permute.xlu0 8
      %1002 = vperm.xlu0 %1001, %v964
      %v1003 = vpop.permute.xlu0 %1002
      %v1005 = vmul.f32 %v919, %v968
      %v1006 = vmul.f32 %v922, %v973
      %v1007 = vmul.f32 %v927, %v978
      %v1008 = vmul.f32 %v930, %v983
      %v1009 = vmul.f32 %v935, %v988
      %v1010 = vmul.f32 %v938, %v993
      %v1011 = vmul.f32 %v943, %v998
      %v1012 = vmul.f32 %v946, %v1003
      %v1013 = vpack.c.bf16 %v1006, %v1005
      %v1014 = vpack.c.bf16 %v1008, %v1007
      %v1015 = vpack.c.bf16 %v1010, %v1009
      %v1016 = vpack.c.bf16 %v1012, %v1011
      %v1018 = vsel %vm706, %v1013, 0
      %v1021 = vsel %vm706, %v1014, 0
      %v1024 = vsel %vm706, %v1015, 0
      %v1027 = vsel %vm706, %v1016, 0
      %v1030 = vsel %vm719, %v697, 0
      %1032 = vmatprep.subr.bf16.mxu0 0
      %1033 = vmatpush1.bf16.msra.mxu0 %v1030
      %1034 = vmatprep.subr.bf16.mxu0 0
      %1035 = vmatpush1.bf16.msra.mxu0 0
      %1036 = vmatprep.subr.bf16.mxu0 0
      %1037 = vmatpush1.bf16.msra.mxu0 0
      %1038 = vmatprep.subr.bf16.mxu0 0
      %1039 = vmatpush1.bf16.msra.mxu0 0
      %1040 = vmatprep.subr.bf16.mxu0 0
      %1041 = vmatpush1.bf16.msra.mxu0 0
      %1042 = vmatprep.subr.bf16.mxu0 0
      %1043 = vmatpush1.bf16.msra.mxu0 0
      %1044 = vmatprep.subr.bf16.mxu0 0
      %1045 = vmatpush1.bf16.msra.mxu0 0
      %1046 = vmatprep.subr.bf16.mxu0 0
      %1047 = vmatpush1.bf16.msra.mxu0 0
      %1048 = vmatprep.subr.bf16.mxu0 0
      %1049 = vmatpush1.bf16.msra.mxu0 0
      %1050 = vmatprep.subr.bf16.mxu0 0
      %1051 = vmatpush1.bf16.msra.mxu0 0
      %1052 = vmatprep.subr.bf16.mxu0 0
      %1053 = vmatpush1.bf16.msra.mxu0 0
      %1054 = vmatprep.subr.bf16.mxu0 0
      %1055 = vmatpush1.bf16.msra.mxu0 0
      %1056 = vmatprep.subr.bf16.mxu0 0
      %1057 = vmatpush1.bf16.msra.mxu0 0
      %1058 = vmatprep.subr.bf16.mxu0 0
      %1059 = vmatpush1.bf16.msra.mxu0 0
      %1060 = vmatprep.subr.bf16.mxu0 0
      %1061 = vmatpush1.bf16.msra.mxu0 0
      %1062 = vmatprep.subr.bf16.mxu0 0
      %1063 = vmatpush1.bf16.msra.mxu0 0
      %1064 = vmatprep.mubr.bf16.mxu0 0
      %1065 = vmatmul.mubr.bf16.gmra.mrb[0].mxu0 %v1018
      %v1066 = vpop.f32.mrb[0].mxu0
      %v1067 = vadd.f32 0.0, %v1066
      %v1068 = vpop.f32.mrb[0].mxu0
      %v1069 = vpop.f32.mrb[0].mxu0
      %v1070 = vadd.f32 0.0, %v1069
      %v1071 = vpop.f32.mrb[0].mxu0
      %1072 = vmatprep.mubr.bf16.mxu0 0
      %1073 = vmatmul.mubr.bf16.gmra.mrb[0].mxu0 %v1021
      %v1074 = vpop.f32.mrb[0].mxu0
      %v1075 = vadd.f32 0.0, %v1074
      %v1076 = vpop.f32.mrb[0].mxu0
      %v1077 = vpop.f32.mrb[0].mxu0
      %v1078 = vadd.f32 0.0, %v1077
      %v1079 = vpop.f32.mrb[0].mxu0
      %1080 = vmatprep.mubr.bf16.mxu0 0
      %1081 = vmatmul.mubr.bf16.gmra.mrb[0].mxu0 %v1024
      %v1082 = vpop.f32.mrb[0].mxu0
      %v1083 = vadd.f32 0.0, %v1082
      %v1084 = vpop.f32.mrb[0].mxu0
      %v1085 = vpop.f32.mrb[0].mxu0
      %v1086 = vadd.f32 0.0, %v1085
      %v1087 = vpop.f32.mrb[0].mxu0
      %1088 = vmatprep.mubr.bf16.mxu0 0
      %1089 = vmatmul.mubr.bf16.gmra.mrb[0].mxu0 %v1027
      %v1090 = vpop.f32.mrb[0].mxu0
      %v1091 = vadd.f32 0.0, %v1090
      %v1092 = vpop.f32.mrb[0].mxu0
      %v1093 = vpop.f32.mrb[0].mxu0
      %v1094 = vadd.f32 0.0, %v1093
      %v1095 = vpop.f32.mrb[0].mxu0
      %1096 = vdwg.mxu0
      %v1098 = vlaneseq
      %v1099 = vshrl.u32 %v1098, 7
      %v1100 = vsub.s32 0, %v1099
      %v1101 = vrot.slane %v701, %v1100
      %v1103 = vadd.f32 %v1101, %v1067
      %v1104 = vadd.f32 %v1101, %v1070
      %v1105 = vadd.f32 %v1101, %v1075
      %v1106 = vadd.f32 %v1101, %v1078
      %v1107 = vadd.f32 %v1101, %v1083
      %v1108 = vadd.f32 %v1101, %v1086
      %v1109 = vadd.f32 %v1101, %v1091
      %v1110 = vadd.f32 %v1101, %v1094
      %1115 = vrot.lane.b32.xlu0 %v702, 120
      %v1116 = vpop.permute.xlu0 %1115
      %1117 = vrot.lane.b32.xlu0 %v703, 120
      %v1118 = vpop.permute.xlu0 %1117
      %1119 = vrot.lane.b32.xlu0 %v704, 120
      %v1120 = vpop.permute.xlu0 %1119
      %1121 = vrot.lane.b32.xlu0 %v705, 120
      %v1122 = vpop.permute.xlu0 %1121
      %v1124 = vsel %vm706, %v1116, 0
      %v1127 = vsel %vm706, %v1118, 0
      %v1130 = vsel %vm706, %v1120, 0
      %v1133 = vsel %vm706, %v1122, 0
      %v1136 = vsel %vm719, %v678, 0
      %1138 = vmatprep.subr.bf16.mxu0 0
      %1139 = vmatpush1.bf16.msra.mxu0 %v1136
      %1140 = vmatprep.subr.bf16.mxu0 0
      %1141 = vmatpush1.bf16.msra.mxu0 0
      %1142 = vmatprep.subr.bf16.mxu0 0
      %1143 = vmatpush1.bf16.msra.mxu0 0
      %1144 = vmatprep.subr.bf16.mxu0 0
      %1145 = vmatpush1.bf16.msra.mxu0 0
      %1146 = vmatprep.subr.bf16.mxu0 0
      %1147 = vmatpush1.bf16.msra.mxu0 0
      %1148 = vmatprep.subr.bf16.mxu0 0
      %1149 = vmatpush1.bf16.msra.mxu0 0
      %1150 = vmatprep.subr.bf16.mxu0 0
      %1151 = vmatpush1.bf16.msra.mxu0 0
      %1152 = vmatprep.subr.bf16.mxu0 0
      %1153 = vmatpush1.bf16.msra.mxu0 0
      %1154 = vmatprep.subr.bf16.mxu0 0
      %1155 = vmatpush1.bf16.msra.mxu0 0
      %1156 = vmatprep.subr.bf16.mxu0 0
      %1157 = vmatpush1.bf16.msra.mxu0 0
      %1158 = vmatprep.subr.bf16.mxu0 0
      %1159 = vmatpush1.bf16.msra.mxu0 0
      %1160 = vmatprep.subr.bf16.mxu0 0
      %1161 = vmatpush1.bf16.msra.mxu0 0
      %1162 = vmatprep.subr.bf16.mxu0 0
      %1163 = vmatpush1.bf16.msra.mxu0 0
      %1164 = vmatprep.subr.bf16.mxu0 0
      %1165 = vmatpush1.bf16.msra.mxu0 0
      %1166 = vmatprep.subr.bf16.mxu0 0
      %1167 = vmatpush1.bf16.msra.mxu0 0
      %1168 = vmatprep.subr.bf16.mxu0 0
      %1169 = vmatpush1.bf16.msra.mxu0 0
      %1170 = vmatprep.mubr.bf16.mxu0 0
      %1171 = vmatmul.mubr.bf16.gmra.mrb[0].mxu0 %v1124
      %v1172 = vpop.f32.mrb[0].mxu0
      %v1173 = vadd.f32 %v564, %v1172
      %v1174 = vpop.f32.mrb[0].mxu0
      %v1175 = vpop.f32.mrb[0].mxu0
      %v1176 = vadd.f32 %v565, %v1175
      %v1177 = vpop.f32.mrb[0].mxu0
      %1178 = vmatprep.mubr.bf16.mxu0 0
      %1179 = vmatmul.mubr.bf16.gmra.mrb[0].mxu0 %v1127
      %v1180 = vpop.f32.mrb[0].mxu0
      %v1181 = vadd.f32 %v566, %v1180
      %v1182 = vpop.f32.mrb[0].mxu0
      %v1183 = vpop.f32.mrb[0].mxu0
      %v1184 = vadd.f32 %v567, %v1183
      %v1185 = vpop.f32.mrb[0].mxu0
      %1186 = vmatprep.mubr.bf16.mxu0 0
      %1187 = vmatmul.mubr.bf16.gmra.mrb[0].mxu0 %v1130
      %v1188 = vpop.f32.mrb[0].mxu0
      %v1189 = vadd.f32 %v568, %v1188
      %v1190 = vpop.f32.mrb[0].mxu0
      %v1191 = vpop.f32.mrb[0].mxu0
      %v1192 = vadd.f32 %v569, %v1191
      %v1193 = vpop.f32.mrb[0].mxu0
      %1194 = vmatprep.mubr.bf16.mxu0 0
      %1195 = vmatmul.mubr.bf16.gmra.mrb[0].mxu0 %v1133
      %v1196 = vpop.f32.mrb[0].mxu0
      %v1197 = vadd.f32 %v570, %v1196
      %v1198 = vpop.f32.mrb[0].mxu0
      %v1199 = vpop.f32.mrb[0].mxu0
      %v1200 = vadd.f32 %v571, %v1199
      %v1201 = vpop.f32.mrb[0].mxu0
      %1202 = vdwg.mxu0
      %1203 = vmax.xlane.f32.xlu0 %v1173
      %v1204 = vpop.xlane.xlu0 %1203
      %1205 = vmax.xlane.f32.xlu0 %v1176
      %v1206 = vpop.xlane.xlu0 %1205
      %1207 = vmax.xlane.f32.xlu0 %v1181
      %v1208 = vpop.xlane.xlu0 %1207
      %1209 = vmax.xlane.f32.xlu0 %v1184
      %v1210 = vpop.xlane.xlu0 %1209
      %1211 = vmax.xlane.f32.xlu0 %v1189
      %v1212 = vpop.xlane.xlu0 %1211
      %1213 = vmax.xlane.f32.xlu0 %v1192
      %v1214 = vpop.xlane.xlu0 %1213
      %1215 = vmax.xlane.f32.xlu0 %v1197
      %v1216 = vpop.xlane.xlu0 %1215
      %1217 = vmax.xlane.f32.xlu0 %v1200
      %v1218 = vpop.xlane.xlu0 %1217
      %v1219 = vmax.f32 %v1204, -1e+29
      %v1220 = vmax.f32 %v1206, -1e+29
      %v1221 = vmax.f32 %v1208, -1e+29
      %v1222 = vmax.f32 %v1210, -1e+29
      %v1223 = vmax.f32 %v1212, -1e+29
      %v1224 = vmax.f32 %v1214, -1e+29
      %v1225 = vmax.f32 %v1216, -1e+29
      %v1226 = vmax.f32 %v1218, -1e+29
      %v1227 = vsub.f32 %v1173, %v1219
      %v1228 = vsub.f32 %v1176, %v1220
      %v1229 = vsub.f32 %v1181, %v1221
      %v1230 = vsub.f32 %v1184, %v1222
      %v1231 = vsub.f32 %v1189, %v1223
      %v1232 = vsub.f32 %v1192, %v1224
      %v1233 = vsub.f32 %v1197, %v1225
      %v1234 = vsub.f32 %v1200, %v1226
      %v1235 = vpack.c.bf16 %v1228, %v1227
      %v1236 = vpack.c.bf16 %v1230, %v1229
      %v1237 = vpack.c.bf16 %v1232, %v1231
      %v1238 = vpack.c.bf16 %v1234, %v1233
      %v1240 = vmul.bf16 %v1235, 1069105081
      %v1241 = vpow.bf16.pop %v1240
      %v1243 = vmul.bf16 %v1236, 1069105081
      %v1244 = vpow.bf16.pop %v1243
      %v1246 = vmul.bf16 %v1237, 1069105081
      %v1247 = vpow.bf16.pop %v1246
      %v1249 = vmul.bf16 %v1238, 1069105081
      %v1250 = vpow.bf16.pop %v1249
      %1251 = vrot.lane.b32.xlu0 %v868, 112
      %v1252 = vpop.permute.xlu0 %1251
      %1253 = vrot.lane.b32.xlu0 %v869, 112
      %v1254 = vpop.permute.xlu0 %1253
      %1255 = vrot.lane.b32.xlu0 %v870, 112
      %v1256 = vpop.permute.xlu0 %1255
      %1257 = vrot.lane.b32.xlu0 %v871, 112
      %v1258 = vpop.permute.xlu0 %1257
      %1259 = vrot.lane.b32.xlu0 %v872, 112
      %v1260 = vpop.permute.xlu0 %1259
      %1261 = vrot.lane.b32.xlu0 %v873, 112
      %v1262 = vpop.permute.xlu0 %1261
      %1263 = vrot.lane.b32.xlu0 %v874, 112
      %v1264 = vpop.permute.xlu0 %1263
      %1265 = vrot.lane.b32.xlu0 %v875, 112
      %v1266 = vpop.permute.xlu0 %1265
      %1275 = vmatprep.subr.bf16.mxu0 0
      %1276 = vmatpush1.bf16.msra.mxu0 %v1252
      %1277 = vmatprep.subr.bf16.mxu0 0
      %1278 = vmatpush1.bf16.msra.mxu0 %v1254
      %1279 = vmatprep.subr.bf16.mxu0 0
      %1280 = vmatpush1.bf16.msra.mxu0 %v1256
      %1281 = vmatprep.subr.bf16.mxu0 0
      %1282 = vmatpush1.bf16.msra.mxu0 %v1258
      %1283 = vmatprep.subr.bf16.mxu0 0
      %1284 = vmatpush1.bf16.msra.mxu0 %v1260
      %1285 = vmatprep.subr.bf16.mxu0 0
      %1286 = vmatpush1.bf16.msra.mxu0 %v1262
      %1287 = vmatprep.subr.bf16.mxu0 0
      %1288 = vmatpush1.bf16.msra.mxu0 %v1264
      %1289 = vmatprep.subr.bf16.mxu0 0
      %1290 = vmatpush1.bf16.msra.mxu0 %v1266
      %1291 = vmatprep.subr.bf16.mxu0 0
      %1292 = vmatpush1.bf16.msra.mxu0 0
      %1293 = vmatprep.subr.bf16.mxu0 0
      %1294 = vmatpush1.bf16.msra.mxu0 0
      %1295 = vmatprep.subr.bf16.mxu0 0
      %1296 = vmatpush1.bf16.msra.mxu0 0
      %1297 = vmatprep.subr.bf16.mxu0 0
      %1298 = vmatpush1.bf16.msra.mxu0 0
      %1299 = vmatprep.subr.bf16.mxu0 0
      %1300 = vmatpush1.bf16.msra.mxu0 0
      %1301 = vmatprep.subr.bf16.mxu0 0
      %1302 = vmatpush1.bf16.msra.mxu0 0
      %1303 = vmatprep.subr.bf16.mxu0 0
      %1304 = vmatpush1.bf16.msra.mxu0 0
      %1305 = vmatprep.subr.bf16.mxu0 0
      %1306 = vmatpush1.bf16.msra.mxu0 0
      %1307 = vmatprep.mubr.bf16.mxu0 0
      %1308 = vmatmul.mubr.bf16.gmra.mrb[0].mxu0 %v1241
      %v1309 = vpop.f32.mrb[0].mxu0
      %v1310 = vadd.f32 0.0, %v1309
      %v1311 = vpop.f32.mrb[0].mxu0
      %v1312 = vpop.f32.mrb[0].mxu0
      %v1313 = vadd.f32 0.0, %v1312
      %v1314 = vpop.f32.mrb[0].mxu0
      %1315 = vmatprep.mubr.bf16.mxu0 0
      %1316 = vmatmul.mubr.bf16.gmra.mrb[0].mxu0 %v1244
      %v1317 = vpop.f32.mrb[0].mxu0
      %v1318 = vadd.f32 0.0, %v1317
      %v1319 = vpop.f32.mrb[0].mxu0
      %v1320 = vpop.f32.mrb[0].mxu0
      %v1321 = vadd.f32 0.0, %v1320
      %v1322 = vpop.f32.mrb[0].mxu0
      %1323 = vmatprep.mubr.bf16.mxu0 0
      %1324 = vmatmul.mubr.bf16.gmra.mrb[0].mxu0 %v1247
      %v1325 = vpop.f32.mrb[0].mxu0
      %v1326 = vadd.f32 0.0, %v1325
      %v1327 = vpop.f32.mrb[0].mxu0
      %v1328 = vpop.f32.mrb[0].mxu0
      %v1329 = vadd.f32 0.0, %v1328
      %v1330 = vpop.f32.mrb[0].mxu0
      %1331 = vmatprep.mubr.bf16.mxu0 0
      %1332 = vmatmul.mubr.bf16.gmra.mrb[0].mxu0 %v1250
      %v1333 = vpop.f32.mrb[0].mxu0
      %v1334 = vadd.f32 0.0, %v1333
      %v1335 = vpop.f32.mrb[0].mxu0
      %v1336 = vpop.f32.mrb[0].mxu0
      %v1337 = vadd.f32 0.0, %v1336
      %v1338 = vpop.f32.mrb[0].mxu0
      %1339 = vdwg.mxu0
      %v1340 = vadd.f32 %v1310, 1e-16
      %v1341 = vadd.f32 %v1313, 1e-16
      %v1342 = vadd.f32 %v1318, 1e-16
      %v1343 = vadd.f32 %v1321, 1e-16
      %v1344 = vadd.f32 %v1326, 1e-16
      %v1345 = vadd.f32 %v1329, 1e-16
      %v1346 = vadd.f32 %v1334, 1e-16
      %v1347 = vadd.f32 %v1337, 1e-16
      %v1348 = vrcp.pop %v1340
      %v1349 = vrcp.pop %v1341
      %v1350 = vrcp.pop %v1342
      %v1351 = vrcp.pop %v1343
      %v1352 = vrcp.pop %v1344
      %v1353 = vrcp.pop %v1345
      %v1354 = vrcp.pop %v1346
      %v1355 = vrcp.pop %v1347
      %1357 = vset.pattern.permute.xlu0 8
      %1358 = vperm.xlu0 %1357, %v1348
      %v1359 = vpop.permute.xlu0 %1358
      %1362 = vset.pattern.permute.xlu0 8
      %1363 = vperm.xlu0 %1362, %v1349
      %v1364 = vpop.permute.xlu0 %1363
      %1367 = vset.pattern.permute.xlu0 8
      %1368 = vperm.xlu0 %1367, %v1350
      %v1369 = vpop.permute.xlu0 %1368
      %1372 = vset.pattern.permute.xlu0 8
      %1373 = vperm.xlu0 %1372, %v1351
      %v1374 = vpop.permute.xlu0 %1373
      %1377 = vset.pattern.permute.xlu0 8
      %1378 = vperm.xlu0 %1377, %v1352
      %v1379 = vpop.permute.xlu0 %1378
      %1382 = vset.pattern.permute.xlu0 8
      %1383 = vperm.xlu0 %1382, %v1353
      %v1384 = vpop.permute.xlu0 %1383
      %1387 = vset.pattern.permute.xlu0 8
      %1388 = vperm.xlu0 %1387, %v1354
      %v1389 = vpop.permute.xlu0 %1388
      %1392 = vset.pattern.permute.xlu0 8
      %1393 = vperm.xlu0 %1392, %v1355
      %v1394 = vpop.permute.xlu0 %1393
      %v1396 = vmul.f32 %v1310, %v1359
      %v1397 = vmul.f32 %v1313, %v1364
      %v1398 = vmul.f32 %v1318, %v1369
      %v1399 = vmul.f32 %v1321, %v1374
      %v1400 = vmul.f32 %v1326, %v1379
      %v1401 = vmul.f32 %v1329, %v1384
      %v1402 = vmul.f32 %v1334, %v1389
      %v1403 = vmul.f32 %v1337, %v1394
      %v1404 = vpack.c.bf16 %v1397, %v1396
      %v1405 = vpack.c.bf16 %v1399, %v1398
      %v1406 = vpack.c.bf16 %v1401, %v1400
      %v1407 = vpack.c.bf16 %v1403, %v1402
      %v1409 = vsel %vm706, %v1404, 0
      %v1412 = vsel %vm706, %v1405, 0
      %v1415 = vsel %vm706, %v1406, 0
      %v1418 = vsel %vm706, %v1407, 0
      %v1421 = vsel %vm719, %v698, 0
      %1423 = vmatprep.subr.bf16.mxu0 0
      %1424 = vmatpush1.bf16.msra.mxu0 %v1421
      %1425 = vmatprep.subr.bf16.mxu0 0
      %1426 = vmatpush1.bf16.msra.mxu0 0
      %1427 = vmatprep.subr.bf16.mxu0 0
      %1428 = vmatpush1.bf16.msra.mxu0 0
      %1429 = vmatprep.subr.bf16.mxu0 0
      %1430 = vmatpush1.bf16.msra.mxu0 0
      %1431 = vmatprep.subr.bf16.mxu0 0
      %1432 = vmatpush1.bf16.msra.mxu0 0
      %1433 = vmatprep.subr.bf16.mxu0 0
      %1434 = vmatpush1.bf16.msra.mxu0 0
      %1435 = vmatprep.subr.bf16.mxu0 0
      %1436 = vmatpush1.bf16.msra.mxu0 0
      %1437 = vmatprep.subr.bf16.mxu0 0
      %1438 = vmatpush1.bf16.msra.mxu0 0
      %1439 = vmatprep.subr.bf16.mxu0 0
      %1440 = vmatpush1.bf16.msra.mxu0 0
      %1441 = vmatprep.subr.bf16.mxu0 0
      %1442 = vmatpush1.bf16.msra.mxu0 0
      %1443 = vmatprep.subr.bf16.mxu0 0
      %1444 = vmatpush1.bf16.msra.mxu0 0
      %1445 = vmatprep.subr.bf16.mxu0 0
      %1446 = vmatpush1.bf16.msra.mxu0 0
      %1447 = vmatprep.subr.bf16.mxu0 0
      %1448 = vmatpush1.bf16.msra.mxu0 0
      %1449 = vmatprep.subr.bf16.mxu0 0
      %1450 = vmatpush1.bf16.msra.mxu0 0
      %1451 = vmatprep.subr.bf16.mxu0 0
      %1452 = vmatpush1.bf16.msra.mxu0 0
      %1453 = vmatprep.subr.bf16.mxu0 0
      %1454 = vmatpush1.bf16.msra.mxu0 0
      %1455 = vmatprep.mubr.bf16.mxu0 0
      %1456 = vmatmul.mubr.bf16.gmra.mrb[0].mxu0 %v1409
      %v1457 = vpop.f32.mrb[0].mxu0
      %v1458 = vadd.f32 0.0, %v1457
      %v1459 = vpop.f32.mrb[0].mxu0
      %v1460 = vpop.f32.mrb[0].mxu0
      %v1461 = vadd.f32 0.0, %v1460
      %v1462 = vpop.f32.mrb[0].mxu0
      %1463 = vmatprep.mubr.bf16.mxu0 0
      %1464 = vmatmul.mubr.bf16.gmra.mrb[0].mxu0 %v1412
      %v1465 = vpop.f32.mrb[0].mxu0
      %v1466 = vadd.f32 0.0, %v1465
      %v1467 = vpop.f32.mrb[0].mxu0
      %v1468 = vpop.f32.mrb[0].mxu0
      %v1469 = vadd.f32 0.0, %v1468
      %v1470 = vpop.f32.mrb[0].mxu0
      %1471 = vmatprep.mubr.bf16.mxu0 0
      %1472 = vmatmul.mubr.bf16.gmra.mrb[0].mxu0 %v1415
      %v1473 = vpop.f32.mrb[0].mxu0
      %v1474 = vadd.f32 0.0, %v1473
      %v1475 = vpop.f32.mrb[0].mxu0
      %v1476 = vpop.f32.mrb[0].mxu0
      %v1477 = vadd.f32 0.0, %v1476
      %v1478 = vpop.f32.mrb[0].mxu0
      %1479 = vmatprep.mubr.bf16.mxu0 0
      %1480 = vmatmul.mubr.bf16.gmra.mrb[0].mxu0 %v1418
      %v1481 = vpop.f32.mrb[0].mxu0
      %v1482 = vadd.f32 0.0, %v1481
      %v1483 = vpop.f32.mrb[0].mxu0
      %v1484 = vpop.f32.mrb[0].mxu0
      %v1485 = vadd.f32 0.0, %v1484
      %v1486 = vpop.f32.mrb[0].mxu0
      %1487 = vdwg.mxu0
      %v1488 = vadd.f32 %v1103, %v1458
      %v1489 = vadd.f32 %v1104, %v1461
      %v1490 = vadd.f32 %v1105, %v1466
      %v1491 = vadd.f32 %v1106, %v1469
      %v1492 = vadd.f32 %v1107, %v1474
      %v1493 = vadd.f32 %v1108, %v1477
      %v1494 = vadd.f32 %v1109, %v1482
      %v1495 = vadd.f32 %v1110, %v1485
      %1496 = vrot.lane.b32.xlu0 %v702, 112
      %v1497 = vpop.permute.xlu0 %1496
      %1498 = vrot.lane.b32.xlu0 %v703, 112
      %v1499 = vpop.permute.xlu0 %1498
      %1500 = vrot.lane.b32.xlu0 %v704, 112
      %v1501 = vpop.permute.xlu0 %1500
      %1502 = vrot.lane.b32.xlu0 %v705, 112
      %v1503 = vpop.permute.xlu0 %1502
      %v1505 = vsel %vm706, %v1497, 0
      %v1508 = vsel %vm706, %v1499, 0
      %v1511 = vsel %vm706, %v1501, 0
      %v1514 = vsel %vm706, %v1503, 0
      %v1517 = vsel %vm719, %v679, 0
      %1519 = vmatprep.subr.bf16.mxu0 0
      %1520 = vmatpush1.bf16.msra.mxu0 %v1517
      %1521 = vmatprep.subr.bf16.mxu0 0
      %1522 = vmatpush1.bf16.msra.mxu0 0
      %1523 = vmatprep.subr.bf16.mxu0 0
      %1524 = vmatpush1.bf16.msra.mxu0 0
      %1525 = vmatprep.subr.bf16.mxu0 0
      %1526 = vmatpush1.bf16.msra.mxu0 0
      %1527 = vmatprep.subr.bf16.mxu0 0
      %1528 = vmatpush1.bf16.msra.mxu0 0
      %1529 = vmatprep.subr.bf16.mxu0 0
      %1530 = vmatpush1.bf16.msra.mxu0 0
      %1531 = vmatprep.subr.bf16.mxu0 0
      %1532 = vmatpush1.bf16.msra.mxu0 0
      %1533 = vmatprep.subr.bf16.mxu0 0
      %1534 = vmatpush1.bf16.msra.mxu0 0
      %1535 = vmatprep.subr.bf16.mxu0 0
      %1536 = vmatpush1.bf16.msra.mxu0 0
      %1537 = vmatprep.subr.bf16.mxu0 0
      %1538 = vmatpush1.bf16.msra.mxu0 0
      %1539 = vmatprep.subr.bf16.mxu0 0
      %1540 = vmatpush1.bf16.msra.mxu0 0
      %1541 = vmatprep.subr.bf16.mxu0 0
      %1542 = vmatpush1.bf16.msra.mxu0 0
      %1543 = vmatprep.subr.bf16.mxu0 0
      %1544 = vmatpush1.bf16.msra.mxu0 0
      %1545 = vmatprep.subr.bf16.mxu0 0
      %1546 = vmatpush1.bf16.msra.mxu0 0
      %1547 = vmatprep.subr.bf16.mxu0 0
      %1548 = vmatpush1.bf16.msra.mxu0 0
      %1549 = vmatprep.subr.bf16.mxu0 0
      %1550 = vmatpush1.bf16.msra.mxu0 0
      %1551 = vmatprep.mubr.bf16.mxu0 0
      %1552 = vmatmul.mubr.bf16.gmra.mrb[0].mxu0 %v1505
      %v1553 = vpop.f32.mrb[0].mxu0
      %v1554 = vadd.f32 %v564, %v1553
      %v1555 = vpop.f32.mrb[0].mxu0
      %v1556 = vpop.f32.mrb[0].mxu0
      %v1557 = vadd.f32 %v565, %v1556
      %v1558 = vpop.f32.mrb[0].mxu0
      %1559 = vmatprep.mubr.bf16.mxu0 0
      %1560 = vmatmul.mubr.bf16.gmra.mrb[0].mxu0 %v1508
      %v1561 = vpop.f32.mrb[0].mxu0
      %v1562 = vadd.f32 %v566, %v1561
      %v1563 = vpop.f32.mrb[0].mxu0
      %v1564 = vpop.f32.mrb[0].mxu0
      %v1565 = vadd.f32 %v567, %v1564
      %v1566 = vpop.f32.mrb[0].mxu0
      %1567 = vmatprep.mubr.bf16.mxu0 0
      %1568 = vmatmul.mubr.bf16.gmra.mrb[0].mxu0 %v1511
      %v1569 = vpop.f32.mrb[0].mxu0
      %v1570 = vadd.f32 %v568, %v1569
      %v1571 = vpop.f32.mrb[0].mxu0
      %v1572 = vpop.f32.mrb[0].mxu0
      %v1573 = vadd.f32 %v569, %v1572
      %v1574 = vpop.f32.mrb[0].mxu0
      %1575 = vmatprep.mubr.bf16.mxu0 0
      %1576 = vmatmul.mubr.bf16.gmra.mrb[0].mxu0 %v1514
      %v1577 = vpop.f32.mrb[0].mxu0
      %v1578 = vadd.f32 %v570, %v1577
      %v1579 = vpop.f32.mrb[0].mxu0
      %v1580 = vpop.f32.mrb[0].mxu0
      %v1581 = vadd.f32 %v571, %v1580
      %v1582 = vpop.f32.mrb[0].mxu0
      %1583 = vdwg.mxu0
      %1584 = vmax.xlane.f32.xlu0 %v1554
      %v1585 = vpop.xlane.xlu0 %1584
      %1586 = vmax.xlane.f32.xlu0 %v1557
      %v1587 = vpop.xlane.xlu0 %1586
      %1588 = vmax.xlane.f32.xlu0 %v1562
      %v1589 = vpop.xlane.xlu0 %1588
      %1590 = vmax.xlane.f32.xlu0 %v1565
      %v1591 = vpop.xlane.xlu0 %1590
      %1592 = vmax.xlane.f32.xlu0 %v1570
      %v1593 = vpop.xlane.xlu0 %1592
      %1594 = vmax.xlane.f32.xlu0 %v1573
      %v1595 = vpop.xlane.xlu0 %1594
      %1596 = vmax.xlane.f32.xlu0 %v1578
      %v1597 = vpop.xlane.xlu0 %1596
      %1598 = vmax.xlane.f32.xlu0 %v1581
      %v1599 = vpop.xlane.xlu0 %1598
      %v1600 = vmax.f32 %v1585, -1e+29
      %v1601 = vmax.f32 %v1587, -1e+29
      %v1602 = vmax.f32 %v1589, -1e+29
      %v1603 = vmax.f32 %v1591, -1e+29
      %v1604 = vmax.f32 %v1593, -1e+29
      %v1605 = vmax.f32 %v1595, -1e+29
      %v1606 = vmax.f32 %v1597, -1e+29
      %v1607 = vmax.f32 %v1599, -1e+29
      %v1608 = vsub.f32 %v1554, %v1600
      %v1609 = vsub.f32 %v1557, %v1601
      %v1610 = vsub.f32 %v1562, %v1602
      %v1611 = vsub.f32 %v1565, %v1603
      %v1612 = vsub.f32 %v1570, %v1604
      %v1613 = vsub.f32 %v1573, %v1605
      %v1614 = vsub.f32 %v1578, %v1606
      %v1615 = vsub.f32 %v1581, %v1607
      %v1616 = vpack.c.bf16 %v1609, %v1608
      %v1617 = vpack.c.bf16 %v1611, %v1610
      %v1618 = vpack.c.bf16 %v1613, %v1612
      %v1619 = vpack.c.bf16 %v1615, %v1614
      %v1621 = vmul.bf16 %v1616, 1069105081
      %v1622 = vpow.bf16.pop %v1621
      %v1624 = vmul.bf16 %v1617, 1069105081
      %v1625 = vpow.bf16.pop %v1624
      %v1627 = vmul.bf16 %v1618, 1069105081
      %v1628 = vpow.bf16.pop %v1627
      %v1630 = vmul.bf16 %v1619, 1069105081
      %v1631 = vpow.bf16.pop %v1630
      %1632 = vrot.lane.b32.xlu0 %v868, 96
      %v1633 = vpop.permute.xlu0 %1632
      %1634 = vrot.lane.b32.xlu0 %v869, 96
      %v1635 = vpop.permute.xlu0 %1634
      %1636 = vrot.lane.b32.xlu0 %v870, 96
      %v1637 = vpop.permute.xlu0 %1636
      %1638 = vrot.lane.b32.xlu0 %v871, 96
      %v1639 = vpop.permute.xlu0 %1638
      %1640 = vrot.lane.b32.xlu0 %v872, 96
      %v1641 = vpop.permute.xlu0 %1640
      %1642 = vrot.lane.b32.xlu0 %v873, 96
      %v1643 = vpop.permute.xlu0 %1642
      %1644 = vrot.lane.b32.xlu0 %v874, 96
      %v1645 = vpop.permute.xlu0 %1644
      %1646 = vrot.lane.b32.xlu0 %v875, 96
      %v1647 = vpop.permute.xlu0 %1646
      %1656 = vmatprep.subr.bf16.mxu0 0
      %1657 = vmatpush1.bf16.msra.mxu0 %v1633
      %1658 = vmatprep.subr.bf16.mxu0 0
      %1659 = vmatpush1.bf16.msra.mxu0 %v1635
      %1660 = vmatprep.subr.bf16.mxu0 0
      %1661 = vmatpush1.bf16.msra.mxu0 %v1637
      %1662 = vmatprep.subr.bf16.mxu0 0
      %1663 = vmatpush1.bf16.msra.mxu0 %v1639
      %1664 = vmatprep.subr.bf16.mxu0 0
      %1665 = vmatpush1.bf16.msra.mxu0 %v1641
      %1666 = vmatprep.subr.bf16.mxu0 0
      %1667 = vmatpush1.bf16.msra.mxu0 %v1643
      %1668 = vmatprep.subr.bf16.mxu0 0
      %1669 = vmatpush1.bf16.msra.mxu0 %v1645
      %1670 = vmatprep.subr.bf16.mxu0 0
      %1671 = vmatpush1.bf16.msra.mxu0 %v1647
      %1672 = vmatprep.subr.bf16.mxu0 0
      %1673 = vmatpush1.bf16.msra.mxu0 0
      %1674 = vmatprep.subr.bf16.mxu0 0
      %1675 = vmatpush1.bf16.msra.mxu0 0
      %1676 = vmatprep.subr.bf16.mxu0 0
      %1677 = vmatpush1.bf16.msra.mxu0 0
      %1678 = vmatprep.subr.bf16.mxu0 0
      %1679 = vmatpush1.bf16.msra.mxu0 0
      %1680 = vmatprep.subr.bf16.mxu0 0
      %1681 = vmatpush1.bf16.msra.mxu0 0
      %1682 = vmatprep.subr.bf16.mxu0 0
      %1683 = vmatpush1.bf16.msra.mxu0 0
      %1684 = vmatprep.subr.bf16.mxu0 0
      %1685 = vmatpush1.bf16.msra.mxu0 0
      %1686 = vmatprep.subr.bf16.mxu0 0
      %1687 = vmatpush1.bf16.msra.mxu0 0
      %1688 = vmatprep.mubr.bf16.mxu0 0
      %1689 = vmatmul.mubr.bf16.gmra.mrb[0].mxu0 %v1622
      %v1690 = vpop.f32.mrb[0].mxu0
      %v1691 = vadd.f32 0.0, %v1690
      %v1692 = vpop.f32.mrb[0].mxu0
      %v1693 = vpop.f32.mrb[0].mxu0
      %v1694 = vadd.f32 0.0, %v1693
      %v1695 = vpop.f32.mrb[0].mxu0
      %1696 = vmatprep.mubr.bf16.mxu0 0
      %1697 = vmatmul.mubr.bf16.gmra.mrb[0].mxu0 %v1625
      %v1698 = vpop.f32.mrb[0].mxu0
      %v1699 = vadd.f32 0.0, %v1698
      %v1700 = vpop.f32.mrb[0].mxu0
      %v1701 = vpop.f32.mrb[0].mxu0
      %v1702 = vadd.f32 0.0, %v1701
      %v1703 = vpop.f32.mrb[0].mxu0
      %1704 = vmatprep.mubr.bf16.mxu0 0
      %1705 = vmatmul.mubr.bf16.gmra.mrb[0].mxu0 %v1628
      %v1706 = vpop.f32.mrb[0].mxu0
      %v1707 = vadd.f32 0.0, %v1706
      %v1708 = vpop.f32.mrb[0].mxu0
      %v1709 = vpop.f32.mrb[0].mxu0
      %v1710 = vadd.f32 0.0, %v1709
      %v1711 = vpop.f32.mrb[0].mxu0
      %1712 = vmatprep.mubr.bf16.mxu0 0
      %1713 = vmatmul.mubr.bf16.gmra.mrb[0].mxu0 %v1631
      %v1714 = vpop.f32.mrb[0].mxu0
      %v1715 = vadd.f32 0.0, %v1714
      %v1716 = vpop.f32.mrb[0].mxu0
      %v1717 = vpop.f32.mrb[0].mxu0
      %v1718 = vadd.f32 0.0, %v1717
      %v1719 = vpop.f32.mrb[0].mxu0
      %1720 = vdwg.mxu0
      %v1721 = vadd.f32 %v1691, 1e-16
      %v1722 = vadd.f32 %v1694, 1e-16
      %v1723 = vadd.f32 %v1699, 1e-16
      %v1724 = vadd.f32 %v1702, 1e-16
      %v1725 = vadd.f32 %v1707, 1e-16
      %v1726 = vadd.f32 %v1710, 1e-16
      %v1727 = vadd.f32 %v1715, 1e-16
      %v1728 = vadd.f32 %v1718, 1e-16
      %v1729 = vrcp.pop %v1721
      %v1730 = vrcp.pop %v1722
      %v1731 = vrcp.pop %v1723
      %v1732 = vrcp.pop %v1724
      %v1733 = vrcp.pop %v1725
      %v1734 = vrcp.pop %v1726
      %v1735 = vrcp.pop %v1727
      %v1736 = vrcp.pop %v1728
      %1738 = vset.pattern.permute.xlu0 8
      %1739 = vperm.xlu0 %1738, %v1729
      %v1740 = vpop.permute.xlu0 %1739
      %1743 = vset.pattern.permute.xlu0 8
      %1744 = vperm.xlu0 %1743, %v1730
      %v1745 = vpop.permute.xlu0 %1744
      %1748 = vset.pattern.permute.xlu0 8
      %1749 = vperm.xlu0 %1748, %v1731
      %v1750 = vpop.permute.xlu0 %1749
      %1753 = vset.pattern.permute.xlu0 8
      %1754 = vperm.xlu0 %1753, %v1732
      %v1755 = vpop.permute.xlu0 %1754
      %1758 = vset.pattern.permute.xlu0 8
      %1759 = vperm.xlu0 %1758, %v1733
      %v1760 = vpop.permute.xlu0 %1759
      %1763 = vset.pattern.permute.xlu0 8
      %1764 = vperm.xlu0 %1763, %v1734
      %v1765 = vpop.permute.xlu0 %1764
      %1768 = vset.pattern.permute.xlu0 8
      %1769 = vperm.xlu0 %1768, %v1735
      %v1770 = vpop.permute.xlu0 %1769
      %1773 = vset.pattern.permute.xlu0 8
      %1774 = vperm.xlu0 %1773, %v1736
      %v1775 = vpop.permute.xlu0 %1774
      %v1777 = vmul.f32 %v1691, %v1740
      %v1778 = vmul.f32 %v1694, %v1745
      %v1779 = vmul.f32 %v1699, %v1750
      %v1780 = vmul.f32 %v1702, %v1755
      %v1781 = vmul.f32 %v1707, %v1760
      %v1782 = vmul.f32 %v1710, %v1765
      %v1783 = vmul.f32 %v1715, %v1770
      %v1784 = vmul.f32 %v1718, %v1775
      %v1785 = vpack.c.bf16 %v1778, %v1777
      %v1786 = vpack.c.bf16 %v1780, %v1779
      %v1787 = vpack.c.bf16 %v1782, %v1781
      %v1788 = vpack.c.bf16 %v1784, %v1783
      %v1790 = vsel %vm706, %v1785, 0
      %v1793 = vsel %vm706, %v1786, 0
      %v1796 = vsel %vm706, %v1787, 0
      %v1799 = vsel %vm706, %v1788, 0
      %v1802 = vsel %vm719, %v699, 0
      %1804 = vmatprep.subr.bf16.mxu0 0
      %1805 = vmatpush1.bf16.msra.mxu0 %v1802
      %1806 = vmatprep.subr.bf16.mxu0 0
      %1807 = vmatpush1.bf16.msra.mxu0 0
      %1808 = vmatprep.subr.bf16.mxu0 0
      %1809 = vmatpush1.bf16.msra.mxu0 0
      %1810 = vmatprep.subr.bf16.mxu0 0
      %1811 = vmatpush1.bf16.msra.mxu0 0
      %1812 = vmatprep.subr.bf16.mxu0 0
      %1813 = vmatpush1.bf16.msra.mxu0 0
      %1814 = vmatprep.subr.bf16.mxu0 0
      %1815 = vmatpush1.bf16.msra.mxu0 0
      %1816 = vmatprep.subr.bf16.mxu0 0
      %1817 = vmatpush1.bf16.msra.mxu0 0
      %1818 = vmatprep.subr.bf16.mxu0 0
      %1819 = vmatpush1.bf16.msra.mxu0 0
      %1820 = vmatprep.subr.bf16.mxu0 0
      %1821 = vmatpush1.bf16.msra.mxu0 0
      %1822 = vmatprep.subr.bf16.mxu0 0
      %1823 = vmatpush1.bf16.msra.mxu0 0
      %1824 = vmatprep.subr.bf16.mxu0 0
      %1825 = vmatpush1.bf16.msra.mxu0 0
      %1826 = vmatprep.subr.bf16.mxu0 0
      %1827 = vmatpush1.bf16.msra.mxu0 0
      %1828 = vmatprep.subr.bf16.mxu0 0
      %1829 = vmatpush1.bf16.msra.mxu0 0
      %1830 = vmatprep.subr.bf16.mxu0 0
      %1831 = vmatpush1.bf16.msra.mxu0 0
      %1832 = vmatprep.subr.bf16.mxu0 0
      %1833 = vmatpush1.bf16.msra.mxu0 0
      %1834 = vmatprep.subr.bf16.mxu0 0
      %1835 = vmatpush1.bf16.msra.mxu0 0
      %1836 = vmatprep.mubr.bf16.mxu0 0
      %1837 = vmatmul.mubr.bf16.gmra.mrb[0].mxu0 %v1790
      %v1838 = vpop.f32.mrb[0].mxu0
      %v1839 = vadd.f32 0.0, %v1838
      %v1840 = vpop.f32.mrb[0].mxu0
      %v1841 = vpop.f32.mrb[0].mxu0
      %v1842 = vadd.f32 0.0, %v1841
      %v1843 = vpop.f32.mrb[0].mxu0
      %1844 = vmatprep.mubr.bf16.mxu0 0
      %1845 = vmatmul.mubr.bf16.gmra.mrb[0].mxu0 %v1793
      %v1846 = vpop.f32.mrb[0].mxu0
      %v1847 = vadd.f32 0.0, %v1846
      %v1848 = vpop.f32.mrb[0].mxu0
      %v1849 = vpop.f32.mrb[0].mxu0
      %v1850 = vadd.f32 0.0, %v1849
      %v1851 = vpop.f32.mrb[0].mxu0
      %1852 = vmatprep.mubr.bf16.mxu0 0
      %1853 = vmatmul.mubr.bf16.gmra.mrb[0].mxu0 %v1796
      %v1854 = vpop.f32.mrb[0].mxu0
      %v1855 = vadd.f32 0.0, %v1854
      %v1856 = vpop.f32.mrb[0].mxu0
      %v1857 = vpop.f32.mrb[0].mxu0
      %v1858 = vadd.f32 0.0, %v1857
      %v1859 = vpop.f32.mrb[0].mxu0
      %1860 = vmatprep.mubr.bf16.mxu0 0
      %1861 = vmatmul.mubr.bf16.gmra.mrb[0].mxu0 %v1799
      %v1862 = vpop.f32.mrb[0].mxu0
      %v1863 = vadd.f32 0.0, %v1862
      %v1864 = vpop.f32.mrb[0].mxu0
      %v1865 = vpop.f32.mrb[0].mxu0
      %v1866 = vadd.f32 0.0, %v1865
      %v1867 = vpop.f32.mrb[0].mxu0
      %1868 = vdwg.mxu0
      %v1869 = vadd.f32 %v1488, %v1839
      %v1870 = vadd.f32 %v1489, %v1842
      %v1871 = vadd.f32 %v1490, %v1847
      %v1872 = vadd.f32 %v1491, %v1850
      %v1873 = vadd.f32 %v1492, %v1855
      %v1874 = vadd.f32 %v1493, %v1858
      %v1875 = vadd.f32 %v1494, %v1863
      %v1876 = vadd.f32 %v1495, %v1866
      %1877 = vrot.lane.b32.xlu0 %v702, 104
      %v1878 = vpop.permute.xlu0 %1877
      %1879 = vrot.lane.b32.xlu0 %v703, 104
      %v1880 = vpop.permute.xlu0 %1879
      %1881 = vrot.lane.b32.xlu0 %v704, 104
      %v1882 = vpop.permute.xlu0 %1881
      %1883 = vrot.lane.b32.xlu0 %v705, 104
      %v1884 = vpop.permute.xlu0 %1883
      %v1886 = vsel %vm706, %v1878, 0
      %v1889 = vsel %vm706, %v1880, 0
      %v1892 = vsel %vm706, %v1882, 0
      %v1895 = vsel %vm706, %v1884, 0
      %v1898 = vsel %vm719, %v680, 0
      %1900 = vmatprep.subr.bf16.mxu0 0
      %1901 = vmatpush1.bf16.msra.mxu0 %v1898
      %1902 = vmatprep.subr.bf16.mxu0 0
      %1903 = vmatpush1.bf16.msra.mxu0 0
      %1904 = vmatprep.subr.bf16.mxu0 0
      %1905 = vmatpush1.bf16.msra.mxu0 0
      %1906 = vmatprep.subr.bf16.mxu0 0
      %1907 = vmatpush1.bf16.msra.mxu0 0
      %1908 = vmatprep.subr.bf16.mxu0 0
      %1909 = vmatpush1.bf16.msra.mxu0 0
      %1910 = vmatprep.subr.bf16.mxu0 0
      %1911 = vmatpush1.bf16.msra.mxu0 0
      %1912 = vmatprep.subr.bf16.mxu0 0
      %1913 = vmatpush1.bf16.msra.mxu0 0
      %1914 = vmatprep.subr.bf16.mxu0 0
      %1915 = vmatpush1.bf16.msra.mxu0 0
      %1916 = vmatprep.subr.bf16.mxu0 0
      %1917 = vmatpush1.bf16.msra.mxu0 0
      %1918 = vmatprep.subr.bf16.mxu0 0
      %1919 = vmatpush1.bf16.msra.mxu0 0
      %1920 = vmatprep.subr.bf16.mxu0 0
      %1921 = vmatpush1.bf16.msra.mxu0 0
      %1922 = vmatprep.subr.bf16.mxu0 0
      %1923 = vmatpush1.bf16.msra.mxu0 0
      %1924 = vmatprep.subr.bf16.mxu0 0
      %1925 = vmatpush1.bf16.msra.mxu0 0
      %1926 = vmatprep.subr.bf16.mxu0 0
      %1927 = vmatpush1.bf16.msra.mxu0 0
      %1928 = vmatprep.subr.bf16.mxu0 0
      %1929 = vmatpush1.bf16.msra.mxu0 0
      %1930 = vmatprep.subr.bf16.mxu0 0
      %1931 = vmatpush1.bf16.msra.mxu0 0
      %1932 = vmatprep.mubr.bf16.mxu0 0
      %1933 = vmatmul.mubr.bf16.gmra.mrb[0].mxu0 %v1886
      %v1934 = vpop.f32.mrb[0].mxu0
      %v1935 = vadd.f32 %v564, %v1934
      %v1936 = vpop.f32.mrb[0].mxu0
      %v1937 = vpop.f32.mrb[0].mxu0
      %v1938 = vadd.f32 %v565, %v1937
      %v1939 = vpop.f32.mrb[0].mxu0
      %1940 = vmatprep.mubr.bf16.mxu0 0
      %1941 = vmatmul.mubr.bf16.gmra.mrb[0].mxu0 %v1889
      %v1942 = vpop.f32.mrb[0].mxu0
      %v1943 = vadd.f32 %v566, %v1942
      %v1944 = vpop.f32.mrb[0].mxu0
      %v1945 = vpop.f32.mrb[0].mxu0
      %v1946 = vadd.f32 %v567, %v1945
      %v1947 = vpop.f32.mrb[0].mxu0
      %1948 = vmatprep.mubr.bf16.mxu0 0
      %1949 = vmatmul.mubr.bf16.gmra.mrb[0].mxu0 %v1892
      %v1950 = vpop.f32.mrb[0].mxu0
      %v1951 = vadd.f32 %v568, %v1950
      %v1952 = vpop.f32.mrb[0].mxu0
      %v1953 = vpop.f32.mrb[0].mxu0
      %v1954 = vadd.f32 %v569, %v1953
      %v1955 = vpop.f32.mrb[0].mxu0
      %1956 = vmatprep.mubr.bf16.mxu0 0
      %1957 = vmatmul.mubr.bf16.gmra.mrb[0].mxu0 %v1895
      %v1958 = vpop.f32.mrb[0].mxu0
      %v1959 = vadd.f32 %v570, %v1958
      %v1960 = vpop.f32.mrb[0].mxu0
      %v1961 = vpop.f32.mrb[0].mxu0
      %v1962 = vadd.f32 %v571, %v1961
      %v1963 = vpop.f32.mrb[0].mxu0
      %1964 = vdwg.mxu0
      %1965 = vmax.xlane.f32.xlu0 %v1935
      %v1966 = vpop.xlane.xlu0 %1965
      %1967 = vmax.xlane.f32.xlu0 %v1938
      %v1968 = vpop.xlane.xlu0 %1967
      %1969 = vmax.xlane.f32.xlu0 %v1943
      %v1970 = vpop.xlane.xlu0 %1969
      %1971 = vmax.xlane.f32.xlu0 %v1946
      %v1972 = vpop.xlane.xlu0 %1971
      %1973 = vmax.xlane.f32.xlu0 %v1951
      %v1974 = vpop.xlane.xlu0 %1973
      %1975 = vmax.xlane.f32.xlu0 %v1954
      %v1976 = vpop.xlane.xlu0 %1975
      %1977 = vmax.xlane.f32.xlu0 %v1959
      %v1978 = vpop.xlane.xlu0 %1977
      %1979 = vmax.xlane.f32.xlu0 %v1962
      %v1980 = vpop.xlane.xlu0 %1979
      %v1981 = vmax.f32 %v1966, -1e+29
      %v1982 = vmax.f32 %v1968, -1e+29
      %v1983 = vmax.f32 %v1970, -1e+29
      %v1984 = vmax.f32 %v1972, -1e+29
      %v1985 = vmax.f32 %v1974, -1e+29
      %v1986 = vmax.f32 %v1976, -1e+29
      %v1987 = vmax.f32 %v1978, -1e+29
      %v1988 = vmax.f32 %v1980, -1e+29
      %v1989 = vsub.f32 %v1935, %v1981
      %v1990 = vsub.f32 %v1938, %v1982
      %v1991 = vsub.f32 %v1943, %v1983
      %v1992 = vsub.f32 %v1946, %v1984
      %v1993 = vsub.f32 %v1951, %v1985
      %v1994 = vsub.f32 %v1954, %v1986
      %v1995 = vsub.f32 %v1959, %v1987
      %v1996 = vsub.f32 %v1962, %v1988
      %v1997 = vpack.c.bf16 %v1990, %v1989
      %v1998 = vpack.c.bf16 %v1992, %v1991
      %v1999 = vpack.c.bf16 %v1994, %v1993
      %v2000 = vpack.c.bf16 %v1996, %v1995
      %v2002 = vmul.bf16 %v1997, 1069105081
      %v2003 = vpow.bf16.pop %v2002
      %v2005 = vmul.bf16 %v1998, 1069105081
      %v2006 = vpow.bf16.pop %v2005
      %v2008 = vmul.bf16 %v1999, 1069105081
      %v2009 = vpow.bf16.pop %v2008
      %v2011 = vmul.bf16 %v2000, 1069105081
      %v2012 = vpow.bf16.pop %v2011
      %2013 = vrot.lane.b32.xlu0 %v868, 80
      %v2014 = vpop.permute.xlu0 %2013
      %2015 = vrot.lane.b32.xlu0 %v869, 80
      %v2016 = vpop.permute.xlu0 %2015
      %2017 = vrot.lane.b32.xlu0 %v870, 80
      %v2018 = vpop.permute.xlu0 %2017
      %2019 = vrot.lane.b32.xlu0 %v871, 80
      %v2020 = vpop.permute.xlu0 %2019
      %2021 = vrot.lane.b32.xlu0 %v872, 80
      %v2022 = vpop.permute.xlu0 %2021
      %2023 = vrot.lane.b32.xlu0 %v873, 80
      %v2024 = vpop.permute.xlu0 %2023
      %2025 = vrot.lane.b32.xlu0 %v874, 80
      %v2026 = vpop.permute.xlu0 %2025
      %2027 = vrot.lane.b32.xlu0 %v875, 80
      %v2028 = vpop.permute.xlu0 %2027
      %2037 = vmatprep.subr.bf16.mxu0 0
      %2038 = vmatpush1.bf16.msra.mxu0 %v2014
      %2039 = vmatprep.subr.bf16.mxu0 0
      %2040 = vmatpush1.bf16.msra.mxu0 %v2016
      %2041 = vmatprep.subr.bf16.mxu0 0
      %2042 = vmatpush1.bf16.msra.mxu0 %v2018
      %2043 = vmatprep.subr.bf16.mxu0 0
      %2044 = vmatpush1.bf16.msra.mxu0 %v2020
      %2045 = vmatprep.subr.bf16.mxu0 0
      %2046 = vmatpush1.bf16.msra.mxu0 %v2022
      %2047 = vmatprep.subr.bf16.mxu0 0
      %2048 = vmatpush1.bf16.msra.mxu0 %v2024
      %2049 = vmatprep.subr.bf16.mxu0 0
      %2050 = vmatpush1.bf16.msra.mxu0 %v2026
      %2051 = vmatprep.subr.bf16.mxu0 0
      %2052 = vmatpush1.bf16.msra.mxu0 %v2028
      %2053 = vmatprep.subr.bf16.mxu0 0
      %2054 = vmatpush1.bf16.msra.mxu0 0
      %2055 = vmatprep.subr.bf16.mxu0 0
      %2056 = vmatpush1.bf16.msra.mxu0 0
      %2057 = vmatprep.subr.bf16.mxu0 0
      %2058 = vmatpush1.bf16.msra.mxu0 0
      %2059 = vmatprep.subr.bf16.mxu0 0
      %2060 = vmatpush1.bf16.msra.mxu0 0
      %2061 = vmatprep.subr.bf16.mxu0 0
      %2062 = vmatpush1.bf16.msra.mxu0 0
      %2063 = vmatprep.subr.bf16.mxu0 0
      %2064 = vmatpush1.bf16.msra.mxu0 0
      %2065 = vmatprep.subr.bf16.mxu0 0
      %2066 = vmatpush1.bf16.msra.mxu0 0
      %2067 = vmatprep.subr.bf16.mxu0 0
      %2068 = vmatpush1.bf16.msra.mxu0 0
      %2069 = vmatprep.mubr.bf16.mxu0 0
      %2070 = vmatmul.mubr.bf16.gmra.mrb[0].mxu0 %v2003
      %v2071 = vpop.f32.mrb[0].mxu0
      %v2072 = vadd.f32 0.0, %v2071
      %v2073 = vpop.f32.mrb[0].mxu0
      %v2074 = vpop.f32.mrb[0].mxu0
      %v2075 = vadd.f32 0.0, %v2074
      %v2076 = vpop.f32.mrb[0].mxu0
      %2077 = vmatprep.mubr.bf16.mxu0 0
      %2078 = vmatmul.mubr.bf16.gmra.mrb[0].mxu0 %v2006
      %v2079 = vpop.f32.mrb[0].mxu0
      %v2080 = vadd.f32 0.0, %v2079
      %v2081 = vpop.f32.mrb[0].mxu0
      %v2082 = vpop.f32.mrb[0].mxu0
      %v2083 = vadd.f32 0.0, %v2082
      %v2084 = vpop.f32.mrb[0].mxu0
      %2085 = vmatprep.mubr.bf16.mxu0 0
      %2086 = vmatmul.mubr.bf16.gmra.mrb[0].mxu0 %v2009
      %v2087 = vpop.f32.mrb[0].mxu0
      %v2088 = vadd.f32 0.0, %v2087
      %v2089 = vpop.f32.mrb[0].mxu0
      %v2090 = vpop.f32.mrb[0].mxu0
      %v2091 = vadd.f32 0.0, %v2090
      %v2092 = vpop.f32.mrb[0].mxu0
      %2093 = vmatprep.mubr.bf16.mxu0 0
      %2094 = vmatmul.mubr.bf16.gmra.mrb[0].mxu0 %v2012
      %v2095 = vpop.f32.mrb[0].mxu0
      %v2096 = vadd.f32 0.0, %v2095
      %v2097 = vpop.f32.mrb[0].mxu0
      %v2098 = vpop.f32.mrb[0].mxu0
      %v2099 = vadd.f32 0.0, %v2098
      %v2100 = vpop.f32.mrb[0].mxu0
      %2101 = vdwg.mxu0
      %v2102 = vadd.f32 %v2072, 1e-16
      %v2103 = vadd.f32 %v2075, 1e-16
      %v2104 = vadd.f32 %v2080, 1e-16
      %v2105 = vadd.f32 %v2083, 1e-16
      %v2106 = vadd.f32 %v2088, 1e-16
      %v2107 = vadd.f32 %v2091, 1e-16
      %v2108 = vadd.f32 %v2096, 1e-16
      %v2109 = vadd.f32 %v2099, 1e-16
      %v2110 = vrcp.pop %v2102
      %v2111 = vrcp.pop %v2103
      %v2112 = vrcp.pop %v2104
      %v2113 = vrcp.pop %v2105
      %v2114 = vrcp.pop %v2106
      %v2115 = vrcp.pop %v2107
      %v2116 = vrcp.pop %v2108
      %v2117 = vrcp.pop %v2109
      %2119 = vset.pattern.permute.xlu0 8
      %2120 = vperm.xlu0 %2119, %v2110
      %v2121 = vpop.permute.xlu0 %2120
      %2124 = vset.pattern.permute.xlu0 8
      %2125 = vperm.xlu0 %2124, %v2111
      %v2126 = vpop.permute.xlu0 %2125
      %2129 = vset.pattern.permute.xlu0 8
      %2130 = vperm.xlu0 %2129, %v2112
      %v2131 = vpop.permute.xlu0 %2130
      %2134 = vset.pattern.permute.xlu0 8
      %2135 = vperm.xlu0 %2134, %v2113
      %v2136 = vpop.permute.xlu0 %2135
      %2139 = vset.pattern.permute.xlu0 8
      %2140 = vperm.xlu0 %2139, %v2114
      %v2141 = vpop.permute.xlu0 %2140
      %2144 = vset.pattern.permute.xlu0 8
      %2145 = vperm.xlu0 %2144, %v2115
      %v2146 = vpop.permute.xlu0 %2145
      %2149 = vset.pattern.permute.xlu0 8
      %2150 = vperm.xlu0 %2149, %v2116
      %v2151 = vpop.permute.xlu0 %2150
      %2154 = vset.pattern.permute.xlu0 8
      %2155 = vperm.xlu0 %2154, %v2117
      %v2156 = vpop.permute.xlu0 %2155
      %v2158 = vmul.f32 %v2072, %v2121
      %v2159 = vmul.f32 %v2075, %v2126
      %v2160 = vmul.f32 %v2080, %v2131
      %v2161 = vmul.f32 %v2083, %v2136
      %v2162 = vmul.f32 %v2088, %v2141
      %v2163 = vmul.f32 %v2091, %v2146
      %v2164 = vmul.f32 %v2096, %v2151
      %v2165 = vmul.f32 %v2099, %v2156
      %v2166 = vpack.c.bf16 %v2159, %v2158
      %v2167 = vpack.c.bf16 %v2161, %v2160
      %v2168 = vpack.c.bf16 %v2163, %v2162
      %v2169 = vpack.c.bf16 %v2165, %v2164
      %v2171 = vsel %vm706, %v2166, 0
      %v2174 = vsel %vm706, %v2167, 0
      %v2177 = vsel %vm706, %v2168, 0
      %v2180 = vsel %vm706, %v2169, 0
      %v2183 = vsel %vm719, %v700, 0
      %2185 = vmatprep.subr.bf16.mxu0 0
      %2186 = vmatpush1.bf16.msra.mxu0 %v2183
      %2187 = vmatprep.subr.bf16.mxu0 0
      %2188 = vmatpush1.bf16.msra.mxu0 0
      %2189 = vmatprep.subr.bf16.mxu0 0
      %2190 = vmatpush1.bf16.msra.mxu0 0
      %2191 = vmatprep.subr.bf16.mxu0 0
      %2192 = vmatpush1.bf16.msra.mxu0 0
      %2193 = vmatprep.subr.bf16.mxu0 0
      %2194 = vmatpush1.bf16.msra.mxu0 0
      %2195 = vmatprep.subr.bf16.mxu0 0
      %2196 = vmatpush1.bf16.msra.mxu0 0
      %2197 = vmatprep.subr.bf16.mxu0 0
      %2198 = vmatpush1.bf16.msra.mxu0 0
      %2199 = vmatprep.subr.bf16.mxu0 0
      %2200 = vmatpush1.bf16.msra.mxu0 0
      %2201 = vmatprep.subr.bf16.mxu0 0
      %2202 = vmatpush1.bf16.msra.mxu0 0
      %2203 = vmatprep.subr.bf16.mxu0 0
      %2204 = vmatpush1.bf16.msra.mxu0 0
      %2205 = vmatprep.subr.bf16.mxu0 0
      %2206 = vmatpush1.bf16.msra.mxu0 0
      %2207 = vmatprep.subr.bf16.mxu0 0
      %2208 = vmatpush1.bf16.msra.mxu0 0
      %2209 = vmatprep.subr.bf16.mxu0 0
      %2210 = vmatpush1.bf16.msra.mxu0 0
      %2211 = vmatprep.subr.bf16.mxu0 0
      %2212 = vmatpush1.bf16.msra.mxu0 0
      %2213 = vmatprep.subr.bf16.mxu0 0
      %2214 = vmatpush1.bf16.msra.mxu0 0
      %2215 = vmatprep.subr.bf16.mxu0 0
      %2216 = vmatpush1.bf16.msra.mxu0 0
      %2217 = vmatprep.mubr.bf16.mxu0 0
      %2218 = vmatmul.mubr.bf16.gmra.mrb[0].mxu0 %v2171
      %v2219 = vpop.f32.mrb[0].mxu0
      %v2220 = vadd.f32 0.0, %v2219
      %v2221 = vpop.f32.mrb[0].mxu0
      %v2222 = vpop.f32.mrb[0].mxu0
      %v2223 = vadd.f32 0.0, %v2222
      %v2224 = vpop.f32.mrb[0].mxu0
      %2225 = vmatprep.mubr.bf16.mxu0 0
      %2226 = vmatmul.mubr.bf16.gmra.mrb[0].mxu0 %v2174
      %v2227 = vpop.f32.mrb[0].mxu0
      %v2228 = vadd.f32 0.0, %v2227
      %v2229 = vpop.f32.mrb[0].mxu0
      %v2230 = vpop.f32.mrb[0].mxu0
      %v2231 = vadd.f32 0.0, %v2230
      %v2232 = vpop.f32.mrb[0].mxu0
      %2233 = vmatprep.mubr.bf16.mxu0 0
      %2234 = vmatmul.mubr.bf16.gmra.mrb[0].mxu0 %v2177
      %v2235 = vpop.f32.mrb[0].mxu0
      %v2236 = vadd.f32 0.0, %v2235
      %v2237 = vpop.f32.mrb[0].mxu0
      %v2238 = vpop.f32.mrb[0].mxu0
      %v2239 = vadd.f32 0.0, %v2238
      %v2240 = vpop.f32.mrb[0].mxu0
      %2241 = vmatprep.mubr.bf16.mxu0 0
      %2242 = vmatmul.mubr.bf16.gmra.mrb[0].mxu0 %v2180
      %v2243 = vpop.f32.mrb[0].mxu0
      %v2244 = vadd.f32 0.0, %v2243
      %v2245 = vpop.f32.mrb[0].mxu0
      %v2246 = vpop.f32.mrb[0].mxu0
      %v2247 = vadd.f32 0.0, %v2246
      %v2248 = vpop.f32.mrb[0].mxu0
      %2249 = vdwg.mxu0
      %v2250 = vadd.f32 %v1869, %v2220
      %v2251 = vadd.f32 %v1870, %v2223
      %v2252 = vadd.f32 %v1871, %v2228
      %v2253 = vadd.f32 %v1872, %v2231
      %v2254 = vadd.f32 %v1873, %v2236
      %v2255 = vadd.f32 %v1874, %v2239
      %v2256 = vadd.f32 %v1875, %v2244
      %v2257 = vadd.f32 %v1876, %v2247
      %v2258 = vadd.f32 %v548, %v2250
      %v2259 = vadd.f32 %v549, %v2251
      %v2260 = vadd.f32 %v550, %v2252
      %v2261 = vadd.f32 %v551, %v2253
      %v2262 = vadd.f32 %v552, %v2254
      %v2263 = vadd.f32 %v553, %v2255
      %v2264 = vadd.f32 %v554, %v2256
      %v2265 = vadd.f32 %v555, %v2257
      %v2266 = vsel %vm599, %v2258, 0.0
      %2267 = vadd.xlane.f32.xlu0 %v2266
      %v2268 = vpop.xlane.xlu0 %2267
      %v2269 = vsel %vm599, %v2259, 0.0
      %2270 = vadd.xlane.f32.xlu0 %v2269
      %v2271 = vpop.xlane.xlu0 %2270
      %v2272 = vsel %vm599, %v2260, 0.0
      %2273 = vadd.xlane.f32.xlu0 %v2272
      %v2274 = vpop.xlane.xlu0 %2273
      %v2275 = vsel %vm599, %v2261, 0.0
      %2276 = vadd.xlane.f32.xlu0 %v2275
      %v2277 = vpop.xlane.xlu0 %2276
      %v2278 = vsel %vm599, %v2262, 0.0
      %2279 = vadd.xlane.f32.xlu0 %v2278
      %v2280 = vpop.xlane.xlu0 %2279
      %v2281 = vsel %vm599, %v2263, 0.0
      %2282 = vadd.xlane.f32.xlu0 %v2281
      %v2283 = vpop.xlane.xlu0 %2282
      %v2284 = vsel %vm599, %v2264, 0.0
      %2285 = vadd.xlane.f32.xlu0 %v2284
      %v2286 = vpop.xlane.xlu0 %2285
      %v2287 = vsel %vm599, %v2265, 0.0
      %2288 = vadd.xlane.f32.xlu0 %v2287
      %v2289 = vpop.xlane.xlu0 %2288
      %v2290 = vrcp.pop 32.0
      %v2291 = vmul.f32 %v2268, %v2290
      %v2292 = vmul.f32 %v2271, %v2290
      %v2293 = vmul.f32 %v2274, %v2290
      %v2294 = vmul.f32 %v2277, %v2290
      %v2295 = vmul.f32 %v2280, %v2290
      %v2296 = vmul.f32 %v2283, %v2290
      %v2297 = vmul.f32 %v2286, %v2290
      %v2298 = vmul.f32 %v2289, %v2290
      %v2299 = vsub.f32 %v2258, %v2291
      %v2300 = vsub.f32 %v2259, %v2292
      %v2301 = vsub.f32 %v2260, %v2293
      %v2302 = vsub.f32 %v2261, %v2294
      %v2303 = vsub.f32 %v2262, %v2295
      %v2304 = vsub.f32 %v2263, %v2296
      %v2305 = vsub.f32 %v2264, %v2297
      %v2306 = vsub.f32 %v2265, %v2298
      %v2307 = vmul.f32 %v2299, %v2299
      %v2308 = vmul.f32 %v2300, %v2300
      %v2309 = vmul.f32 %v2301, %v2301
      %v2310 = vmul.f32 %v2302, %v2302
      %v2311 = vmul.f32 %v2303, %v2303
      %v2312 = vmul.f32 %v2304, %v2304
      %v2313 = vmul.f32 %v2305, %v2305
      %v2314 = vmul.f32 %v2306, %v2306
      %v2315 = vsel %vm599, %v2307, 0.0
      %2316 = vadd.xlane.f32.xlu0 %v2315
      %v2317 = vpop.xlane.xlu0 %2316
      %v2318 = vsel %vm599, %v2308, 0.0
      %2319 = vadd.xlane.f32.xlu0 %v2318
      %v2320 = vpop.xlane.xlu0 %2319
      %v2321 = vsel %vm599, %v2309, 0.0
      %2322 = vadd.xlane.f32.xlu0 %v2321
      %v2323 = vpop.xlane.xlu0 %2322
      %v2324 = vsel %vm599, %v2310, 0.0
      %2325 = vadd.xlane.f32.xlu0 %v2324
      %v2326 = vpop.xlane.xlu0 %2325
      %v2327 = vsel %vm599, %v2311, 0.0
      %2328 = vadd.xlane.f32.xlu0 %v2327
      %v2329 = vpop.xlane.xlu0 %2328
      %v2330 = vsel %vm599, %v2312, 0.0
      %2331 = vadd.xlane.f32.xlu0 %v2330
      %v2332 = vpop.xlane.xlu0 %2331
      %v2333 = vsel %vm599, %v2313, 0.0
      %2334 = vadd.xlane.f32.xlu0 %v2333
      %v2335 = vpop.xlane.xlu0 %2334
      %v2336 = vsel %vm599, %v2314, 0.0
      %2337 = vadd.xlane.f32.xlu0 %v2336
      %v2338 = vpop.xlane.xlu0 %2337
      %v2339 = vmul.f32 %v2317, %v2290
      %v2340 = vmul.f32 %v2320, %v2290
      %v2341 = vmul.f32 %v2323, %v2290
      %v2342 = vmul.f32 %v2326, %v2290
      %v2343 = vmul.f32 %v2329, %v2290
      %v2344 = vmul.f32 %v2332, %v2290
      %v2345 = vmul.f32 %v2335, %v2290
      %v2346 = vmul.f32 %v2338, %v2290
      %v2347 = vadd.f32 %v2339, 1e-05
      %v2348 = vadd.f32 %v2340, 1e-05
      %v2349 = vadd.f32 %v2341, 1e-05
      %v2350 = vadd.f32 %v2342, 1e-05
      %v2351 = vadd.f32 %v2343, 1e-05
      %v2352 = vadd.f32 %v2344, 1e-05
      %v2353 = vadd.f32 %v2345, 1e-05
      %v2354 = vadd.f32 %v2346, 1e-05
      %v2355 = vrsqrt.pop %v2347
      %v2356 = vrsqrt.pop %v2348
      %v2357 = vrsqrt.pop %v2349
      %v2358 = vrsqrt.pop %v2350
      %v2359 = vrsqrt.pop %v2351
      %v2360 = vrsqrt.pop %v2352
      %v2361 = vrsqrt.pop %v2353
      %v2362 = vrsqrt.pop %v2354
      %v2363 = vmul.f32 %v2299, %v2355
      %v2364 = vmul.f32 %v2300, %v2356
      %v2365 = vmul.f32 %v2301, %v2357
      %v2366 = vmul.f32 %v2302, %v2358
      %v2367 = vmul.f32 %v2303, %v2359
      %v2368 = vmul.f32 %v2304, %v2360
      %v2369 = vmul.f32 %v2305, %v2361
      %v2370 = vmul.f32 %v2306, %v2362
      %v2371 = vld [vmem:[%s8] sm:$0x1]
      %v2373 = vlaneseq
      %v2374 = vshrl.u32 %v2373, 7
      %v2375 = vsub.s32 0, %v2374
      %v2376 = vrot.slane %v2371, %v2375
      %v2378 = vmul.f32 %v2363, %v2376
      %v2379 = vmul.f32 %v2364, %v2376
      %v2380 = vmul.f32 %v2365, %v2376
      %v2381 = vmul.f32 %v2366, %v2376
      %v2382 = vmul.f32 %v2367, %v2376
      %v2383 = vmul.f32 %v2368, %v2376
      %v2384 = vmul.f32 %v2369, %v2376
      %v2385 = vmul.f32 %v2370, %v2376
      %v2386 = vld [vmem:[%s9] sm:$0x1]
      %v2388 = vlaneseq
      %v2389 = vshrl.u32 %v2388, 7
      %v2390 = vsub.s32 0, %v2389
      %v2391 = vrot.slane %v2386, %v2390
      %v2393 = vadd.f32 %v2378, %v2391
      %v2394 = vadd.f32 %v2379, %v2391
      %v2395 = vadd.f32 %v2380, %v2391
      %v2396 = vadd.f32 %v2381, %v2391
      %v2397 = vadd.f32 %v2382, %v2391
      %v2398 = vadd.f32 %v2383, %v2391
      %v2399 = vadd.f32 %v2384, %v2391
      %v2400 = vadd.f32 %v2385, %v2391
      %v2401 = vpack.c.bf16 %v2394, %v2393
      %v2402 = vpack.c.bf16 %v2396, %v2395
      %v2403 = vpack.c.bf16 %v2398, %v2397
      %v2404 = vpack.c.bf16 %v2400, %v2399
      %v2405 = vld [vmem:[%s10] sm:$0xf]
      %v2406 = vld [vmem:[%s10 + $0x4] sm:$0xf]
      %v2407 = vld [vmem:[%s10 + $0x8] sm:$0xf]
      %v2408 = vld [vmem:[%s10 + $0xc] sm:$0xf]
      %v2409 = vld [vmem:[%s11] sm:$0x1]
      %v2411 = vlaneseq
      %v2412 = vshrl.u32 %v2411, 7
      %v2413 = vsub.s32 0, %v2412
      %v2414 = vrot.slane %v2409, %v2413
      %v2420 = vunpack.c.l.b16 %v2405
      %v2421 = vunpack.c.l.b16 %v2406
      %v2422 = vunpack.c.l.b16 %v2407
      %v2423 = vunpack.c.l.b16 %v2408
      %v2424 = vpack.c.b16 %v2421, %v2420
      %v2425 = vpack.c.b16 %v2423, %v2422
      %v2429 = vsel %vm599, %v2401, 0
      %v2432 = vsel %vm599, %v2402, 0
      %v2435 = vsel %vm599, %v2403, 0
      %v2438 = vsel %vm599, %v2404, 0
      %2440 = vmatprep.subr.bf16.mxu0 0
      %2441 = vmatpush1.bf16.msra.mxu0 %v2424
      %2442 = vmatprep.subr.bf16.mxu0 0
      %2443 = vmatpush1.bf16.msra.mxu0 %v2425
      %2444 = vmatprep.subr.bf16.mxu0 0
      %2445 = vmatpush1.bf16.msra.mxu0 0
      %2446 = vmatprep.subr.bf16.mxu0 0
      %2447 = vmatpush1.bf16.msra.mxu0 0
      %2448 = vmatprep.subr.bf16.mxu0 0
      %2449 = vmatpush1.bf16.msra.mxu0 0
      %2450 = vmatprep.subr.bf16.mxu0 0
      %2451 = vmatpush1.bf16.msra.mxu0 0
      %2452 = vmatprep.subr.bf16.mxu0 0
      %2453 = vmatpush1.bf16.msra.mxu0 0
      %2454 = vmatprep.subr.bf16.mxu0 0
      %2455 = vmatpush1.bf16.msra.mxu0 0
      %2456 = vmatprep.subr.bf16.mxu0 0
      %2457 = vmatpush1.bf16.msra.mxu0 0
      %2458 = vmatprep.subr.bf16.mxu0 0
      %2459 = vmatpush1.bf16.msra.mxu0 0
      %2460 = vmatprep.subr.bf16.mxu0 0
      %2461 = vmatpush1.bf16.msra.mxu0 0
      %2462 = vmatprep.subr.bf16.mxu0 0
      %2463 = vmatpush1.bf16.msra.mxu0 0
      %2464 = vmatprep.subr.bf16.mxu0 0
      %2465 = vmatpush1.bf16.msra.mxu0 0
      %2466 = vmatprep.subr.bf16.mxu0 0
      %2467 = vmatpush1.bf16.msra.mxu0 0
      %2468 = vmatprep.subr.bf16.mxu0 0
      %2469 = vmatpush1.bf16.msra.mxu0 0
      %2470 = vmatprep.subr.bf16.mxu0 0
      %2471 = vmatpush1.bf16.msra.mxu0 0
      %2472 = vmatprep.mubr.bf16.mxu0 0
      %2473 = vmatmul.mubr.bf16.gmra.mrb[0].mxu0 %v2429
      %v2474 = vpop.f32.mrb[0].mxu0
      %v2475 = vadd.f32 %v2414, %v2474
      %v2476 = vpop.f32.mrb[0].mxu0
      %v2477 = vpop.f32.mrb[0].mxu0
      %v2478 = vadd.f32 %v2414, %v2477
      %v2479 = vpop.f32.mrb[0].mxu0
      %2480 = vmatprep.mubr.bf16.mxu0 0
      %2481 = vmatmul.mubr.bf16.gmra.mrb[0].mxu0 %v2432
      %v2482 = vpop.f32.mrb[0].mxu0
      %v2483 = vadd.f32 %v2414, %v2482
      %v2484 = vpop.f32.mrb[0].mxu0
      %v2485 = vpop.f32.mrb[0].mxu0
      %v2486 = vadd.f32 %v2414, %v2485
      %v2487 = vpop.f32.mrb[0].mxu0
      %2488 = vmatprep.mubr.bf16.mxu0 0
      %2489 = vmatmul.mubr.bf16.gmra.mrb[0].mxu0 %v2435
      %v2490 = vpop.f32.mrb[0].mxu0
      %v2491 = vadd.f32 %v2414, %v2490
      %v2492 = vpop.f32.mrb[0].mxu0
      %v2493 = vpop.f32.mrb[0].mxu0
      %v2494 = vadd.f32 %v2414, %v2493
      %v2495 = vpop.f32.mrb[0].mxu0
      %2496 = vmatprep.mubr.bf16.mxu0 0
      %2497 = vmatmul.mubr.bf16.gmra.mrb[0].mxu0 %v2438
      %v2498 = vpop.f32.mrb[0].mxu0
      %v2499 = vadd.f32 %v2414, %v2498
      %v2500 = vpop.f32.mrb[0].mxu0
      %v2501 = vpop.f32.mrb[0].mxu0
      %v2502 = vadd.f32 %v2414, %v2501
      %v2503 = vpop.f32.mrb[0].mxu0
      %2504 = vdwg.mxu0
      %v2505 = vmax.f32 %v2475, 0.0
      %v2506 = vmax.f32 %v2478, 0.0
      %v2507 = vmax.f32 %v2483, 0.0
      %v2508 = vmax.f32 %v2486, 0.0
      %v2509 = vmax.f32 %v2491, 0.0
      %v2510 = vmax.f32 %v2494, 0.0
      %v2511 = vmax.f32 %v2499, 0.0
      %v2512 = vmax.f32 %v2502, 0.0
      %v2513 = vpack.c.bf16 %v2506, %v2505
      %v2514 = vpack.c.bf16 %v2508, %v2507
      %v2515 = vpack.c.bf16 %v2510, %v2509
      %v2516 = vpack.c.bf16 %v2512, %v2511
      %v2517 = vld [vmem:[%s12] sm:$0xf]
      %v2518 = vld [vmem:[%s12 + $0x4] sm:$0xf]
      %v2519 = vld [vmem:[%s12 + $0x8] sm:$0xf]
      %v2520 = vld [vmem:[%s12 + $0xc] sm:$0xf]
      %v2521 = vld [vmem:[%s12 + $0x10] sm:$0xf]
      %v2522 = vld [vmem:[%s12 + $0x14] sm:$0xf]
      %v2523 = vld [vmem:[%s12 + $0x18] sm:$0xf]
      %v2524 = vld [vmem:[%s12 + $0x1c] sm:$0xf]
      %v2525 = vld [vmem:[%s12 + $0x20] sm:$0xf]
      %v2526 = vld [vmem:[%s12 + $0x24] sm:$0xf]
      %v2527 = vld [vmem:[%s12 + $0x28] sm:$0xf]
      %v2528 = vld [vmem:[%s12 + $0x2c] sm:$0xf]
      %v2529 = vld [vmem:[%s12 + $0x30] sm:$0xf]
      %v2530 = vld [vmem:[%s12 + $0x34] sm:$0xf]
      %v2531 = vld [vmem:[%s12 + $0x38] sm:$0xf]
      %v2532 = vld [vmem:[%s12 + $0x3c] sm:$0xf]
      %v2533 = vld [vmem:[%s13] sm:$0x1]
      %v2535 = vlaneseq
      %v2536 = vshrl.u32 %v2535, 7
      %v2537 = vsub.s32 0, %v2536
      %v2538 = vrot.slane %v2533, %v2537
      %v2556 = vunpack.c.l.b16 %v2517
      %v2557 = vunpack.c.l.b16 %v2518
      %v2558 = vunpack.c.l.b16 %v2519
      %v2559 = vunpack.c.l.b16 %v2520
      %v2560 = vunpack.c.l.b16 %v2521
      %v2561 = vunpack.c.l.b16 %v2522
      %v2562 = vunpack.c.l.b16 %v2523
      %v2563 = vunpack.c.l.b16 %v2524
      %v2564 = vunpack.c.l.b16 %v2525
      %v2565 = vunpack.c.l.b16 %v2526
      %v2566 = vunpack.c.l.b16 %v2527
      %v2567 = vunpack.c.l.b16 %v2528
      %v2568 = vunpack.c.l.b16 %v2529
      %v2569 = vunpack.c.l.b16 %v2530
      %v2570 = vunpack.c.l.b16 %v2531
      %v2571 = vunpack.c.l.b16 %v2532
      %v2572 = vpack.c.b16 %v2557, %v2556
      %v2573 = vpack.c.b16 %v2559, %v2558
      %v2574 = vpack.c.b16 %v2561, %v2560
      %v2575 = vpack.c.b16 %v2563, %v2562
      %v2576 = vpack.c.b16 %v2565, %v2564
      %v2577 = vpack.c.b16 %v2567, %v2566
      %v2578 = vpack.c.b16 %v2569, %v2568
      %v2579 = vpack.c.b16 %v2571, %v2570
      %2588 = vmatprep.subr.bf16.mxu0 0
      %2589 = vmatpush1.bf16.msra.mxu0 %v2572
      %2590 = vmatprep.subr.bf16.mxu0 0
      %2591 = vmatpush1.bf16.msra.mxu0 %v2573
      %2592 = vmatprep.subr.bf16.mxu0 0
      %2593 = vmatpush1.bf16.msra.mxu0 %v2574
      %2594 = vmatprep.subr.bf16.mxu0 0
      %2595 = vmatpush1.bf16.msra.mxu0 %v2575
      %2596 = vmatprep.subr.bf16.mxu0 0
      %2597 = vmatpush1.bf16.msra.mxu0 %v2576
      %2598 = vmatprep.subr.bf16.mxu0 0
      %2599 = vmatpush1.bf16.msra.mxu0 %v2577
      %2600 = vmatprep.subr.bf16.mxu0 0
      %2601 = vmatpush1.bf16.msra.mxu0 %v2578
      %2602 = vmatprep.subr.bf16.mxu0 0
      %2603 = vmatpush1.bf16.msra.mxu0 %v2579
      %2604 = vmatprep.subr.bf16.mxu0 0
      %2605 = vmatpush1.bf16.msra.mxu0 0
      %2606 = vmatprep.subr.bf16.mxu0 0
      %2607 = vmatpush1.bf16.msra.mxu0 0
      %2608 = vmatprep.subr.bf16.mxu0 0
      %2609 = vmatpush1.bf16.msra.mxu0 0
      %2610 = vmatprep.subr.bf16.mxu0 0
      %2611 = vmatpush1.bf16.msra.mxu0 0
      %2612 = vmatprep.subr.bf16.mxu0 0
      %2613 = vmatpush1.bf16.msra.mxu0 0
      %2614 = vmatprep.subr.bf16.mxu0 0
      %2615 = vmatpush1.bf16.msra.mxu0 0
      %2616 = vmatprep.subr.bf16.mxu0 0
      %2617 = vmatpush1.bf16.msra.mxu0 0
      %2618 = vmatprep.subr.bf16.mxu0 0
      %2619 = vmatpush1.bf16.msra.mxu0 0
      %2620 = vmatprep.mubr.bf16.mxu0 0
      %2621 = vmatmul.mubr.bf16.gmra.mrb[0].mxu0 %v2513
      %v2622 = vpop.f32.mrb[0].mxu0
      %v2623 = vadd.f32 %v2538, %v2622
      %v2624 = vpop.f32.mrb[0].mxu0
      %v2625 = vpop.f32.mrb[0].mxu0
      %v2626 = vadd.f32 %v2538, %v2625
      %v2627 = vpop.f32.mrb[0].mxu0
      %2628 = vmatprep.mubr.bf16.mxu0 0
      %2629 = vmatmul.mubr.bf16.gmra.mrb[0].mxu0 %v2514
      %v2630 = vpop.f32.mrb[0].mxu0
      %v2631 = vadd.f32 %v2538, %v2630
      %v2632 = vpop.f32.mrb[0].mxu0
      %v2633 = vpop.f32.mrb[0].mxu0
      %v2634 = vadd.f32 %v2538, %v2633
      %v2635 = vpop.f32.mrb[0].mxu0
      %2636 = vmatprep.mubr.bf16.mxu0 0
      %2637 = vmatmul.mubr.bf16.gmra.mrb[0].mxu0 %v2515
      %v2638 = vpop.f32.mrb[0].mxu0
      %v2639 = vadd.f32 %v2538, %v2638
      %v2640 = vpop.f32.mrb[0].mxu0
      %v2641 = vpop.f32.mrb[0].mxu0
      %v2642 = vadd.f32 %v2538, %v2641
      %v2643 = vpop.f32.mrb[0].mxu0
      %2644 = vmatprep.mubr.bf16.mxu0 0
      %2645 = vmatmul.mubr.bf16.gmra.mrb[0].mxu0 %v2516
      %v2646 = vpop.f32.mrb[0].mxu0
      %v2647 = vadd.f32 %v2538, %v2646
      %v2648 = vpop.f32.mrb[0].mxu0
      %v2649 = vpop.f32.mrb[0].mxu0
      %v2650 = vadd.f32 %v2538, %v2649
      %v2651 = vpop.f32.mrb[0].mxu0
      %2652 = vdwg.mxu0
      %v2653 = vadd.f32 %v2393, %v2623
      %v2654 = vadd.f32 %v2394, %v2626
      %v2655 = vadd.f32 %v2395, %v2631
      %v2656 = vadd.f32 %v2396, %v2634
      %v2657 = vadd.f32 %v2397, %v2639
      %v2658 = vadd.f32 %v2398, %v2642
      %v2659 = vadd.f32 %v2399, %v2647
      %v2660 = vadd.f32 %v2400, %v2650
      %v2661 = vsel %vm599, %v2653, 0.0
      %2662 = vadd.xlane.f32.xlu0 %v2661
      %v2663 = vpop.xlane.xlu0 %2662
      %v2664 = vsel %vm599, %v2654, 0.0
      %2665 = vadd.xlane.f32.xlu0 %v2664
      %v2666 = vpop.xlane.xlu0 %2665
      %v2667 = vsel %vm599, %v2655, 0.0
      %2668 = vadd.xlane.f32.xlu0 %v2667
      %v2669 = vpop.xlane.xlu0 %2668
      %v2670 = vsel %vm599, %v2656, 0.0
      %2671 = vadd.xlane.f32.xlu0 %v2670
      %v2672 = vpop.xlane.xlu0 %2671
      %v2673 = vsel %vm599, %v2657, 0.0
      %2674 = vadd.xlane.f32.xlu0 %v2673
      %v2675 = vpop.xlane.xlu0 %2674
      %v2676 = vsel %vm599, %v2658, 0.0
      %2677 = vadd.xlane.f32.xlu0 %v2676
      %v2678 = vpop.xlane.xlu0 %2677
      %v2679 = vsel %vm599, %v2659, 0.0
      %2680 = vadd.xlane.f32.xlu0 %v2679
      %v2681 = vpop.xlane.xlu0 %2680
      %v2682 = vsel %vm599, %v2660, 0.0
      %2683 = vadd.xlane.f32.xlu0 %v2682
      %v2684 = vpop.xlane.xlu0 %2683
      %v2685 = vmul.f32 %v2663, %v2290
      %v2686 = vmul.f32 %v2666, %v2290
      %v2687 = vmul.f32 %v2669, %v2290
      %v2688 = vmul.f32 %v2672, %v2290
      %v2689 = vmul.f32 %v2675, %v2290
      %v2690 = vmul.f32 %v2678, %v2290
      %v2691 = vmul.f32 %v2681, %v2290
      %v2692 = vmul.f32 %v2684, %v2290
      %v2693 = vsub.f32 %v2653, %v2685
      %v2694 = vsub.f32 %v2654, %v2686
      %v2695 = vsub.f32 %v2655, %v2687
      %v2696 = vsub.f32 %v2656, %v2688
      %v2697 = vsub.f32 %v2657, %v2689
      %v2698 = vsub.f32 %v2658, %v2690
      %v2699 = vsub.f32 %v2659, %v2691
      %v2700 = vsub.f32 %v2660, %v2692
      %v2701 = vmul.f32 %v2693, %v2693
      %v2702 = vmul.f32 %v2694, %v2694
      %v2703 = vmul.f32 %v2695, %v2695
      %v2704 = vmul.f32 %v2696, %v2696
      %v2705 = vmul.f32 %v2697, %v2697
      %v2706 = vmul.f32 %v2698, %v2698
      %v2707 = vmul.f32 %v2699, %v2699
      %v2708 = vmul.f32 %v2700, %v2700
      %v2709 = vsel %vm599, %v2701, 0.0
      %2710 = vadd.xlane.f32.xlu0 %v2709
      %v2711 = vpop.xlane.xlu0 %2710
      %v2712 = vsel %vm599, %v2702, 0.0
      %2713 = vadd.xlane.f32.xlu0 %v2712
      %v2714 = vpop.xlane.xlu0 %2713
      %v2715 = vsel %vm599, %v2703, 0.0
      %2716 = vadd.xlane.f32.xlu0 %v2715
      %v2717 = vpop.xlane.xlu0 %2716
      %v2718 = vsel %vm599, %v2704, 0.0
      %2719 = vadd.xlane.f32.xlu0 %v2718
      %v2720 = vpop.xlane.xlu0 %2719
      %v2721 = vsel %vm599, %v2705, 0.0
      %2722 = vadd.xlane.f32.xlu0 %v2721
      %v2723 = vpop.xlane.xlu0 %2722
      %v2724 = vsel %vm599, %v2706, 0.0
      %2725 = vadd.xlane.f32.xlu0 %v2724
      %v2726 = vpop.xlane.xlu0 %2725
      %v2727 = vsel %vm599, %v2707, 0.0
      %2728 = vadd.xlane.f32.xlu0 %v2727
      %v2729 = vpop.xlane.xlu0 %2728
      %v2730 = vsel %vm599, %v2708, 0.0
      %2731 = vadd.xlane.f32.xlu0 %v2730
      %v2732 = vpop.xlane.xlu0 %2731
      %v2733 = vmul.f32 %v2711, %v2290
      %v2734 = vmul.f32 %v2714, %v2290
      %v2735 = vmul.f32 %v2717, %v2290
      %v2736 = vmul.f32 %v2720, %v2290
      %v2737 = vmul.f32 %v2723, %v2290
      %v2738 = vmul.f32 %v2726, %v2290
      %v2739 = vmul.f32 %v2729, %v2290
      %v2740 = vmul.f32 %v2732, %v2290
      %v2741 = vadd.f32 %v2733, 1e-05
      %v2742 = vadd.f32 %v2734, 1e-05
      %v2743 = vadd.f32 %v2735, 1e-05
      %v2744 = vadd.f32 %v2736, 1e-05
      %v2745 = vadd.f32 %v2737, 1e-05
      %v2746 = vadd.f32 %v2738, 1e-05
      %v2747 = vadd.f32 %v2739, 1e-05
      %v2748 = vadd.f32 %v2740, 1e-05
      %v2749 = vrsqrt.pop %v2741
      %v2750 = vrsqrt.pop %v2742
      %v2751 = vrsqrt.pop %v2743
      %v2752 = vrsqrt.pop %v2744
      %v2753 = vrsqrt.pop %v2745
      %v2754 = vrsqrt.pop %v2746
      %v2755 = vrsqrt.pop %v2747
      %v2756 = vrsqrt.pop %v2748
      %v2757 = vmul.f32 %v2693, %v2749
      %v2758 = vmul.f32 %v2694, %v2750
      %v2759 = vmul.f32 %v2695, %v2751
      %v2760 = vmul.f32 %v2696, %v2752
      %v2761 = vmul.f32 %v2697, %v2753
      %v2762 = vmul.f32 %v2698, %v2754
      %v2763 = vmul.f32 %v2699, %v2755
      %v2764 = vmul.f32 %v2700, %v2756
      %v2765 = vld [vmem:[%s14] sm:$0x1]
      %v2767 = vlaneseq
      %v2768 = vshrl.u32 %v2767, 7
      %v2769 = vsub.s32 0, %v2768
      %v2770 = vrot.slane %v2765, %v2769
      %v2772 = vmul.f32 %v2757, %v2770
      %v2773 = vmul.f32 %v2758, %v2770
      %v2774 = vmul.f32 %v2759, %v2770
      %v2775 = vmul.f32 %v2760, %v2770
      %v2776 = vmul.f32 %v2761, %v2770
      %v2777 = vmul.f32 %v2762, %v2770
      %v2778 = vmul.f32 %v2763, %v2770
      %v2779 = vmul.f32 %v2764, %v2770
      %v2780 = vld [vmem:[%s15] sm:$0x1]
      %v2782 = vlaneseq
      %v2783 = vshrl.u32 %v2782, 7
      %v2784 = vsub.s32 0, %v2783
      %v2785 = vrot.slane %v2780, %v2784
      %v2787 = vadd.f32 %v2772, %v2785
      %v2788 = vadd.f32 %v2773, %v2785
      %v2789 = vadd.f32 %v2774, %v2785
      %v2790 = vadd.f32 %v2775, %v2785
      %v2791 = vadd.f32 %v2776, %v2785
      %v2792 = vadd.f32 %v2777, %v2785
      %v2793 = vadd.f32 %v2778, %v2785
      %v2794 = vadd.f32 %v2779, %v2785
      %2795 = vst.msk [vmem:[%s545] sm:$0xff] %vm599, %v2787
      %2796 = vst.msk [vmem:[%s545 + $0x8] sm:$0xff] %vm599, %v2788
      %2797 = vst.msk [vmem:[%s545 + $0x10] sm:$0xff] %vm599, %v2789
      %2798 = vst.msk [vmem:[%s545 + $0x18] sm:$0xff] %vm599, %v2790
      %2799 = vst.msk [vmem:[%s545 + $0x20] sm:$0xff] %vm599, %v2791
      %2800 = vst.msk [vmem:[%s545 + $0x28] sm:$0xff] %vm599, %v2792
      %2801 = vst.msk [vmem:[%s545 + $0x30] sm:$0xff] %vm599, %v2793
      %2802 = vst.msk [vmem:[%s545 + $0x38] sm:$0xff] %vm599, %v2794
      %s2803 = smul.u32 8, %s27
      %p2804 = scmp.lt.s32.totalorder %s2803, 15
      %s2805 = scalar_select %p2804, %s2803, 15
      %s2806 = smul.addr %s2805, 8
      %s2807 = scalar_lea.vmem %s16, %s2806
      // Predicated region
      $region85: #{tpu_custom_call.1} parent=83 // pred_check
        %p2808 = pneg %p391
      $region86: #{tpu_custom_call.1} parent=83 // pred_check_branch
        %2810 = sbr.rel (%p2808) target = $region88
      $region87: #{tpu_custom_call.1} parent=83 // pred_region
        %s2811 = smul.u32 8, %s27
      $region88: #{tpu_custom_call.1} parent=83 // pred_fallthru
        _
    $region84: #{tpu_custom_call.1} parent=5 // pred_fallthru
      _
    %p2812 = scmp.le.s32.totalorder 2, %s22
    // Predicated region
    $region89: #{tpu_custom_call.1} parent=5 // pred_check
      %p2813 = pneg %p2812
    $region90: #{tpu_custom_call.1} parent=5 // pred_check_branch
      %2815 = sbr.rel (%p2813) target = $region92
    $region91: #{tpu_custom_call.1} parent=5 // pred_region
      %s2816 = ssub.s32 %s22, 2
      // Predicated region
      $region93: #{tpu_custom_call.1} parent=91 // pred_check
        %p2817 = pneg %p397
      $region94: #{tpu_custom_call.1} parent=91 // pred_check_branch
        %2819 = sbr.rel (%p2817) target = $region96
      $region95: #{tpu_custom_call.1} parent=91 // pred_region
        %s2820 = smul.u32 8, %s28
        %p2821 = scmp.lt.s32.totalorder %s2820, 15
        %s2822 = scalar_select %p2821, %s2820, 15
        %s2823 = smul.addr %s2822, 8
        %s2824 = scalar_lea.vmem %s16, %s2823
      $region96: #{tpu_custom_call.1} parent=91 // pred_fallthru
        _
    $region92: #{tpu_custom_call.1} parent=5 // pred_fallthru
      _
  $region6: #{tpu_custom_call.1} parent=0 // loop_footer
    %s26 = sadd.s32 1, %s22
  $region7: #{tpu_custom_call.1} parent=0 // loop_footer_branch
    %21 = sbr.rel target = $region3
  $region8: #{tpu_custom_call.1} parent=0 // loop_exit
    _

</llo_original>
